<compile_context>
chip_gen: v7x
topology: tpu7x:2x2x1
jax: 0.10.0
libtpu: 0.0.40
codegen_flags: <defaults>
</compile_context>

<pallas_src>
import math

import jax
import jax.numpy as jnp
from jax.experimental import pallas as pl
from jax.experimental.pallas import tpu as pltpu


def _flash_mha_kernel(q_ref, kT_ref, v_ref, wo_ref, bo_ref, out_ref,
                      m_scr, l_scr, acc_scr, o_scr):
    h = pl.program_id(2)
    kv = pl.program_id(3)
    num_h = pl.num_programs(2)
    num_kv = pl.num_programs(3)

    # First visit of this (batch, q-tile): seed the W_o accumulator with the
    # effective output bias (bo + sum_h bv_h @ wo_h, folded in the wrapper).
    @pl.when(jnp.logical_and(h == 0, kv == 0))
    def _():
        o_scr[...] = jnp.broadcast_to(bo_ref[...], o_scr.shape)

    # New head: reset the online-softmax state.
    @pl.when(kv == 0)
    def _():
        m_scr[...] = jnp.full_like(m_scr, -jnp.inf)
        l_scr[...] = jnp.zeros_like(l_scr)
        acc_scr[...] = jnp.zeros_like(acc_scr)

    q = q_ref[0, 0]      # (tq, d_k)  bf16, pre-scaled by 1/sqrt(d_k)
    kT = kT_ref[0, 0]    # (d_k, tk)  bf16, d_k-major -> plain MXU matmul
    v = v_ref[0, 0]      # (tk, d_k)  bf16

    # scores = (scaled Q) @ K^T on the MXU with f32 accumulation.
    s = jnp.dot(q, kT, preferred_element_type=jnp.float32)          # (tq, tk)

    # TODO(synk): the optional `mask` argument of the PyTorch forward is not
    # wired in (default mask=None path only; the bk/bv folding is exact there).

    # Online softmax update.
    m_prev = m_scr[...]
    m_new = jnp.maximum(m_prev, jnp.max(s, axis=-1, keepdims=True))
    alpha = jnp.exp(m_prev - m_new)
    p = jnp.exp(s - m_new)
    l_scr[...] = alpha * l_scr[...] + jnp.sum(p, axis=-1, keepdims=True)
    acc_scr[...] = alpha * acc_scr[...] + jnp.dot(
        p.astype(jnp.bfloat16), v, preferred_element_type=jnp.float32)
    m_scr[...] = m_new

    # Last KV tile of this head: normalize (EUP reciprocal) and fold the head
    # output straight into the W_o projection (W_o fully resident in VMEM).
    @pl.when(kv == num_kv - 1)
    def _():
        attn = acc_scr[...] * pl.reciprocal(l_scr[...], approx=True)
        o_scr[...] += jnp.dot(attn.astype(jnp.bfloat16), wo_ref[h],
                              preferred_element_type=jnp.float32)

    # Very last visit of this output block: single lane-dense store.
    @pl.when(jnp.logical_and(h == num_h - 1, kv == num_kv - 1))
    def _():
        out_ref[0] = o_scr[...].astype(out_ref.dtype)


def multi_head_attention(xq, xk, xv, params, *, num_heads,
                         block_q=256, block_kv=512, out_dtype=jnp.float32):
    """xq/xk/xv: (B, S, D).  params: torch Linear weights pre-transposed to
    (d_in, d_out) plus (D,) biases.  Returns (B, S, D) in `out_dtype`
    (mask=None path of the PyTorch forward)."""
    B, S, D = xq.shape
    H = num_heads
    assert D % H == 0, "d_model must be divisible by num_heads"
    d_k = D // H
    scale = 1.0 / math.sqrt(d_k)

    block_q = min(block_q, S)
    block_kv = min(block_kv, S)
    assert S % block_q == 0 and S % block_kv == 0, "seq len must tile evenly"

    f32 = jnp.float32
    wq = jnp.asarray(params["wq"], f32).reshape(D, H, d_k)
    wk = jnp.asarray(params["wk"], f32).reshape(D, H, d_k)
    wv = jnp.asarray(params["wv"], f32).reshape(D, H, d_k)
    wo = jnp.asarray(params["wo"], f32)
    bq = jnp.asarray(params["bq"], f32).reshape(1, H, 1, d_k)
    bv = jnp.asarray(params["bv"], f32)
    bo = jnp.asarray(params["bo"], f32)
    # b_k is dropped: it only adds q.b_k, constant across keys for each query
    # row, and softmax is invariant to a per-row shift (mask=None path).

    # Hoisted projections: one-time XLA matmuls instead of re-projecting K/V
    # once per (batch, q_tile, head, kv_tile).  K is produced d_k-major so the
    # in-kernel scores matmul needs no transpose/relayout.  The 1/sqrt(d_k)
    # scale and q-bias are folded into Q here (nothing left per-tile).
    q = (jnp.einsum("bsd,dhe->bhse", jnp.asarray(xq, f32), wq) + bq) * scale
    kT = jnp.einsum("bsd,dhe->bhes", jnp.asarray(xk, f32), wk)      # (B,H,d_k,S)
    v = jnp.einsum("bsd,dhe->bhse", jnp.asarray(xv, f32), wv)       # (B,H,S,d_k)
    q = q.astype(jnp.bfloat16)
    kT = kT.astype(jnp.bfloat16)
    v = v.astype(jnp.bfloat16)

    # Softmax rows sum to 1, so the +b_v contribution after normalization is
    # exactly b_v @ W_o per row: fold it into one effective output bias.
    bo_eff = (bo + bv @ wo).reshape(1, D)
    wo_h = wo.reshape(H, d_k, D).astype(jnp.bfloat16)

    grid = (B, S // block_q, H, S // block_kv)

    q_spec = pl.BlockSpec((1, 1, block_q, d_k), lambda b, qi, h, kv: (b, h, qi, 0))
    kT_spec = pl.BlockSpec((1, 1, d_k, block_kv), lambda b, qi, h, kv: (b, h, 0, kv))
    v_spec = pl.BlockSpec((1, 1, block_kv, d_k), lambda b, qi, h, kv: (b, h, kv, 0))
    # W_o and the effective bias are fully resident (constant index_map):
    # DMA'd once for the whole grid instead of per (batch, q_tile, head).
    wo_spec = pl.BlockSpec((H, d_k, D), lambda b, qi, h, kv: (0, 0, 0))
    bo_spec = pl.BlockSpec((1, D), lambda b, qi, h, kv: (0, 0))
    out_spec = pl.BlockSpec((1, block_q, D), lambda b, qi, h, kv: (b, qi, 0))

    return pl.pallas_call(
        _flash_mha_kernel,
        out_shape=jax.ShapeDtypeStruct((B, S, D), out_dtype),
        grid_spec=pltpu.PrefetchScalarGridSpec(
            num_scalar_prefetch=0,
            grid=grid,
            in_specs=[q_spec, kT_spec, v_spec, wo_spec, bo_spec],
            out_specs=out_spec,
            scratch_shapes=[
                pltpu.VMEM((block_q, 1), jnp.float32),    # running max
                pltpu.VMEM((block_q, 1), jnp.float32),    # running sum
                pltpu.VMEM((block_q, d_k), jnp.float32),  # un-normalized P@V
                pltpu.VMEM((block_q, D), jnp.float32),    # W_o-space accumulator
            ]),
        compiler_params=pltpu.CompilerParams(
            # batch / q-tile shard across TensorCores; head and KV are
            # accumulation axes over the resident output accumulator.
            dimension_semantics=("parallel", "parallel", "arbitrary", "arbitrary"),
            # Per-step footprint is a few MiB even at D=1024 / block_kv=512;
            # 48 MiB leaves headroom under v7x's 64 MiB physical VMEM (raise
            # toward 96 MiB on v5e/v6e if sweeping larger tiles).
            vmem_limit_bytes=48 * 1024 * 1024,
        ),
    )(q, kT, v, wo_h, bo_eff)


def _reference(xq, xk, xv, params, *, num_heads):
    """Pure-JAX f32 replica of the PyTorch forward (mask=None)."""
    B, S, D = xq.shape
    d_k = D // num_heads

    def lin(x, w, b):
        return x @ w + b

    def split(x):
        return x.reshape(B, S, num_heads, d_k).transpose(0, 2, 1, 3)

    Q = split(lin(xq, params["wq"], params["bq"]))
    K = split(lin(xk, params["wk"], params["bk"]))
    V = split(lin(xv, params["wv"], params["bv"]))

    scores = jnp.einsum("bhqd,bhkd->bhqk", Q, K) / math.sqrt(d_k)
    probs = jax.nn.softmax(scores, axis=-1)
    out = jnp.einsum("bhqk,bhkd->bhqd", probs, V)
    out = out.transpose(0, 2, 1, 3).reshape(B, S, D)
    return lin(out, params["wo"], params["bo"])


if __name__ == "__main__":
    B, S, D, H = 2, 256, 128, 4   # d_k = 32; grid (2, 1, 4, 1)

    key = jax.random.PRNGKey(0)
    keys = jax.random.split(key, 11)

    # Deterministic parameter init (nn.Linear(d_model, d_model) weights stored
    # pre-transposed as (d_in, d_out); biases are (D,)).
    bound = 1.0 / math.sqrt(D)
    params = {
        "wq": jax.random.uniform(keys[0], (D, D), jnp.float32, -bound, bound),
        "wk": jax.random.uniform(keys[1], (D, D), jnp.float32, -bound, bound),
        "wv": jax.random.uniform(keys[2], (D, D), jnp.float32, -bound, bound),
        "wo": jax.random.uniform(keys[3], (D, D), jnp.float32, -bound, bound),
        "bq": jax.random.uniform(keys[4], (D,), jnp.float32, -bound, bound),
        "bk": jax.random.uniform(keys[5], (D,), jnp.float32, -bound, bound),
        "bv": jax.random.uniform(keys[6], (D,), jnp.float32, -bound, bound),
        "bo": jax.random.uniform(keys[7], (D,), jnp.float32, -bound, bound),
    }

    xq = jax.random.normal(keys[8], (B, S, D), jnp.float32)
    xk = jax.random.normal(keys[9], (B, S, D), jnp.float32)
    xv = jax.random.normal(keys[10], (B, S, D), jnp.float32)

    out = multi_head_attention(xq, xk, xv, params, num_heads=H)
    out = jax.block_until_ready(out)

    ref = _reference(xq, xk, xv, params, num_heads=H)
    assert out.shape == (B, S, D)
    # Kernel feeds the MXU bf16 (with f32 accumulation) and uses the approx
    # EUP reciprocal; tolerance covers bf16 rounding vs. the f32 reference.
    max_err = float(jnp.max(jnp.abs(out - ref)))
    assert max_err < 5e-2, f"max abs err {max_err}"

    print("KERNEL_OK")
</pallas_src>

<mosaic_0001>
module attributes {stable_mosaic.version = 11 : i64} {
  func.func @_flash_mha_kernel(%arg0: i32, %arg1: i32, %arg2: i32, %arg3: i32, %arg4: memref<1x1x256x32xbf16, #tpu.memory_space<vmem>>, %arg5: memref<1x1x32x256xbf16, #tpu.memory_space<vmem>>, %arg6: memref<1x1x256x32xbf16, #tpu.memory_space<vmem>>, %arg7: memref<4x32x128xbf16, #tpu.memory_space<vmem>>, %arg8: memref<1x128xf32, #tpu.memory_space<vmem>>, %arg9: memref<1x256x128xf32, #tpu.memory_space<vmem>>, %arg10: memref<256x1xf32, #tpu.memory_space<vmem>>, %arg11: memref<256x1xf32, #tpu.memory_space<vmem>>, %arg12: memref<256x32xf32, #tpu.memory_space<vmem>>, %arg13: memref<256x128xf32, #tpu.memory_space<vmem>>) attributes {dimension_semantics = [#tpu.dimension_semantics<parallel>, #tpu.dimension_semantics<parallel>, #tpu.dimension_semantics<arbitrary>, #tpu.dimension_semantics<arbitrary>], iteration_bounds = array<i64: 2, 1, 4, 1>, scalar_prefetch = 0 : i64, scratch_operands = 4 : i64, tpu.core_type = #tpu.core_type<tc>, window_params = [{transform_indices = @transform_0, window_bounds = array<i64: 1, 1, 256, 32>}, {transform_indices = @transform_1, window_bounds = array<i64: 1, 1, 32, 256>}, {transform_indices = @transform_2, window_bounds = array<i64: 1, 1, 256, 32>}, {pipeline_mode = #tpu.pipeline_mode<synchronous>, transform_indices = @transform_3, window_bounds = array<i64: 4, 32, 128>}, {pipeline_mode = #tpu.pipeline_mode<synchronous>, transform_indices = @transform_4, window_bounds = array<i64: 1, 128>}, {transform_indices = @transform_5, window_bounds = array<i64: 1, 256, 128>}]} {
    %c0_i32 = arith.constant 0 : i32
    %0 = arith.cmpi eq, %arg2, %c0_i32 : i32
    %c0_i32_0 = arith.constant 0 : i32
    %1 = arith.cmpi eq, %arg3, %c0_i32_0 : i32
    %2 = arith.andi %0, %1 : i1
    %3 = arith.extui %2 : i1 to i32
    %c0_i32_1 = arith.constant 0 : i32
    %4 = arith.cmpi ne, %3, %c0_i32_1 : i32
    scf.if %4 {
      %c0_34 = arith.constant 0 : index
      %c0_35 = arith.constant 0 : index
      %46 = vector.load %arg8[%c0_34, %c0_35] : memref<1x128xf32, #tpu.memory_space<vmem>>, vector<1x128xf32>
      %47 = vector.shape_cast %46 : vector<1x128xf32> to vector<1x128xf32>
      %48 = vector.broadcast %47 : vector<1x128xf32> to vector<256x128xf32>
      %c0_36 = arith.constant 0 : index
      %c0_37 = arith.constant 0 : index
      %49 = vector.load %arg13[%c0_36, %c0_37] : memref<256x128xf32, #tpu.memory_space<vmem>>, vector<256x128xf32>
      tpu.vector_store %arg13[%c0_36, %c0_37], %48 {strides = array<i32>} : memref<256x128xf32, #tpu.memory_space<vmem>>, vector<256x128xf32>,
    } else {
    }
    %c0_i32_2 = arith.constant 0 : i32
    %5 = arith.cmpi eq, %arg3, %c0_i32_2 : i32
    %6 = arith.extui %5 : i1 to i32
    %c0_i32_3 = arith.constant 0 : i32
    %7 = arith.cmpi ne, %6, %c0_i32_3 : i32
    scf.if %7 {
      %cst_34 = arith.constant 0xFF800000 : f32
      %46 = vector.broadcast %cst_34 : f32 to vector<256x1xf32>
      %c0_35 = arith.constant 0 : index
      %c0_36 = arith.constant 0 : index
      %47 = vector.load %arg10[%c0_35, %c0_36] : memref<256x1xf32, #tpu.memory_space<vmem>>, vector<256x1xf32>
      tpu.vector_store %arg10[%c0_35, %c0_36], %46 {strides = array<i32>} : memref<256x1xf32, #tpu.memory_space<vmem>>, vector<256x1xf32>,
      %cst_37 = arith.constant 0.000000e+00 : f32
      %48 = vector.broadcast %cst_37 : f32 to vector<256x1xf32>
      %c0_38 = arith.constant 0 : index
      %c0_39 = arith.constant 0 : index
      %49 = vector.load %arg11[%c0_38, %c0_39] : memref<256x1xf32, #tpu.memory_space<vmem>>, vector<256x1xf32>
      tpu.vector_store %arg11[%c0_38, %c0_39], %48 {strides = array<i32>} : memref<256x1xf32, #tpu.memory_space<vmem>>, vector<256x1xf32>,
      %cst_40 = arith.constant 0.000000e+00 : f32
      %50 = vector.broadcast %cst_40 : f32 to vector<256x32xf32>
      %c0_41 = arith.constant 0 : index
      %c0_42 = arith.constant 0 : index
      %51 = vector.load %arg12[%c0_41, %c0_42] : memref<256x32xf32, #tpu.memory_space<vmem>>, vector<256x32xf32>
      tpu.vector_store %arg12[%c0_41, %c0_42], %50 {strides = array<i32>} : memref<256x32xf32, #tpu.memory_space<vmem>>, vector<256x32xf32>,
    } else {
    }
    %c0 = arith.constant 0 : index
    %c0_4 = arith.constant 0 : index
    %c0_5 = arith.constant 0 : index
    %c0_6 = arith.constant 0 : index
    %8 = vector.load %arg4[%c0, %c0_4, %c0_5, %c0_6] : memref<1x1x256x32xbf16, #tpu.memory_space<vmem>>, vector<1x1x256x32xbf16>
    %9 = vector.shape_cast %8 : vector<1x1x256x32xbf16> to vector<256x32xbf16>
    %c0_7 = arith.constant 0 : index
    %c0_8 = arith.constant 0 : index
    %c0_9 = arith.constant 0 : index
    %c0_10 = arith.constant 0 : index
    %10 = vector.load %arg5[%c0_7, %c0_8, %c0_9, %c0_10] : memref<1x1x32x256xbf16, #tpu.memory_space<vmem>>, vector<1x1x32x256xbf16>
    %11 = vector.shape_cast %10 : vector<1x1x32x256xbf16> to vector<32x256xbf16>
    %c0_11 = arith.constant 0 : index
    %c0_12 = arith.constant 0 : index
    %c0_13 = arith.constant 0 : index
    %c0_14 = arith.constant 0 : index
    %12 = vector.load %arg6[%c0_11, %c0_12, %c0_13, %c0_14] : memref<1x1x256x32xbf16, #tpu.memory_space<vmem>>, vector<1x1x256x32xbf16>
    %13 = vector.shape_cast %12 : vector<1x1x256x32xbf16> to vector<256x32xbf16>
    %cst = arith.constant dense<0.000000e+00> : vector<256x256xf32>
    %14 = tpu.matmul %9, %11, %cst {dimension_numbers = #tpu.dot_dimension_numbers<[1], [0], [0], [1], [0, 0, 1, 1], [], []>} : vector<256x32xbf16>, vector<32x256xbf16>, vector<256x256xf32> -> vector<256x256xf32>
    %c0_15 = arith.constant 0 : index
    %c0_16 = arith.constant 0 : index
    %15 = vector.load %arg10[%c0_15, %c0_16] : memref<256x1xf32, #tpu.memory_space<vmem>>, vector<256x1xf32>
    %cst_17 = arith.constant dense<0xFF800000> : vector<256xf32>
    %16 = vector.multi_reduction <maximumf>, %14, %cst_17 [1] : vector<256x256xf32> to vector<256xf32>
    %17 = vector.shape_cast %16 : vector<256xf32> to vector<256x1xf32>
    %18 = arith.maximumf %15, %17 : vector<256x1xf32>
    %19 = arith.subf %15, %18 : vector<256x1xf32>
    %20 = math.exp %19 : vector<256x1xf32>
    %21 = vector.broadcast %18 : vector<256x1xf32> to vector<256x256xf32>
    %22 = arith.subf %14, %21 : vector<256x256xf32>
    %23 = math.exp %22 : vector<256x256xf32>
    %c0_18 = arith.constant 0 : index
    %c0_19 = arith.constant 0 : index
    %24 = vector.load %arg11[%c0_18, %c0_19] : memref<256x1xf32, #tpu.memory_space<vmem>>, vector<256x1xf32>
    %25 = arith.mulf %20, %24 : vector<256x1xf32>
    %cst_20 = arith.constant dense<0.000000e+00> : vector<256xf32>
    %26 = vector.multi_reduction <add>, %23, %cst_20 [1] : vector<256x256xf32> to vector<256xf32>
    %27 = vector.shape_cast %26 : vector<256xf32> to vector<256x1xf32>
    %28 = arith.addf %25, %27 : vector<256x1xf32>
    %c0_21 = arith.constant 0 : index
    %c0_22 = arith.constant 0 : index
    %29 = vector.load %arg11[%c0_21, %c0_22] : memref<256x1xf32, #tpu.memory_space<vmem>>, vector<256x1xf32>
    tpu.vector_store %arg11[%c0_21, %c0_22], %28 {strides = array<i32>} : memref<256x1xf32, #tpu.memory_space<vmem>>, vector<256x1xf32>,
    %c0_23 = arith.constant 0 : index
    %c0_24 = arith.constant 0 : index
    %30 = vector.load %arg12[%c0_23, %c0_24] : memref<256x32xf32, #tpu.memory_space<vmem>>, vector<256x32xf32>
    %31 = vector.broadcast %20 : vector<256x1xf32> to vector<256x32xf32>
    %32 = arith.mulf %31, %30 : vector<256x32xf32>
    %33 = arith.truncf %23 : vector<256x256xf32> to vector<256x256xbf16>
    %cst_25 = arith.constant dense<0.000000e+00> : vector<256x32xf32>
    %34 = tpu.matmul %33, %13, %cst_25 {dimension_numbers = #tpu.dot_dimension_numbers<[1], [0], [0], [1], [0, 0, 1, 1], [], []>} : vector<256x256xbf16>, vector<256x32xbf16>, vector<256x32xf32> -> vector<256x32xf32>
    %35 = arith.addf %32, %34 : vector<256x32xf32>
    %c0_26 = arith.constant 0 : index
    %c0_27 = arith.constant 0 : index
    %36 = vector.load %arg12[%c0_26, %c0_27] : memref<256x32xf32, #tpu.memory_space<vmem>>, vector<256x32xf32>
    tpu.vector_store %arg12[%c0_26, %c0_27], %35 {strides = array<i32>} : memref<256x32xf32, #tpu.memory_space<vmem>>, vector<256x32xf32>,
    %c0_28 = arith.constant 0 : index
    %c0_29 = arith.constant 0 : index
    %37 = vector.load %arg10[%c0_28, %c0_29] : memref<256x1xf32, #tpu.memory_space<vmem>>, vector<256x1xf32>
    tpu.vector_store %arg10[%c0_28, %c0_29], %18 {strides = array<i32>} : memref<256x1xf32, #tpu.memory_space<vmem>>, vector<256x1xf32>,
    %c0_i32_30 = arith.constant 0 : i32
    %38 = arith.cmpi eq, %arg3, %c0_i32_30 : i32
    %39 = arith.extui %38 : i1 to i32
    %c0_i32_31 = arith.constant 0 : i32
    %40 = arith.cmpi ne, %39, %c0_i32_31 : i32
    scf.if %40 {
      %c0_34 = arith.constant 0 : index
      %c0_35 = arith.constant 0 : index
      %46 = vector.load %arg12[%c0_34, %c0_35] : memref<256x32xf32, #tpu.memory_space<vmem>>, vector<256x32xf32>
      %c0_36 = arith.constant 0 : index
      %c0_37 = arith.constant 0 : index
      %47 = vector.load %arg11[%c0_36, %c0_37] : memref<256x1xf32, #tpu.memory_space<vmem>>, vector<256x1xf32>
      %48 = tpu.reciprocal %47 {approx = true} : vector<256x1xf32> -> vector<256x1xf32>
      %49 = vector.broadcast %48 : vector<256x1xf32> to vector<256x32xf32>
      %50 = arith.mulf %46, %49 : vector<256x32xf32>
      %c0_38 = arith.constant 0 : index
      %c0_39 = arith.constant 0 : index
      %51 = vector.load %arg13[%c0_38, %c0_39] : memref<256x128xf32, #tpu.memory_space<vmem>>, vector<256x128xf32>
      %52 = arith.truncf %50 : vector<256x32xf32> to vector<256x32xbf16>
      %53 = arith.index_cast %arg2 : i32 to index
      %c0_40 = arith.constant 0 : index
      %c0_41 = arith.constant 0 : index
      %54 = vector.load %arg7[%53, %c0_40, %c0_41] : memref<4x32x128xbf16, #tpu.memory_space<vmem>>, vector<1x32x128xbf16>
      %55 = vector.shape_cast %54 : vector<1x32x128xbf16> to vector<32x128xbf16>
      %cst_42 = arith.constant dense<0.000000e+00> : vector<256x128xf32>
      %56 = tpu.matmul %52, %55, %cst_42 {dimension_numbers = #tpu.dot_dimension_numbers<[1], [0], [0], [1], [0, 0, 1, 1], [], []>} : vector<256x32xbf16>, vector<32x128xbf16>, vector<256x128xf32> -> vector<256x128xf32>
      %57 = arith.addf %51, %56 : vector<256x128xf32>
      %c0_43 = arith.constant 0 : index
      %c0_44 = arith.constant 0 : index
      %58 = vector.load %arg13[%c0_43, %c0_44] : memref<256x128xf32, #tpu.memory_space<vmem>>, vector<256x128xf32>
      tpu.vector_store %arg13[%c0_43, %c0_44], %57 {strides = array<i32>} : memref<256x128xf32, #tpu.memory_space<vmem>>, vector<256x128xf32>,
    } else {
    }
    %c3_i32 = arith.constant 3 : i32
    %41 = arith.cmpi eq, %arg2, %c3_i32 : i32
    %c0_i32_32 = arith.constant 0 : i32
    %42 = arith.cmpi eq, %arg3, %c0_i32_32 : i32
    %43 = arith.andi %41, %42 : i1
    %44 = arith.extui %43 : i1 to i32
    %c0_i32_33 = arith.constant 0 : i32
    %45 = arith.cmpi ne, %44, %c0_i32_33 : i32
    scf.if %45 {
      %c0_34 = arith.constant 0 : index
      %c0_35 = arith.constant 0 : index
      %46 = vector.load %arg13[%c0_34, %c0_35] : memref<256x128xf32, #tpu.memory_space<vmem>>, vector<256x128xf32>
      %c0_36 = arith.constant 0 : index
      %c0_37 = arith.constant 0 : index
      %c0_38 = arith.constant 0 : index
      %47 = vector.load %arg9[%c0_36, %c0_37, %c0_38] : memref<1x256x128xf32, #tpu.memory_space<vmem>>, vector<1x256x128xf32>
      %48 = vector.shape_cast %47 : vector<1x256x128xf32> to vector<256x128xf32>
      %49 = vector.shape_cast %46 : vector<256x128xf32> to vector<1x256x128xf32>
      tpu.vector_store %arg9[%c0_36, %c0_37, %c0_38], %49 {strides = array<i32>} : memref<1x256x128xf32, #tpu.memory_space<vmem>>, vector<1x256x128xf32>,
    } else {
    }
    return
  }
  func.func @transform_0(%arg0: i32, %arg1: i32, %arg2: i32, %arg3: i32) -> (i32, i32, i32, i32) {
    %c0_i32 = arith.constant 0 : i32
    %c0_i32_0 = arith.constant 0 : i32
    return %arg0, %arg2, %arg1, %c0_i32 : i32, i32, i32, i32
  }
  func.func @transform_1(%arg0: i32, %arg1: i32, %arg2: i32, %arg3: i32) -> (i32, i32, i32, i32) {
    %c0_i32 = arith.constant 0 : i32
    %c0_i32_0 = arith.constant 0 : i32
    return %arg0, %arg2, %c0_i32, %arg3 : i32, i32, i32, i32
  }
  func.func @transform_2(%arg0: i32, %arg1: i32, %arg2: i32, %arg3: i32) -> (i32, i32, i32, i32) {
    %c0_i32 = arith.constant 0 : i32
    %c0_i32_0 = arith.constant 0 : i32
    return %arg0, %arg2, %arg3, %c0_i32 : i32, i32, i32, i32
  }
  func.func @transform_3(%arg0: i32, %arg1: i32, %arg2: i32, %arg3: i32) -> (i32, i32, i32) {
    %c0_i32 = arith.constant 0 : i32
    %c0_i32_0 = arith.constant 0 : i32
    %c0_i32_1 = arith.constant 0 : i32
    %c0_i32_2 = arith.constant 0 : i32
    return %c0_i32, %c0_i32_0, %c0_i32_1 : i32, i32, i32
  }
  func.func @transform_4(%arg0: i32, %arg1: i32, %arg2: i32, %arg3: i32) -> (i32, i32) {
    %c0_i32 = arith.constant 0 : i32
    %c0_i32_0 = arith.constant 0 : i32
    %c0_i32_1 = arith.constant 0 : i32
    return %c0_i32, %c0_i32_0 : i32, i32
  }
  func.func @transform_5(%arg0: i32, %arg1: i32, %arg2: i32, %arg3: i32) -> (i32, i32, i32) {
    %c0_i32 = arith.constant 0 : i32
    %c0_i32_0 = arith.constant 0 : i32
    return %arg0, %arg1, %c0_i32 : i32, i32, i32
  }
}

</mosaic_0001>

<llo_original>
// kernel: tpu_custom_call.1
$region0: #{tpu_custom_call.1}
  #allocation0 [shape = 'u32[]', space=smem, size = 0x4, offset = 0x4, fixed_abs, tag = 'smem constant byte address 0x4 - core index']
  #allocation1 [shape = 'u32[144,128]{1,0:T(1,128)}', space=vmem, size = 0x12000, scoped, tag = 'internal scratch']
  #allocation2 [shape = 'f32[256,1]{1,0:T(8,128)}', space=vmem, size = 0x20000, scoped, tag = 'scratch operand']
  #allocation3 [shape = 'f32[256,1]{1,0:T(8,128)}', space=vmem, size = 0x20000, scoped, tag = 'scratch operand']
  #allocation4 [shape = 'f32[256,32]{1,0:T(8,128)}', space=vmem, size = 0x20000, scoped, tag = 'scratch operand']
  #allocation5 [shape = 'f32[256,128]{1,0:T(8,128)}', space=vmem, size = 0x20000, scoped, tag = 'scratch operand']
  %s0 = inlined_call_operand.vmem [shape: bf16[2,4,256,32], index: 0, kind: input, shape index: {}]
  %s1 = inlined_call_operand.vmem [shape: bf16[2,4,32,256], index: 1, kind: input, shape index: {}]
  %s2 = inlined_call_operand.vmem [shape: bf16[2,4,256,32], index: 2, kind: input, shape index: {}]
  %s3 = inlined_call_operand.vmem [shape: bf16[4,32,128], index: 3, kind: input, shape index: {}]
  %s4 = inlined_call_operand.vmem [shape: f32[1,128], index: 4, kind: input, shape index: {}]
  %s5 = inlined_call_operand.hbm [shape: f32[2,256,128], index: 5, kind: output, shape index: {}]
  %s6 = sld [smem:[#allocation0]]
  $region69: #{tpu_custom_call.1} parent=0
    _
  %s8 = ssub.s32 1, %s6
  %s9 = scalar_select 0, %s8, %s6
  $region1: #{tpu_custom_call.1} parent=0
    #allocation6 [shape = 'u8[262144]{0}', space=vmem, size = 0x40000, scoped, tag = 'output window, operand 0']
    #allocation7 [shape = 's32[2]{0}', space=sflag, size = 0x8, scoped, tag = 'scoped memory for tpu_custom_call.1']
    %10 = vsyncpa [#allocation7], 0
    %s11 = scalar_lea.sflag [#allocation7], 1
    %12 = vsyncpa %s11, 0
    loop: start=0, step=1, limit=10
    $region2: #{tpu_custom_call.1} parent=1 // loop_pre_header
      _
    $region3: #{tpu_custom_call.1} parent=1 // loop_header
      %s14 = sphi 0, %s18
      %p15 = scmp.ge.s32.totalorder %s14, 10
      %s21 = sphi 0, %s47
      %s22 = sphi 0, %s43
      %s23 = sphi 0, %s39
      %s24 = sphi 0, %s35
      %s25 = sphi 0, %s21
      %s26 = sphi 0, %s22
      %s27 = sphi 0, %s23
      %s28 = sphi 0, %s24
      %s29 = sphi 0, %s25
      %s30 = sphi 0, %s26
      %s31 = sphi 0, %s27
      %s32 = sphi 0, %s28
      %s54 = sphi 0, %s56
      %s57 = sphi 0, %s54
      %s58 = sphi 0, %s57
      %s74 = sphi 0, %s58
      %s84 = sphi 0, %s86
      %s87 = sphi 0, %s84
      %s88 = sphi 0, %s87
      %s104 = sphi 0, %s88
      %s114 = sphi 0, %s116
      %s117 = sphi 0, %s114
      %s118 = sphi 0, %s117
      %s134 = sphi 0, %s118
      %s138 = sphi 0, %s138
      %s140 = sphi 0, %s138
      %s141 = sphi 0, %s140
      %s155 = sphi 0, %s141
      %s159 = sphi 0, %s159
      %s161 = sphi 0, %s159
      %s162 = sphi 0, %s161
      %s176 = sphi 0, %s162
      %s184 = sphi 0, %s186
      %s187 = sphi 0, %s184
      %s188 = sphi 0, %s187
      %s204 = sphi 0, %s188
    $region4: #{tpu_custom_call.1} parent=1 // loop_header_branch
      %17 = sbr.rel (%p15) target = $region8
    $region5: #{tpu_custom_call.1} parent=1 // loop_body
      %s19 = ssub.s32 %s14, 1
      %s20 = ssub.s32 %s14, 2
      %s33 = sadd.s32 1, %s24
      %p34 = scmp.ge.s32.totalorder %s33, 1
      %s35 = scalar_select %p34, 0, %s33
      %s36 = sadd.s32 1, %s23
      %s37 = scalar_select %p34, %s36, %s23
      %p38 = scmp.ge.s32.totalorder %s37, 4
      %s39 = scalar_select %p38, 0, %s37
      %s40 = sadd.s32 1, %s22
      %s41 = scalar_select %p38, %s40, %s22
      %p42 = scmp.ge.s32.totalorder %s41, 1
      %s43 = scalar_select %p42, 0, %s41
      %s44 = sadd.s32 1, %s21
      %s45 = scalar_select %p42, %s44, %s21
      %p46 = scmp.ge.s32.totalorder %s45, 2
      %s47 = scalar_select %p46, 0, %s45
      %s48 = ssub.s32 %s21, %s47
      %s49 = ssub.s32 %s23, %s39
      %s50 = sor.u32 %s48, %s49
      %s51 = ssub.s32 %s22, %s43
      %s52 = sor.u32 %s50, %s51
      %p53 = scmp.eq.s32.totalorder %s52, 0
      %s55 = sadd.s32 %s54, 1
      %s56 = scalar_select %p53, %s54, %s55
      %p59 = pneg %p53
      %p60 = scmp.eq.s32.totalorder %s14, 7
      %p61 = por %p59, %p60
      %p62 = scmp.ne.s32.totalorder %s54, %s57
      %p63 = scmp.eq.s32.totalorder %s14, 0
      %p64 = por %p62, %p63
      %p65 = scmp.ne.s32.totalorder %s54, %s57
      %p66 = scmp.eq.s32.totalorder %s19, 7
      %p67 = por %p65, %p66
      %p68 = scmp.ne.s32.totalorder %s57, %s58
      %p69 = scmp.eq.s32.totalorder %s19, 0
      %p70 = por %p68, %p69
      %p71 = scmp.ne.s32.totalorder %s57, %s58
      %p72 = scmp.eq.s32.totalorder %s20, 7
      %p73 = por %p71, %p72
      %p75 = scmp.ne.s32.totalorder %s58, %s74
      %p76 = scmp.eq.s32.totalorder %s20, 0
      %p77 = por %p75, %p76
      %s78 = ssub.s32 %s21, %s47
      %s79 = ssub.s32 %s23, %s39
      %s80 = sor.u32 %s78, %s79
      %s81 = ssub.s32 %s24, %s35
      %s82 = sor.u32 %s80, %s81
      %p83 = scmp.eq.s32.totalorder %s82, 0
      %s85 = sadd.s32 %s84, 1
      %s86 = scalar_select %p83, %s84, %s85
      %p89 = pneg %p83
      %p90 = scmp.eq.s32.totalorder %s14, 7
      %p91 = por %p89, %p90
      %p92 = scmp.ne.s32.totalorder %s84, %s87
      %p93 = scmp.eq.s32.totalorder %s14, 0
      %p94 = por %p92, %p93
      %p95 = scmp.ne.s32.totalorder %s84, %s87
      %p96 = scmp.eq.s32.totalorder %s19, 7
      %p97 = por %p95, %p96
      %p98 = scmp.ne.s32.totalorder %s87, %s88
      %p99 = scmp.eq.s32.totalorder %s19, 0
      %p100 = por %p98, %p99
      %p101 = scmp.ne.s32.totalorder %s87, %s88
      %p102 = scmp.eq.s32.totalorder %s20, 7
      %p103 = por %p101, %p102
      %p105 = scmp.ne.s32.totalorder %s88, %s104
      %p106 = scmp.eq.s32.totalorder %s20, 0
      %p107 = por %p105, %p106
      %s108 = ssub.s32 %s21, %s47
      %s109 = ssub.s32 %s23, %s39
      %s110 = sor.u32 %s108, %s109
      %s111 = ssub.s32 %s24, %s35
      %s112 = sor.u32 %s110, %s111
      %p113 = scmp.eq.s32.totalorder %s112, 0
      %s115 = sadd.s32 %s114, 1
      %s116 = scalar_select %p113, %s114, %s115
      %p119 = pneg %p113
      %p120 = scmp.eq.s32.totalorder %s14, 7
      %p121 = por %p119, %p120
      %p122 = scmp.ne.s32.totalorder %s114, %s117
      %p123 = scmp.eq.s32.totalorder %s14, 0
      %p124 = por %p122, %p123
      %p125 = scmp.ne.s32.totalorder %s114, %s117
      %p126 = scmp.eq.s32.totalorder %s19, 7
      %p127 = por %p125, %p126
      %p128 = scmp.ne.s32.totalorder %s117, %s118
      %p129 = scmp.eq.s32.totalorder %s19, 0
      %p130 = por %p128, %p129
      %p131 = scmp.ne.s32.totalorder %s117, %s118
      %p132 = scmp.eq.s32.totalorder %s20, 7
      %p133 = por %p131, %p132
      %p135 = scmp.ne.s32.totalorder %s118, %s134
      %p136 = scmp.eq.s32.totalorder %s20, 0
      %p137 = por %p135, %p136
      %s139 = sadd.s32 %s138, 1
      %p142 = scmp.eq.s32.totalorder %s14, 7
      %p143 = scmp.ne.s32.totalorder %s138, %s140
      %p144 = scmp.eq.s32.totalorder %s14, 0
      %p145 = por %p143, %p144
      %p146 = scmp.ne.s32.totalorder %s138, %s140
      %p147 = scmp.eq.s32.totalorder %s19, 7
      %p148 = por %p146, %p147
      %p149 = scmp.ne.s32.totalorder %s140, %s141
      %p150 = scmp.eq.s32.totalorder %s19, 0
      %p151 = por %p149, %p150
      %p152 = scmp.ne.s32.totalorder %s140, %s141
      %p153 = scmp.eq.s32.totalorder %s20, 7
      %p154 = por %p152, %p153
      %p156 = scmp.ne.s32.totalorder %s141, %s155
      %p157 = scmp.eq.s32.totalorder %s20, 0
      %p158 = por %p156, %p157
      %s160 = sadd.s32 %s159, 1
      %p163 = scmp.eq.s32.totalorder %s14, 7
      %p164 = scmp.ne.s32.totalorder %s159, %s161
      %p165 = scmp.eq.s32.totalorder %s14, 0
      %p166 = por %p164, %p165
      %p167 = scmp.ne.s32.totalorder %s159, %s161
      %p168 = scmp.eq.s32.totalorder %s19, 7
      %p169 = por %p167, %p168
      %p170 = scmp.ne.s32.totalorder %s161, %s162
      %p171 = scmp.eq.s32.totalorder %s19, 0
      %p172 = por %p170, %p171
      %p173 = scmp.ne.s32.totalorder %s161, %s162
      %p174 = scmp.eq.s32.totalorder %s20, 7
      %p175 = por %p173, %p174
      %p177 = scmp.ne.s32.totalorder %s162, %s176
      %p178 = scmp.eq.s32.totalorder %s20, 0
      %p179 = por %p177, %p178
      %s180 = ssub.s32 %s21, %s47
      %s181 = ssub.s32 %s22, %s43
      %s182 = sor.u32 %s180, %s181
      %p183 = scmp.eq.s32.totalorder %s182, 0
      %s185 = sadd.s32 %s184, 1
      %s186 = scalar_select %p183, %s184, %s185
      %p189 = pneg %p183
      %p190 = scmp.eq.s32.totalorder %s14, 7
      %p191 = por %p189, %p190
      %p192 = scmp.ne.s32.totalorder %s184, %s187
      %p193 = scmp.eq.s32.totalorder %s14, 0
      %p194 = por %p192, %p193
      %p195 = scmp.ne.s32.totalorder %s184, %s187
      %p196 = scmp.eq.s32.totalorder %s19, 7
      %p197 = por %p195, %p196
      %p198 = scmp.ne.s32.totalorder %s187, %s188
      %p199 = scmp.eq.s32.totalorder %s19, 0
      %p200 = por %p198, %p199
      %p201 = scmp.ne.s32.totalorder %s187, %s188
      %p202 = scmp.eq.s32.totalorder %s20, 7
      %p203 = por %p201, %p202
      %p205 = scmp.ne.s32.totalorder %s188, %s204
      %p206 = scmp.eq.s32.totalorder %s20, 0
      %p207 = por %p205, %p206
      %p208 = scmp.le.s32.totalorder 1, %s14
      %p209 = scmp.lt.s32.totalorder %s14, 9
      %p210 = pnand %p208, %p209
      %p211 = pneg %p210
      // Predicated region
      $region9: #{tpu_custom_call.1} parent=5 // pred_check
        _
      $region10: #{tpu_custom_call.1} parent=5 // pred_check_branch
        %213 = sbr.rel (%p210) target = $region12
      $region11: #{tpu_custom_call.1} parent=5 // pred_region
        %s214 = ssub.s32 %s14, 1
        // Predicated region
        $region13: #{tpu_custom_call.1} parent=11 // pred_check
          %p215 = pneg %p151
        $region14: #{tpu_custom_call.1} parent=11 // pred_check_branch
          %217 = sbr.rel (%p215) target = $region16
        $region15: #{tpu_custom_call.1} parent=11 // pred_region
          _
        $region16: #{tpu_custom_call.1} parent=11 // pred_fallthru
          _
        // Predicated region
        $region17: #{tpu_custom_call.1} parent=11 // pred_check
          %p218 = pneg %p172
        $region18: #{tpu_custom_call.1} parent=11 // pred_check_branch
          %220 = sbr.rel (%p218) target = $region20
        $region19: #{tpu_custom_call.1} parent=11 // pred_region
          _
        $region20: #{tpu_custom_call.1} parent=11 // pred_fallthru
          _
      $region12: #{tpu_custom_call.1} parent=5 // pred_fallthru
        _
      %p221 = scmp.lt.s32.totalorder %s14, 8
      // Predicated region
      $region21: #{tpu_custom_call.1} parent=5 // pred_check
        %p222 = pneg %p221
      $region22: #{tpu_custom_call.1} parent=5 // pred_check_branch
        %224 = sbr.rel (%p222) target = $region24
      $region23: #{tpu_custom_call.1} parent=5 // pred_region
        // Predicated region
        $region25: #{tpu_custom_call.1} parent=23 // pred_check
          %p225 = pneg %p64
        $region26: #{tpu_custom_call.1} parent=23 // pred_check_branch
          %227 = sbr.rel (%p225) target = $region28
        $region27: #{tpu_custom_call.1} parent=23 // pred_region
          %s228 = smul.u32 32, %s22
          %p229 = scmp.lt.s32.totalorder %s21, 1
          %s230 = scalar_select %p229, %s21, 1
          %p231 = scmp.lt.s32.totalorder %s23, 3
          %s232 = scalar_select %p231, %s23, 3
          %p233 = scmp.lt.s32.totalorder %s228, 31
          %s234 = scalar_select %p233, %s228, 31
          %s235 = smul.addr %s232, 32
          %s236 = sadd.s32 %s234, %s235
          %s237 = smul.addr %s230, 128
          %s238 = sadd.s32 %s236, %s237
          %s239 = smul.addr %s238, 4
          %s240 = scalar_lea.vmem %s0, %s239
          %s241 = smul.u32 32, %s22
        $region28: #{tpu_custom_call.1} parent=23 // pred_fallthru
          _
        // Predicated region
        $region29: #{tpu_custom_call.1} parent=23 // pred_check
          %p242 = pneg %p94
        $region30: #{tpu_custom_call.1} parent=23 // pred_check_branch
          %244 = sbr.rel (%p242) target = $region32
        $region31: #{tpu_custom_call.1} parent=23 // pred_region
          %s245 = smul.u32 2, %s24
          %p246 = scmp.lt.s32.totalorder %s21, 1
          %s247 = scalar_select %p246, %s21, 1
          %p248 = scmp.lt.s32.totalorder %s23, 3
          %s249 = scalar_select %p248, %s23, 3
          %p250 = scmp.lt.s32.totalorder %s245, 1
          %s251 = scalar_select %p250, %s245, 1
          %s252 = smul.addr %s249, 8
          %s253 = sadd.s32 %s251, %s252
          %s254 = smul.addr %s247, 32
          %s255 = sadd.s32 %s253, %s254
          %s256 = smul.addr %s255, 4
          %s257 = scalar_lea.vmem %s1, %s256
          %s258 = smul.u32 2, %s24
        $region32: #{tpu_custom_call.1} parent=23 // pred_fallthru
          _
        // Predicated region
        $region33: #{tpu_custom_call.1} parent=23 // pred_check
          %p259 = pneg %p124
        $region34: #{tpu_custom_call.1} parent=23 // pred_check_branch
          %261 = sbr.rel (%p259) target = $region36
        $region35: #{tpu_custom_call.1} parent=23 // pred_region
          %s262 = smul.u32 32, %s24
          %p263 = scmp.lt.s32.totalorder %s21, 1
          %s264 = scalar_select %p263, %s21, 1
          %p265 = scmp.lt.s32.totalorder %s23, 3
          %s266 = scalar_select %p265, %s23, 3
          %p267 = scmp.lt.s32.totalorder %s262, 31
          %s268 = scalar_select %p267, %s262, 31
          %s269 = smul.addr %s266, 32
          %s270 = sadd.s32 %s268, %s269
          %s271 = smul.addr %s264, 128
          %s272 = sadd.s32 %s270, %s271
          %s273 = smul.addr %s272, 4
          %s274 = scalar_lea.vmem %s2, %s273
          %s275 = smul.u32 32, %s24
        $region36: #{tpu_custom_call.1} parent=23 // pred_fallthru
          _
      $region24: #{tpu_custom_call.1} parent=5 // pred_fallthru
        _
      %p276 = scmp.le.s32.totalorder 1, %s14
      %p277 = scmp.lt.s32.totalorder %s14, 9
      %p278 = pnand %p276, %p277
      %p279 = pneg %p278
      // Predicated region
      $region37: #{tpu_custom_call.1} parent=5 // pred_check
        _
      $region38: #{tpu_custom_call.1} parent=5 // pred_check_branch
        %281 = sbr.rel (%p278) target = $region40
      $region39: #{tpu_custom_call.1} parent=5 // pred_region
        %s282 = ssub.s32 %s14, 1
        %s283 = smul.u32 32, %s26
        %p284 = scmp.lt.s32.totalorder %s25, 1
        %s285 = scalar_select %p284, %s25, 1
        %p286 = scmp.lt.s32.totalorder %s27, 3
        %s287 = scalar_select %p286, %s27, 3
        %p288 = scmp.lt.s32.totalorder %s283, 31
        %s289 = scalar_select %p288, %s283, 31
        %s290 = smul.addr %s287, 32
        %s291 = sadd.s32 %s289, %s290
        %s292 = smul.addr %s285, 128
        %s293 = sadd.s32 %s291, %s292
        %s294 = smul.addr %s293, 4
        %s295 = scalar_lea.vmem %s0, %s294
        %p296 = pneg %p70
        %p297 = pneg %p67
        %s298 = smul.u32 2, %s28
        %p299 = scmp.lt.s32.totalorder %s25, 1
        %s300 = scalar_select %p299, %s25, 1
        %p301 = scmp.lt.s32.totalorder %s27, 3
        %s302 = scalar_select %p301, %s27, 3
        %p303 = scmp.lt.s32.totalorder %s298, 1
        %s304 = scalar_select %p303, %s298, 1
        %s305 = smul.addr %s302, 8
        %s306 = sadd.s32 %s304, %s305
        %s307 = smul.addr %s300, 32
        %s308 = sadd.s32 %s306, %s307
        %s309 = smul.addr %s308, 4
        %s310 = scalar_lea.vmem %s1, %s309
        %p311 = pneg %p100
        %p312 = pneg %p97
        %s313 = smul.u32 32, %s28
        %p314 = scmp.lt.s32.totalorder %s25, 1
        %s315 = scalar_select %p314, %s25, 1
        %p316 = scmp.lt.s32.totalorder %s27, 3
        %s317 = scalar_select %p316, %s27, 3
        %p318 = scmp.lt.s32.totalorder %s313, 31
        %s319 = scalar_select %p318, %s313, 31
        %s320 = smul.addr %s317, 32
        %s321 = sadd.s32 %s319, %s320
        %s322 = smul.addr %s315, 128
        %s323 = sadd.s32 %s321, %s322
        %s324 = smul.addr %s323, 4
        %s325 = scalar_lea.vmem %s2, %s324
        %p326 = pneg %p130
        %p327 = pneg %p127
        %p328 = pneg %p151
        %p329 = pneg %p148
        %p330 = pneg %p172
        %p331 = pneg %p169
        %p332 = pneg %p200
        %p333 = pneg %p197
        %s334 = sand.u32 %s187, 1
        %s335 = scalar_lea.sflag [#allocation7], %s334
        %s336 = sand.u32 %s187, 1
        %s337 = smul.addr %s336, 256
        %s338 = scalar_lea.vmem [#allocation6], %s337
        %s339 = smul.u32 32, %s26
        %p340 = scmp.lt.s32.totalorder %s25, 1
        %s341 = scalar_select %p340, %s25, 1
        %p342 = scmp.lt.s32.totalorder %s27, 3
        %s343 = scalar_select %p342, %s27, 3
        %p344 = scmp.lt.s32.totalorder %s339, 31
        %s345 = scalar_select %p344, %s339, 31
        %s346 = smul.addr %s343, 32
        %s347 = sadd.s32 %s345, %s346
        %s348 = smul.addr %s341, 128
        %s349 = sadd.s32 %s347, %s348
        %s350 = smul.addr %s349, 4
        %s351 = scalar_lea.vmem %s0, %s350
        %s352 = smul.u32 32, %s26
        %s353 = smul.u32 2, %s28
        %p354 = scmp.lt.s32.totalorder %s25, 1
        %s355 = scalar_select %p354, %s25, 1
        %p356 = scmp.lt.s32.totalorder %s27, 3
        %s357 = scalar_select %p356, %s27, 3
        %p358 = scmp.lt.s32.totalorder %s353, 1
        %s359 = scalar_select %p358, %s353, 1
        %s360 = smul.addr %s357, 8
        %s361 = sadd.s32 %s359, %s360
        %s362 = smul.addr %s355, 32
        %s363 = sadd.s32 %s361, %s362
        %s364 = smul.addr %s363, 4
        %s365 = scalar_lea.vmem %s1, %s364
        %s366 = smul.u32 2, %s28
        %s367 = smul.u32 32, %s28
        %p368 = scmp.lt.s32.totalorder %s25, 1
        %s369 = scalar_select %p368, %s25, 1
        %p370 = scmp.lt.s32.totalorder %s27, 3
        %s371 = scalar_select %p370, %s27, 3
        %p372 = scmp.lt.s32.totalorder %s367, 31
        %s373 = scalar_select %p372, %s367, 31
        %s374 = smul.addr %s371, 32
        %s375 = sadd.s32 %s373, %s374
        %s376 = smul.addr %s369, 128
        %s377 = sadd.s32 %s375, %s376
        %s378 = smul.addr %s377, 4
        %s379 = scalar_lea.vmem %s2, %s378
        %s380 = smul.u32 32, %s28
        %s381 = smul.u32 32, %s26
        %p383 = scmp.eq.s32.totalorder %s27, 0
        %p384 = scmp.eq.s32.totalorder %s28, 0
        %p385 = pnand %p383, %p384
        %p386 = pneg %p385
        // Predicated region
        $region41: #{tpu_custom_call.1} parent=39 // pred_check
          _
        $region42: #{tpu_custom_call.1} parent=39 // pred_check_branch
          %388 = sbr.rel (%p385) target = $region44
        $region43: #{tpu_custom_call.1} parent=39 // pred_region
          %v389 = vld [vmem:[%s4] sm:$0x1]
          %v391 = vlaneseq
          %v392 = vshrl.u32 %v391, 7
          %v393 = vsub.s32 0, %v392
          %v394 = vrot.slane %v389, %v393
          %396 = vst [vmem:[#allocation5] sm:$0xff] %v394
          %397 = vst [vmem:[#allocation5 + $0x8] sm:$0xff] %v394
          %398 = vst [vmem:[#allocation5 + $0x10] sm:$0xff] %v394
          %399 = vst [vmem:[#allocation5 + $0x18] sm:$0xff] %v394
          %400 = vst [vmem:[#allocation5 + $0x20] sm:$0xff] %v394
          %401 = vst [vmem:[#allocation5 + $0x28] sm:$0xff] %v394
          %402 = vst [vmem:[#allocation5 + $0x30] sm:$0xff] %v394
          %403 = vst [vmem:[#allocation5 + $0x38] sm:$0xff] %v394
          %404 = vst [vmem:[#allocation5 + $0x40] sm:$0xff] %v394
          %405 = vst [vmem:[#allocation5 + $0x48] sm:$0xff] %v394
          %406 = vst [vmem:[#allocation5 + $0x50] sm:$0xff] %v394
          %407 = vst [vmem:[#allocation5 + $0x58] sm:$0xff] %v394
          %408 = vst [vmem:[#allocation5 + $0x60] sm:$0xff] %v394
          %409 = vst [vmem:[#allocation5 + $0x68] sm:$0xff] %v394
          %410 = vst [vmem:[#allocation5 + $0x70] sm:$0xff] %v394
          %411 = vst [vmem:[#allocation5 + $0x78] sm:$0xff] %v394
          %412 = vst [vmem:[#allocation5 + $0x80] sm:$0xff] %v394
          %413 = vst [vmem:[#allocation5 + $0x88] sm:$0xff] %v394
          %414 = vst [vmem:[#allocation5 + $0x90] sm:$0xff] %v394
          %415 = vst [vmem:[#allocation5 + $0x98] sm:$0xff] %v394
          %416 = vst [vmem:[#allocation5 + $0xa0] sm:$0xff] %v394
          %417 = vst [vmem:[#allocation5 + $0xa8] sm:$0xff] %v394
          %418 = vst [vmem:[#allocation5 + $0xb0] sm:$0xff] %v394
          %419 = vst [vmem:[#allocation5 + $0xb8] sm:$0xff] %v394
          %420 = vst [vmem:[#allocation5 + $0xc0] sm:$0xff] %v394
          %421 = vst [vmem:[#allocation5 + $0xc8] sm:$0xff] %v394
          %422 = vst [vmem:[#allocation5 + $0xd0] sm:$0xff] %v394
          %423 = vst [vmem:[#allocation5 + $0xd8] sm:$0xff] %v394
          %424 = vst [vmem:[#allocation5 + $0xe0] sm:$0xff] %v394
          %425 = vst [vmem:[#allocation5 + $0xe8] sm:$0xff] %v394
          %426 = vst [vmem:[#allocation5 + $0xf0] sm:$0xff] %v394
          %427 = vst [vmem:[#allocation5 + $0xf8] sm:$0xff] %v394
        $region44: #{tpu_custom_call.1} parent=39 // pred_fallthru
          _
        // Predicated region
        $region45: #{tpu_custom_call.1} parent=39 // pred_check
          %p428 = pneg %p384
        $region46: #{tpu_custom_call.1} parent=39 // pred_check_branch
          %430 = sbr.rel (%p428) target = $region48
        $region47: #{tpu_custom_call.1} parent=39 // pred_region
          %vm431 = vcmask 7168
          %432 = vst.msk [vmem:[#allocation2] sm:$0xff] %vm431, -inf
          %433 = vst.msk [vmem:[#allocation2 + $0x8] sm:$0xff] %vm431, -inf
          %434 = vst.msk [vmem:[#allocation2 + $0x10] sm:$0xff] %vm431, -inf
          %435 = vst.msk [vmem:[#allocation2 + $0x18] sm:$0xff] %vm431, -inf
          %436 = vst.msk [vmem:[#allocation2 + $0x20] sm:$0xff] %vm431, -inf
          %437 = vst.msk [vmem:[#allocation2 + $0x28] sm:$0xff] %vm431, -inf
          %438 = vst.msk [vmem:[#allocation2 + $0x30] sm:$0xff] %vm431, -inf
          %439 = vst.msk [vmem:[#allocation2 + $0x38] sm:$0xff] %vm431, -inf
          %440 = vst.msk [vmem:[#allocation2 + $0x40] sm:$0xff] %vm431, -inf
          %441 = vst.msk [vmem:[#allocation2 + $0x48] sm:$0xff] %vm431, -inf
          %442 = vst.msk [vmem:[#allocation2 + $0x50] sm:$0xff] %vm431, -inf
          %443 = vst.msk [vmem:[#allocation2 + $0x58] sm:$0xff] %vm431, -inf
          %444 = vst.msk [vmem:[#allocation2 + $0x60] sm:$0xff] %vm431, -inf
          %445 = vst.msk [vmem:[#allocation2 + $0x68] sm:$0xff] %vm431, -inf
          %446 = vst.msk [vmem:[#allocation2 + $0x70] sm:$0xff] %vm431, -inf
          %447 = vst.msk [vmem:[#allocation2 + $0x78] sm:$0xff] %vm431, -inf
          %448 = vst.msk [vmem:[#allocation2 + $0x80] sm:$0xff] %vm431, -inf
          %449 = vst.msk [vmem:[#allocation2 + $0x88] sm:$0xff] %vm431, -inf
          %450 = vst.msk [vmem:[#allocation2 + $0x90] sm:$0xff] %vm431, -inf
          %451 = vst.msk [vmem:[#allocation2 + $0x98] sm:$0xff] %vm431, -inf
          %452 = vst.msk [vmem:[#allocation2 + $0xa0] sm:$0xff] %vm431, -inf
          %453 = vst.msk [vmem:[#allocation2 + $0xa8] sm:$0xff] %vm431, -inf
          %454 = vst.msk [vmem:[#allocation2 + $0xb0] sm:$0xff] %vm431, -inf
          %455 = vst.msk [vmem:[#allocation2 + $0xb8] sm:$0xff] %vm431, -inf
          %456 = vst.msk [vmem:[#allocation2 + $0xc0] sm:$0xff] %vm431, -inf
          %457 = vst.msk [vmem:[#allocation2 + $0xc8] sm:$0xff] %vm431, -inf
          %458 = vst.msk [vmem:[#allocation2 + $0xd0] sm:$0xff] %vm431, -inf
          %459 = vst.msk [vmem:[#allocation2 + $0xd8] sm:$0xff] %vm431, -inf
          %460 = vst.msk [vmem:[#allocation2 + $0xe0] sm:$0xff] %vm431, -inf
          %461 = vst.msk [vmem:[#allocation2 + $0xe8] sm:$0xff] %vm431, -inf
          %462 = vst.msk [vmem:[#allocation2 + $0xf0] sm:$0xff] %vm431, -inf
          %463 = vst.msk [vmem:[#allocation2 + $0xf8] sm:$0xff] %vm431, -inf
          %464 = vst.msk [vmem:[#allocation3] sm:$0xff] %vm431, 0.0
          %465 = vst.msk [vmem:[#allocation3 + $0x8] sm:$0xff] %vm431, 0.0
          %466 = vst.msk [vmem:[#allocation3 + $0x10] sm:$0xff] %vm431, 0.0
          %467 = vst.msk [vmem:[#allocation3 + $0x18] sm:$0xff] %vm431, 0.0
          %468 = vst.msk [vmem:[#allocation3 + $0x20] sm:$0xff] %vm431, 0.0
          %469 = vst.msk [vmem:[#allocation3 + $0x28] sm:$0xff] %vm431, 0.0
          %470 = vst.msk [vmem:[#allocation3 + $0x30] sm:$0xff] %vm431, 0.0
          %471 = vst.msk [vmem:[#allocation3 + $0x38] sm:$0xff] %vm431, 0.0
          %472 = vst.msk [vmem:[#allocation3 + $0x40] sm:$0xff] %vm431, 0.0
          %473 = vst.msk [vmem:[#allocation3 + $0x48] sm:$0xff] %vm431, 0.0
          %474 = vst.msk [vmem:[#allocation3 + $0x50] sm:$0xff] %vm431, 0.0
          %475 = vst.msk [vmem:[#allocation3 + $0x58] sm:$0xff] %vm431, 0.0
          %476 = vst.msk [vmem:[#allocation3 + $0x60] sm:$0xff] %vm431, 0.0
          %477 = vst.msk [vmem:[#allocation3 + $0x68] sm:$0xff] %vm431, 0.0
          %478 = vst.msk [vmem:[#allocation3 + $0x70] sm:$0xff] %vm431, 0.0
          %479 = vst.msk [vmem:[#allocation3 + $0x78] sm:$0xff] %vm431, 0.0
          %480 = vst.msk [vmem:[#allocation3 + $0x80] sm:$0xff] %vm431, 0.0
          %481 = vst.msk [vmem:[#allocation3 + $0x88] sm:$0xff] %vm431, 0.0
          %482 = vst.msk [vmem:[#allocation3 + $0x90] sm:$0xff] %vm431, 0.0
          %483 = vst.msk [vmem:[#allocation3 + $0x98] sm:$0xff] %vm431, 0.0
          %484 = vst.msk [vmem:[#allocation3 + $0xa0] sm:$0xff] %vm431, 0.0
          %485 = vst.msk [vmem:[#allocation3 + $0xa8] sm:$0xff] %vm431, 0.0
          %486 = vst.msk [vmem:[#allocation3 + $0xb0] sm:$0xff] %vm431, 0.0
          %487 = vst.msk [vmem:[#allocation3 + $0xb8] sm:$0xff] %vm431, 0.0
          %488 = vst.msk [vmem:[#allocation3 + $0xc0] sm:$0xff] %vm431, 0.0
          %489 = vst.msk [vmem:[#allocation3 + $0xc8] sm:$0xff] %vm431, 0.0
          %490 = vst.msk [vmem:[#allocation3 + $0xd0] sm:$0xff] %vm431, 0.0
          %491 = vst.msk [vmem:[#allocation3 + $0xd8] sm:$0xff] %vm431, 0.0
          %492 = vst.msk [vmem:[#allocation3 + $0xe0] sm:$0xff] %vm431, 0.0
          %493 = vst.msk [vmem:[#allocation3 + $0xe8] sm:$0xff] %vm431, 0.0
          %494 = vst.msk [vmem:[#allocation3 + $0xf0] sm:$0xff] %vm431, 0.0
          %495 = vst.msk [vmem:[#allocation3 + $0xf8] sm:$0xff] %vm431, 0.0
          %vm496 = vcmask 261120
          %497 = vst.msk [vmem:[#allocation4] sm:$0xff] %vm496, 0.0
          %498 = vst.msk [vmem:[#allocation4 + $0x8] sm:$0xff] %vm496, 0.0
          %499 = vst.msk [vmem:[#allocation4 + $0x10] sm:$0xff] %vm496, 0.0
          %500 = vst.msk [vmem:[#allocation4 + $0x18] sm:$0xff] %vm496, 0.0
          %501 = vst.msk [vmem:[#allocation4 + $0x20] sm:$0xff] %vm496, 0.0
          %502 = vst.msk [vmem:[#allocation4 + $0x28] sm:$0xff] %vm496, 0.0
          %503 = vst.msk [vmem:[#allocation4 + $0x30] sm:$0xff] %vm496, 0.0
          %504 = vst.msk [vmem:[#allocation4 + $0x38] sm:$0xff] %vm496, 0.0
          %505 = vst.msk [vmem:[#allocation4 + $0x40] sm:$0xff] %vm496, 0.0
          %506 = vst.msk [vmem:[#allocation4 + $0x48] sm:$0xff] %vm496, 0.0
          %507 = vst.msk [vmem:[#allocation4 + $0x50] sm:$0xff] %vm496, 0.0
          %508 = vst.msk [vmem:[#allocation4 + $0x58] sm:$0xff] %vm496, 0.0
          %509 = vst.msk [vmem:[#allocation4 + $0x60] sm:$0xff] %vm496, 0.0
          %510 = vst.msk [vmem:[#allocation4 + $0x68] sm:$0xff] %vm496, 0.0
          %511 = vst.msk [vmem:[#allocation4 + $0x70] sm:$0xff] %vm496, 0.0
          %512 = vst.msk [vmem:[#allocation4 + $0x78] sm:$0xff] %vm496, 0.0
          %513 = vst.msk [vmem:[#allocation4 + $0x80] sm:$0xff] %vm496, 0.0
          %514 = vst.msk [vmem:[#allocation4 + $0x88] sm:$0xff] %vm496, 0.0
          %515 = vst.msk [vmem:[#allocation4 + $0x90] sm:$0xff] %vm496, 0.0
          %516 = vst.msk [vmem:[#allocation4 + $0x98] sm:$0xff] %vm496, 0.0
          %517 = vst.msk [vmem:[#allocation4 + $0xa0] sm:$0xff] %vm496, 0.0
          %518 = vst.msk [vmem:[#allocation4 + $0xa8] sm:$0xff] %vm496, 0.0
          %519 = vst.msk [vmem:[#allocation4 + $0xb0] sm:$0xff] %vm496, 0.0
          %520 = vst.msk [vmem:[#allocation4 + $0xb8] sm:$0xff] %vm496, 0.0
          %521 = vst.msk [vmem:[#allocation4 + $0xc0] sm:$0xff] %vm496, 0.0
          %522 = vst.msk [vmem:[#allocation4 + $0xc8] sm:$0xff] %vm496, 0.0
          %523 = vst.msk [vmem:[#allocation4 + $0xd0] sm:$0xff] %vm496, 0.0
          %524 = vst.msk [vmem:[#allocation4 + $0xd8] sm:$0xff] %vm496, 0.0
          %525 = vst.msk [vmem:[#allocation4 + $0xe0] sm:$0xff] %vm496, 0.0
          %526 = vst.msk [vmem:[#allocation4 + $0xe8] sm:$0xff] %vm496, 0.0
          %527 = vst.msk [vmem:[#allocation4 + $0xf0] sm:$0xff] %vm496, 0.0
          %528 = vst.msk [vmem:[#allocation4 + $0xf8] sm:$0xff] %vm496, 0.0
        $region48: #{tpu_custom_call.1} parent=39 // pred_fallthru
          _
        %v529 = vld [vmem:[%s351] sm:$0xf]
        %v530 = vld [vmem:[%s351 + $0x4] sm:$0xf]
        %v531 = vld [vmem:[%s351 + $0x8] sm:$0xf]
        %v532 = vld [vmem:[%s351 + $0xc] sm:$0xf]
        %v533 = vld [vmem:[%s351 + $0x10] sm:$0xf]
        %v534 = vld [vmem:[%s351 + $0x14] sm:$0xf]
        %v535 = vld [vmem:[%s351 + $0x18] sm:$0xf]
        %v536 = vld [vmem:[%s351 + $0x1c] sm:$0xf]
        %v537 = vld [vmem:[%s351 + $0x20] sm:$0xf]
        %v538 = vld [vmem:[%s351 + $0x24] sm:$0xf]
        %v539 = vld [vmem:[%s351 + $0x28] sm:$0xf]
        %v540 = vld [vmem:[%s351 + $0x2c] sm:$0xf]
        %v541 = vld [vmem:[%s351 + $0x30] sm:$0xf]
        %v542 = vld [vmem:[%s351 + $0x34] sm:$0xf]
        %v543 = vld [vmem:[%s351 + $0x38] sm:$0xf]
        %v544 = vld [vmem:[%s351 + $0x3c] sm:$0xf]
        %v545 = vld [vmem:[%s351 + $0x40] sm:$0xf]
        %v546 = vld [vmem:[%s351 + $0x44] sm:$0xf]
        %v547 = vld [vmem:[%s351 + $0x48] sm:$0xf]
        %v548 = vld [vmem:[%s351 + $0x4c] sm:$0xf]
        %v549 = vld [vmem:[%s351 + $0x50] sm:$0xf]
        %v550 = vld [vmem:[%s351 + $0x54] sm:$0xf]
        %v551 = vld [vmem:[%s351 + $0x58] sm:$0xf]
        %v552 = vld [vmem:[%s351 + $0x5c] sm:$0xf]
        %v553 = vld [vmem:[%s351 + $0x60] sm:$0xf]
        %v554 = vld [vmem:[%s351 + $0x64] sm:$0xf]
        %v555 = vld [vmem:[%s351 + $0x68] sm:$0xf]
        %v556 = vld [vmem:[%s351 + $0x6c] sm:$0xf]
        %v557 = vld [vmem:[%s351 + $0x70] sm:$0xf]
        %v558 = vld [vmem:[%s351 + $0x74] sm:$0xf]
        %v559 = vld [vmem:[%s351 + $0x78] sm:$0xf]
        %v560 = vld [vmem:[%s351 + $0x7c] sm:$0xf]
        %v561 = vld [vmem:[%s365] sm:$0xff]
        %v562 = vld [vmem:[%s365 + $0x8] sm:$0xff]
        %v563 = vld [vmem:[%s365 + $0x10] sm:$0xff]
        %v564 = vld [vmem:[%s365 + $0x18] sm:$0xff]
        %v565 = vld [vmem:[%s379] sm:$0xf]
        %v566 = vld [vmem:[%s379 + $0x4] sm:$0xf]
        %v567 = vld [vmem:[%s379 + $0x8] sm:$0xf]
        %v568 = vld [vmem:[%s379 + $0xc] sm:$0xf]
        %v569 = vld [vmem:[%s379 + $0x10] sm:$0xf]
        %v570 = vld [vmem:[%s379 + $0x14] sm:$0xf]
        %v571 = vld [vmem:[%s379 + $0x18] sm:$0xf]
        %v572 = vld [vmem:[%s379 + $0x1c] sm:$0xf]
        %v573 = vld [vmem:[%s379 + $0x20] sm:$0xf]
        %v574 = vld [vmem:[%s379 + $0x24] sm:$0xf]
        %v575 = vld [vmem:[%s379 + $0x28] sm:$0xf]
        %v576 = vld [vmem:[%s379 + $0x2c] sm:$0xf]
        %v577 = vld [vmem:[%s379 + $0x30] sm:$0xf]
        %v578 = vld [vmem:[%s379 + $0x34] sm:$0xf]
        %v579 = vld [vmem:[%s379 + $0x38] sm:$0xf]
        %v580 = vld [vmem:[%s379 + $0x3c] sm:$0xf]
        %v581 = vld [vmem:[%s379 + $0x40] sm:$0xf]
        %v582 = vld [vmem:[%s379 + $0x44] sm:$0xf]
        %v583 = vld [vmem:[%s379 + $0x48] sm:$0xf]
        %v584 = vld [vmem:[%s379 + $0x4c] sm:$0xf]
        %v585 = vld [vmem:[%s379 + $0x50] sm:$0xf]
        %v586 = vld [vmem:[%s379 + $0x54] sm:$0xf]
        %v587 = vld [vmem:[%s379 + $0x58] sm:$0xf]
        %v588 = vld [vmem:[%s379 + $0x5c] sm:$0xf]
        %v589 = vld [vmem:[%s379 + $0x60] sm:$0xf]
        %v590 = vld [vmem:[%s379 + $0x64] sm:$0xf]
        %v591 = vld [vmem:[%s379 + $0x68] sm:$0xf]
        %v592 = vld [vmem:[%s379 + $0x6c] sm:$0xf]
        %v593 = vld [vmem:[%s379 + $0x70] sm:$0xf]
        %v594 = vld [vmem:[%s379 + $0x74] sm:$0xf]
        %v595 = vld [vmem:[%s379 + $0x78] sm:$0xf]
        %v596 = vld [vmem:[%s379 + $0x7c] sm:$0xf]
        %v629 = vunpack.c.l.b16 %v529
        %v630 = vunpack.c.l.b16 %v530
        %v631 = vunpack.c.l.b16 %v531
        %v632 = vunpack.c.l.b16 %v532
        %v633 = vunpack.c.l.b16 %v533
        %v634 = vunpack.c.l.b16 %v534
        %v635 = vunpack.c.l.b16 %v535
        %v636 = vunpack.c.l.b16 %v536
        %v637 = vunpack.c.l.b16 %v537
        %v638 = vunpack.c.l.b16 %v538
        %v639 = vunpack.c.l.b16 %v539
        %v640 = vunpack.c.l.b16 %v540
        %v641 = vunpack.c.l.b16 %v541
        %v642 = vunpack.c.l.b16 %v542
        %v643 = vunpack.c.l.b16 %v543
        %v644 = vunpack.c.l.b16 %v544
        %v645 = vunpack.c.l.b16 %v545
        %v646 = vunpack.c.l.b16 %v546
        %v647 = vunpack.c.l.b16 %v547
        %v648 = vunpack.c.l.b16 %v548
        %v649 = vunpack.c.l.b16 %v549
        %v650 = vunpack.c.l.b16 %v550
        %v651 = vunpack.c.l.b16 %v551
        %v652 = vunpack.c.l.b16 %v552
        %v653 = vunpack.c.l.b16 %v553
        %v654 = vunpack.c.l.b16 %v554
        %v655 = vunpack.c.l.b16 %v555
        %v656 = vunpack.c.l.b16 %v556
        %v657 = vunpack.c.l.b16 %v557
        %v658 = vunpack.c.l.b16 %v558
        %v659 = vunpack.c.l.b16 %v559
        %v660 = vunpack.c.l.b16 %v560
        %v661 = vpack.c.b16 %v630, %v629
        %v662 = vpack.c.b16 %v632, %v631
        %v663 = vpack.c.b16 %v634, %v633
        %v664 = vpack.c.b16 %v636, %v635
        %v665 = vpack.c.b16 %v638, %v637
        %v666 = vpack.c.b16 %v640, %v639
        %v667 = vpack.c.b16 %v642, %v641
        %v668 = vpack.c.b16 %v644, %v643
        %v669 = vpack.c.b16 %v646, %v645
        %v670 = vpack.c.b16 %v648, %v647
        %v671 = vpack.c.b16 %v650, %v649
        %v672 = vpack.c.b16 %v652, %v651
        %v673 = vpack.c.b16 %v654, %v653
        %v674 = vpack.c.b16 %v656, %v655
        %v675 = vpack.c.b16 %v658, %v657
        %v676 = vpack.c.b16 %v660, %v659
        %v681 = vunpack.c.l.b16 %v561
        %v682 = vunpack.c.h.b16 %v561
        %v683 = vunpack.c.l.b16 %v562
        %v684 = vunpack.c.h.b16 %v562
        %v685 = vunpack.c.l.b16 %v563
        %v686 = vunpack.c.h.b16 %v563
        %v687 = vunpack.c.l.b16 %v564
        %v688 = vunpack.c.h.b16 %v564
        %v689 = vpack.c.b16 %v683, %v681
        %v690 = vpack.c.b16 %v684, %v682
        %v691 = vpack.c.b16 %v687, %v685
        %v692 = vpack.c.b16 %v688, %v686
        %vm697 = vcmask 261120
        %v699 = vsel %vm697, %v661, 0
        %v702 = vsel %vm697, %v662, 0
        %v705 = vsel %vm697, %v663, 0
        %v708 = vsel %vm697, %v664, 0
        %v711 = vsel %vm697, %v665, 0
        %v714 = vsel %vm697, %v666, 0
        %v717 = vsel %vm697, %v667, 0
        %v720 = vsel %vm697, %v668, 0
        %v723 = vsel %vm697, %v669, 0
        %v726 = vsel %vm697, %v670, 0
        %v729 = vsel %vm697, %v671, 0
        %v732 = vsel %vm697, %v672, 0
        %v735 = vsel %vm697, %v673, 0
        %v738 = vsel %vm697, %v674, 0
        %v741 = vsel %vm697, %v675, 0
        %v744 = vsel %vm697, %v676, 0
        %746 = vmatprep.subr.bf16.mxu0 %v690
        %747 = vmatpush1.bf16.msra.mxu0 %v689
        %748 = vmatprep.subr.bf16.mxu0 %v692
        %749 = vmatpush1.bf16.msra.mxu0 %v691
        %750 = vmatprep.subr.bf16.mxu0 0
        %751 = vmatpush1.bf16.msra.mxu0 0
        %752 = vmatprep.subr.bf16.mxu0 0
        %753 = vmatpush1.bf16.msra.mxu0 0
        %754 = vmatprep.subr.bf16.mxu0 0
        %755 = vmatpush1.bf16.msra.mxu0 0
        %756 = vmatprep.subr.bf16.mxu0 0
        %757 = vmatpush1.bf16.msra.mxu0 0
        %758 = vmatprep.subr.bf16.mxu0 0
        %759 = vmatpush1.bf16.msra.mxu0 0
        %760 = vmatprep.subr.bf16.mxu0 0
        %761 = vmatpush1.bf16.msra.mxu0 0
        %762 = vmatprep.subr.bf16.mxu0 0
        %763 = vmatpush1.bf16.msra.mxu0 0
        %764 = vmatprep.subr.bf16.mxu0 0
        %765 = vmatpush1.bf16.msra.mxu0 0
        %766 = vmatprep.subr.bf16.mxu0 0
        %767 = vmatpush1.bf16.msra.mxu0 0
        %768 = vmatprep.subr.bf16.mxu0 0
        %769 = vmatpush1.bf16.msra.mxu0 0
        %770 = vmatprep.subr.bf16.mxu0 0
        %771 = vmatpush1.bf16.msra.mxu0 0
        %772 = vmatprep.subr.bf16.mxu0 0
        %773 = vmatpush1.bf16.msra.mxu0 0
        %774 = vmatprep.subr.bf16.mxu0 0
        %775 = vmatpush1.bf16.msra.mxu0 0
        %776 = vmatprep.subr.bf16.mxu0 0
        %777 = vmatpush1.bf16.msra.mxu0 0
        %778 = vmatprep.mubr.bf16.mxu0 0
        %779 = vmatmul.mubr.bf16.gmra.mrb[0].mxu0 %v699
        %v780 = vpop.f32.mrb[0].mxu0
        %v781 = vadd.f32 0.0, %v780
        %v782 = vpop.f32.mrb[0].mxu0
        %v783 = vadd.f32 0.0, %v782
        %v784 = vpop.f32.mrb[0].mxu0
        %v785 = vadd.f32 0.0, %v784
        %v786 = vpop.f32.mrb[0].mxu0
        %v787 = vadd.f32 0.0, %v786
        %788 = vmatprep.mubr.bf16.mxu0 0
        %789 = vmatmul.mubr.bf16.gmra.mrb[0].mxu0 %v702
        %v790 = vpop.f32.mrb[0].mxu0
        %v791 = vadd.f32 0.0, %v790
        %v792 = vpop.f32.mrb[0].mxu0
        %v793 = vadd.f32 0.0, %v792
        %v794 = vpop.f32.mrb[0].mxu0
        %v795 = vadd.f32 0.0, %v794
        %v796 = vpop.f32.mrb[0].mxu0
        %v797 = vadd.f32 0.0, %v796
        %798 = vmatprep.mubr.bf16.mxu0 0
        %799 = vmatmul.mubr.bf16.gmra.mrb[0].mxu0 %v705
        %v800 = vpop.f32.mrb[0].mxu0
        %v801 = vadd.f32 0.0, %v800
        %v802 = vpop.f32.mrb[0].mxu0
        %v803 = vadd.f32 0.0, %v802
        %v804 = vpop.f32.mrb[0].mxu0
        %v805 = vadd.f32 0.0, %v804
        %v806 = vpop.f32.mrb[0].mxu0
        %v807 = vadd.f32 0.0, %v806
        %808 = vmatprep.mubr.bf16.mxu0 0
        %809 = vmatmul.mubr.bf16.gmra.mrb[0].mxu0 %v708
        %v810 = vpop.f32.mrb[0].mxu0
        %v811 = vadd.f32 0.0, %v810
        %v812 = vpop.f32.mrb[0].mxu0
        %v813 = vadd.f32 0.0, %v812
        %v814 = vpop.f32.mrb[0].mxu0
        %v815 = vadd.f32 0.0, %v814
        %v816 = vpop.f32.mrb[0].mxu0
        %v817 = vadd.f32 0.0, %v816
        %818 = vmatprep.mubr.bf16.mxu0 0
        %819 = vmatmul.mubr.bf16.gmra.mrb[0].mxu0 %v711
        %v820 = vpop.f32.mrb[0].mxu0
        %v821 = vadd.f32 0.0, %v820
        %v822 = vpop.f32.mrb[0].mxu0
        %v823 = vadd.f32 0.0, %v822
        %v824 = vpop.f32.mrb[0].mxu0
        %v825 = vadd.f32 0.0, %v824
        %v826 = vpop.f32.mrb[0].mxu0
        %v827 = vadd.f32 0.0, %v826
        %828 = vmatprep.mubr.bf16.mxu0 0
        %829 = vmatmul.mubr.bf16.gmra.mrb[0].mxu0 %v714
        %v830 = vpop.f32.mrb[0].mxu0
        %v831 = vadd.f32 0.0, %v830
        %v832 = vpop.f32.mrb[0].mxu0
        %v833 = vadd.f32 0.0, %v832
        %v834 = vpop.f32.mrb[0].mxu0
        %v835 = vadd.f32 0.0, %v834
        %v836 = vpop.f32.mrb[0].mxu0
        %v837 = vadd.f32 0.0, %v836
        %838 = vmatprep.mubr.bf16.mxu0 0
        %839 = vmatmul.mubr.bf16.gmra.mrb[0].mxu0 %v717
        %v840 = vpop.f32.mrb[0].mxu0
        %v841 = vadd.f32 0.0, %v840
        %v842 = vpop.f32.mrb[0].mxu0
        %v843 = vadd.f32 0.0, %v842
        %v844 = vpop.f32.mrb[0].mxu0
        %v845 = vadd.f32 0.0, %v844
        %v846 = vpop.f32.mrb[0].mxu0
        %v847 = vadd.f32 0.0, %v846
        %848 = vmatprep.mubr.bf16.mxu0 0
        %849 = vmatmul.mubr.bf16.gmra.mrb[0].mxu0 %v720
        %v850 = vpop.f32.mrb[0].mxu0
        %v851 = vadd.f32 0.0, %v850
        %v852 = vpop.f32.mrb[0].mxu0
        %v853 = vadd.f32 0.0, %v852
        %v854 = vpop.f32.mrb[0].mxu0
        %v855 = vadd.f32 0.0, %v854
        %v856 = vpop.f32.mrb[0].mxu0
        %v857 = vadd.f32 0.0, %v856
        %858 = vmatprep.mubr.bf16.mxu0 0
        %859 = vmatmul.mubr.bf16.gmra.mrb[0].mxu0 %v723
        %v860 = vpop.f32.mrb[0].mxu0
        %v861 = vadd.f32 0.0, %v860
        %v862 = vpop.f32.mrb[0].mxu0
        %v863 = vadd.f32 0.0, %v862
        %v864 = vpop.f32.mrb[0].mxu0
        %v865 = vadd.f32 0.0, %v864
        %v866 = vpop.f32.mrb[0].mxu0
        %v867 = vadd.f32 0.0, %v866
        %868 = vmatprep.mubr.bf16.mxu0 0
        %869 = vmatmul.mubr.bf16.gmra.mrb[0].mxu0 %v726
        %v870 = vpop.f32.mrb[0].mxu0
        %v871 = vadd.f32 0.0, %v870
        %v872 = vpop.f32.mrb[0].mxu0
        %v873 = vadd.f32 0.0, %v872
        %v874 = vpop.f32.mrb[0].mxu0
        %v875 = vadd.f32 0.0, %v874
        %v876 = vpop.f32.mrb[0].mxu0
        %v877 = vadd.f32 0.0, %v876
        %878 = vmatprep.mubr.bf16.mxu0 0
        %879 = vmatmul.mubr.bf16.gmra.mrb[0].mxu0 %v729
        %v880 = vpop.f32.mrb[0].mxu0
        %v881 = vadd.f32 0.0, %v880
        %v882 = vpop.f32.mrb[0].mxu0
        %v883 = vadd.f32 0.0, %v882
        %v884 = vpop.f32.mrb[0].mxu0
        %v885 = vadd.f32 0.0, %v884
        %v886 = vpop.f32.mrb[0].mxu0
        %v887 = vadd.f32 0.0, %v886
        %888 = vmatprep.mubr.bf16.mxu0 0
        %889 = vmatmul.mubr.bf16.gmra.mrb[0].mxu0 %v732
        %v890 = vpop.f32.mrb[0].mxu0
        %v891 = vadd.f32 0.0, %v890
        %v892 = vpop.f32.mrb[0].mxu0
        %v893 = vadd.f32 0.0, %v892
        %v894 = vpop.f32.mrb[0].mxu0
        %v895 = vadd.f32 0.0, %v894
        %v896 = vpop.f32.mrb[0].mxu0
        %v897 = vadd.f32 0.0, %v896
        %898 = vmatprep.mubr.bf16.mxu0 0
        %899 = vmatmul.mubr.bf16.gmra.mrb[0].mxu0 %v735
        %v900 = vpop.f32.mrb[0].mxu0
        %v901 = vadd.f32 0.0, %v900
        %v902 = vpop.f32.mrb[0].mxu0
        %v903 = vadd.f32 0.0, %v902
        %v904 = vpop.f32.mrb[0].mxu0
        %v905 = vadd.f32 0.0, %v904
        %v906 = vpop.f32.mrb[0].mxu0
        %v907 = vadd.f32 0.0, %v906
        %908 = vmatprep.mubr.bf16.mxu0 0
        %909 = vmatmul.mubr.bf16.gmra.mrb[0].mxu0 %v738
        %v910 = vpop.f32.mrb[0].mxu0
        %v911 = vadd.f32 0.0, %v910
        %v912 = vpop.f32.mrb[0].mxu0
        %v913 = vadd.f32 0.0, %v912
        %v914 = vpop.f32.mrb[0].mxu0
        %v915 = vadd.f32 0.0, %v914
        %v916 = vpop.f32.mrb[0].mxu0
        %v917 = vadd.f32 0.0, %v916
        %918 = vmatprep.mubr.bf16.mxu0 0
        %919 = vmatmul.mubr.bf16.gmra.mrb[0].mxu0 %v741
        %v920 = vpop.f32.mrb[0].mxu0
        %v921 = vadd.f32 0.0, %v920
        %v922 = vpop.f32.mrb[0].mxu0
        %v923 = vadd.f32 0.0, %v922
        %v924 = vpop.f32.mrb[0].mxu0
        %v925 = vadd.f32 0.0, %v924
        %v926 = vpop.f32.mrb[0].mxu0
        %v927 = vadd.f32 0.0, %v926
        %928 = vmatprep.mubr.bf16.mxu0 0
        %929 = vmatmul.mubr.bf16.gmra.mrb[0].mxu0 %v744
        %v930 = vpop.f32.mrb[0].mxu0
        %v931 = vadd.f32 0.0, %v930
        %v932 = vpop.f32.mrb[0].mxu0
        %v933 = vadd.f32 0.0, %v932
        %v934 = vpop.f32.mrb[0].mxu0
        %v935 = vadd.f32 0.0, %v934
        %v936 = vpop.f32.mrb[0].mxu0
        %v937 = vadd.f32 0.0, %v936
        %938 = vdwg.mxu0
        %v939 = vld [vmem:[#allocation2] sm:$0xff]
        %v940 = vld [vmem:[#allocation2 + $0x8] sm:$0xff]
        %v941 = vld [vmem:[#allocation2 + $0x10] sm:$0xff]
        %v942 = vld [vmem:[#allocation2 + $0x18] sm:$0xff]
        %v943 = vld [vmem:[#allocation2 + $0x20] sm:$0xff]
        %v944 = vld [vmem:[#allocation2 + $0x28] sm:$0xff]
        %v945 = vld [vmem:[#allocation2 + $0x30] sm:$0xff]
        %v946 = vld [vmem:[#allocation2 + $0x38] sm:$0xff]
        %v947 = vld [vmem:[#allocation2 + $0x40] sm:$0xff]
        %v948 = vld [vmem:[#allocation2 + $0x48] sm:$0xff]
        %v949 = vld [vmem:[#allocation2 + $0x50] sm:$0xff]
        %v950 = vld [vmem:[#allocation2 + $0x58] sm:$0xff]
        %v951 = vld [vmem:[#allocation2 + $0x60] sm:$0xff]
        %v952 = vld [vmem:[#allocation2 + $0x68] sm:$0xff]
        %v953 = vld [vmem:[#allocation2 + $0x70] sm:$0xff]
        %v954 = vld [vmem:[#allocation2 + $0x78] sm:$0xff]
        %v955 = vld [vmem:[#allocation2 + $0x80] sm:$0xff]
        %v956 = vld [vmem:[#allocation2 + $0x88] sm:$0xff]
        %v957 = vld [vmem:[#allocation2 + $0x90] sm:$0xff]
        %v958 = vld [vmem:[#allocation2 + $0x98] sm:$0xff]
        %v959 = vld [vmem:[#allocation2 + $0xa0] sm:$0xff]
        %v960 = vld [vmem:[#allocation2 + $0xa8] sm:$0xff]
        %v961 = vld [vmem:[#allocation2 + $0xb0] sm:$0xff]
        %v962 = vld [vmem:[#allocation2 + $0xb8] sm:$0xff]
        %v963 = vld [vmem:[#allocation2 + $0xc0] sm:$0xff]
        %v964 = vld [vmem:[#allocation2 + $0xc8] sm:$0xff]
        %v965 = vld [vmem:[#allocation2 + $0xd0] sm:$0xff]
        %v966 = vld [vmem:[#allocation2 + $0xd8] sm:$0xff]
        %v967 = vld [vmem:[#allocation2 + $0xe0] sm:$0xff]
        %v968 = vld [vmem:[#allocation2 + $0xe8] sm:$0xff]
        %v969 = vld [vmem:[#allocation2 + $0xf0] sm:$0xff]
        %v970 = vld [vmem:[#allocation2 + $0xf8] sm:$0xff]
        %v971 = vmax.f32 %v781, %v783
        %972 = vmax.xlane.f32.xlu0 %v971
        %v973 = vpop.xlane.xlu0 %972
        %v974 = vmax.f32 %v785, %v787
        %975 = vmax.xlane.f32.xlu0 %v974
        %v976 = vpop.xlane.xlu0 %975
        %v977 = vmax.f32 %v791, %v793
        %978 = vmax.xlane.f32.xlu0 %v977
        %v979 = vpop.xlane.xlu0 %978
        %v980 = vmax.f32 %v795, %v797
        %981 = vmax.xlane.f32.xlu0 %v980
        %v982 = vpop.xlane.xlu0 %981
        %v983 = vmax.f32 %v801, %v803
        %984 = vmax.xlane.f32.xlu0 %v983
        %v985 = vpop.xlane.xlu0 %984
        %v986 = vmax.f32 %v805, %v807
        %987 = vmax.xlane.f32.xlu0 %v986
        %v988 = vpop.xlane.xlu0 %987
        %v989 = vmax.f32 %v811, %v813
        %990 = vmax.xlane.f32.xlu0 %v989
        %v991 = vpop.xlane.xlu0 %990
        %v992 = vmax.f32 %v815, %v817
        %993 = vmax.xlane.f32.xlu0 %v992
        %v994 = vpop.xlane.xlu0 %993
        %v995 = vmax.f32 %v821, %v823
        %996 = vmax.xlane.f32.xlu0 %v995
        %v997 = vpop.xlane.xlu0 %996
        %v998 = vmax.f32 %v825, %v827
        %999 = vmax.xlane.f32.xlu0 %v998
        %v1000 = vpop.xlane.xlu0 %999
        %v1001 = vmax.f32 %v831, %v833
        %1002 = vmax.xlane.f32.xlu0 %v1001
        %v1003 = vpop.xlane.xlu0 %1002
        %v1004 = vmax.f32 %v835, %v837
        %1005 = vmax.xlane.f32.xlu0 %v1004
        %v1006 = vpop.xlane.xlu0 %1005
        %v1007 = vmax.f32 %v841, %v843
        %1008 = vmax.xlane.f32.xlu0 %v1007
        %v1009 = vpop.xlane.xlu0 %1008
        %v1010 = vmax.f32 %v845, %v847
        %1011 = vmax.xlane.f32.xlu0 %v1010
        %v1012 = vpop.xlane.xlu0 %1011
        %v1013 = vmax.f32 %v851, %v853
        %1014 = vmax.xlane.f32.xlu0 %v1013
        %v1015 = vpop.xlane.xlu0 %1014
        %v1016 = vmax.f32 %v855, %v857
        %1017 = vmax.xlane.f32.xlu0 %v1016
        %v1018 = vpop.xlane.xlu0 %1017
        %v1019 = vmax.f32 %v861, %v863
        %1020 = vmax.xlane.f32.xlu0 %v1019
        %v1021 = vpop.xlane.xlu0 %1020
        %v1022 = vmax.f32 %v865, %v867
        %1023 = vmax.xlane.f32.xlu0 %v1022
        %v1024 = vpop.xlane.xlu0 %1023
        %v1025 = vmax.f32 %v871, %v873
        %1026 = vmax.xlane.f32.xlu0 %v1025
        %v1027 = vpop.xlane.xlu0 %1026
        %v1028 = vmax.f32 %v875, %v877
        %1029 = vmax.xlane.f32.xlu0 %v1028
        %v1030 = vpop.xlane.xlu0 %1029
        %v1031 = vmax.f32 %v881, %v883
        %1032 = vmax.xlane.f32.xlu0 %v1031
        %v1033 = vpop.xlane.xlu0 %1032
        %v1034 = vmax.f32 %v885, %v887
        %1035 = vmax.xlane.f32.xlu0 %v1034
        %v1036 = vpop.xlane.xlu0 %1035
        %v1037 = vmax.f32 %v891, %v893
        %1038 = vmax.xlane.f32.xlu0 %v1037
        %v1039 = vpop.xlane.xlu0 %1038
        %v1040 = vmax.f32 %v895, %v897
        %1041 = vmax.xlane.f32.xlu0 %v1040
        %v1042 = vpop.xlane.xlu0 %1041
        %v1043 = vmax.f32 %v901, %v903
        %1044 = vmax.xlane.f32.xlu0 %v1043
        %v1045 = vpop.xlane.xlu0 %1044
        %v1046 = vmax.f32 %v905, %v907
        %1047 = vmax.xlane.f32.xlu0 %v1046
        %v1048 = vpop.xlane.xlu0 %1047
        %v1049 = vmax.f32 %v911, %v913
        %1050 = vmax.xlane.f32.xlu0 %v1049
        %v1051 = vpop.xlane.xlu0 %1050
        %v1052 = vmax.f32 %v915, %v917
        %1053 = vmax.xlane.f32.xlu0 %v1052
        %v1054 = vpop.xlane.xlu0 %1053
        %v1055 = vmax.f32 %v921, %v923
        %1056 = vmax.xlane.f32.xlu0 %v1055
        %v1057 = vpop.xlane.xlu0 %1056
        %v1058 = vmax.f32 %v925, %v927
        %1059 = vmax.xlane.f32.xlu0 %v1058
        %v1060 = vpop.xlane.xlu0 %1059
        %v1061 = vmax.f32 %v931, %v933
        %1062 = vmax.xlane.f32.xlu0 %v1061
        %v1063 = vpop.xlane.xlu0 %1062
        %v1064 = vmax.f32 %v935, %v937
        %1065 = vmax.xlane.f32.xlu0 %v1064
        %v1066 = vpop.xlane.xlu0 %1065
        %v1067 = vmax.f32 %v939, %v973
        %v1068 = vmax.f32 %v940, %v976
        %v1069 = vmax.f32 %v941, %v979
        %v1070 = vmax.f32 %v942, %v982
        %v1071 = vmax.f32 %v943, %v985
        %v1072 = vmax.f32 %v944, %v988
        %v1073 = vmax.f32 %v945, %v991
        %v1074 = vmax.f32 %v946, %v994
        %v1075 = vmax.f32 %v947, %v997
        %v1076 = vmax.f32 %v948, %v1000
        %v1077 = vmax.f32 %v949, %v1003
        %v1078 = vmax.f32 %v950, %v1006
        %v1079 = vmax.f32 %v951, %v1009
        %v1080 = vmax.f32 %v952, %v1012
        %v1081 = vmax.f32 %v953, %v1015
        %v1082 = vmax.f32 %v954, %v1018
        %v1083 = vmax.f32 %v955, %v1021
        %v1084 = vmax.f32 %v956, %v1024
        %v1085 = vmax.f32 %v957, %v1027
        %v1086 = vmax.f32 %v958, %v1030
        %v1087 = vmax.f32 %v959, %v1033
        %v1088 = vmax.f32 %v960, %v1036
        %v1089 = vmax.f32 %v961, %v1039
        %v1090 = vmax.f32 %v962, %v1042
        %v1091 = vmax.f32 %v963, %v1045
        %v1092 = vmax.f32 %v964, %v1048
        %v1093 = vmax.f32 %v965, %v1051
        %v1094 = vmax.f32 %v966, %v1054
        %v1095 = vmax.f32 %v967, %v1057
        %v1096 = vmax.f32 %v968, %v1060
        %v1097 = vmax.f32 %v969, %v1063
        %v1098 = vmax.f32 %v970, %v1066
        %v1099 = vsub.f32 %v939, %v1067
        %v1100 = vsub.f32 %v940, %v1068
        %v1101 = vsub.f32 %v941, %v1069
        %v1102 = vsub.f32 %v942, %v1070
        %v1103 = vsub.f32 %v943, %v1071
        %v1104 = vsub.f32 %v944, %v1072
        %v1105 = vsub.f32 %v945, %v1073
        %v1106 = vsub.f32 %v946, %v1074
        %v1107 = vsub.f32 %v947, %v1075
        %v1108 = vsub.f32 %v948, %v1076
        %v1109 = vsub.f32 %v949, %v1077
        %v1110 = vsub.f32 %v950, %v1078
        %v1111 = vsub.f32 %v951, %v1079
        %v1112 = vsub.f32 %v952, %v1080
        %v1113 = vsub.f32 %v953, %v1081
        %v1114 = vsub.f32 %v954, %v1082
        %v1115 = vsub.f32 %v955, %v1083
        %v1116 = vsub.f32 %v956, %v1084
        %v1117 = vsub.f32 %v957, %v1085
        %v1118 = vsub.f32 %v958, %v1086
        %v1119 = vsub.f32 %v959, %v1087
        %v1120 = vsub.f32 %v960, %v1088
        %v1121 = vsub.f32 %v961, %v1089
        %v1122 = vsub.f32 %v962, %v1090
        %v1123 = vsub.f32 %v963, %v1091
        %v1124 = vsub.f32 %v964, %v1092
        %v1125 = vsub.f32 %v965, %v1093
        %v1126 = vsub.f32 %v966, %v1094
        %v1127 = vsub.f32 %v967, %v1095
        %v1128 = vsub.f32 %v968, %v1096
        %v1129 = vsub.f32 %v969, %v1097
        %v1130 = vsub.f32 %v970, %v1098
        %v1131 = vmul.f32 %v1099, 1.442695
        %v1132 = vpow.pop %v1131
        %v1133 = vmul.f32 %v1100, 1.442695
        %v1134 = vpow.pop %v1133
        %v1135 = vmul.f32 %v1101, 1.442695
        %v1136 = vpow.pop %v1135
        %v1137 = vmul.f32 %v1102, 1.442695
        %v1138 = vpow.pop %v1137
        %v1139 = vmul.f32 %v1103, 1.442695
        %v1140 = vpow.pop %v1139
        %v1141 = vmul.f32 %v1104, 1.442695
        %v1142 = vpow.pop %v1141
        %v1143 = vmul.f32 %v1105, 1.442695
        %v1144 = vpow.pop %v1143
        %v1145 = vmul.f32 %v1106, 1.442695
        %v1146 = vpow.pop %v1145
        %v1147 = vmul.f32 %v1107, 1.442695
        %v1148 = vpow.pop %v1147
        %v1149 = vmul.f32 %v1108, 1.442695
        %v1150 = vpow.pop %v1149
        %v1151 = vmul.f32 %v1109, 1.442695
        %v1152 = vpow.pop %v1151
        %v1153 = vmul.f32 %v1110, 1.442695
        %v1154 = vpow.pop %v1153
        %v1155 = vmul.f32 %v1111, 1.442695
        %v1156 = vpow.pop %v1155
        %v1157 = vmul.f32 %v1112, 1.442695
        %v1158 = vpow.pop %v1157
        %v1159 = vmul.f32 %v1113, 1.442695
        %v1160 = vpow.pop %v1159
        %v1161 = vmul.f32 %v1114, 1.442695
        %v1162 = vpow.pop %v1161
        %v1163 = vmul.f32 %v1115, 1.442695
        %v1164 = vpow.pop %v1163
        %v1165 = vmul.f32 %v1116, 1.442695
        %v1166 = vpow.pop %v1165
        %v1167 = vmul.f32 %v1117, 1.442695
        %v1168 = vpow.pop %v1167
        %v1169 = vmul.f32 %v1118, 1.442695
        %v1170 = vpow.pop %v1169
        %v1171 = vmul.f32 %v1119, 1.442695
        %v1172 = vpow.pop %v1171
        %v1173 = vmul.f32 %v1120, 1.442695
        %v1174 = vpow.pop %v1173
        %v1175 = vmul.f32 %v1121, 1.442695
        %v1176 = vpow.pop %v1175
        %v1177 = vmul.f32 %v1122, 1.442695
        %v1178 = vpow.pop %v1177
        %v1179 = vmul.f32 %v1123, 1.442695
        %v1180 = vpow.pop %v1179
        %v1181 = vmul.f32 %v1124, 1.442695
        %v1182 = vpow.pop %v1181
        %v1183 = vmul.f32 %v1125, 1.442695
        %v1184 = vpow.pop %v1183
        %v1185 = vmul.f32 %v1126, 1.442695
        %v1186 = vpow.pop %v1185
        %v1187 = vmul.f32 %v1127, 1.442695
        %v1188 = vpow.pop %v1187
        %v1189 = vmul.f32 %v1128, 1.442695
        %v1190 = vpow.pop %v1189
        %v1191 = vmul.f32 %v1129, 1.442695
        %v1192 = vpow.pop %v1191
        %v1193 = vmul.f32 %v1130, 1.442695
        %v1194 = vpow.pop %v1193
        %1196 = vset.pattern.permute.xlu0 0
        %1197 = vperm.xlu0 %1196, %v1067
        %v1198 = vpop.permute.xlu0 %1197
        %1201 = vset.pattern.permute.xlu0 0
        %1202 = vperm.xlu0 %1201, %v1068
        %v1203 = vpop.permute.xlu0 %1202
        %1206 = vset.pattern.permute.xlu0 0
        %1207 = vperm.xlu0 %1206, %v1069
        %v1208 = vpop.permute.xlu0 %1207
        %1211 = vset.pattern.permute.xlu0 0
        %1212 = vperm.xlu0 %1211, %v1070
        %v1213 = vpop.permute.xlu0 %1212
        %1216 = vset.pattern.permute.xlu0 0
        %1217 = vperm.xlu0 %1216, %v1071
        %v1218 = vpop.permute.xlu0 %1217
        %1221 = vset.pattern.permute.xlu0 0
        %1222 = vperm.xlu0 %1221, %v1072
        %v1223 = vpop.permute.xlu0 %1222
        %1226 = vset.pattern.permute.xlu0 0
        %1227 = vperm.xlu0 %1226, %v1073
        %v1228 = vpop.permute.xlu0 %1227
        %1231 = vset.pattern.permute.xlu0 0
        %1232 = vperm.xlu0 %1231, %v1074
        %v1233 = vpop.permute.xlu0 %1232
        %1236 = vset.pattern.permute.xlu0 0
        %1237 = vperm.xlu0 %1236, %v1075
        %v1238 = vpop.permute.xlu0 %1237
        %1241 = vset.pattern.permute.xlu0 0
        %1242 = vperm.xlu0 %1241, %v1076
        %v1243 = vpop.permute.xlu0 %1242
        %1246 = vset.pattern.permute.xlu0 0
        %1247 = vperm.xlu0 %1246, %v1077
        %v1248 = vpop.permute.xlu0 %1247
        %1251 = vset.pattern.permute.xlu0 0
        %1252 = vperm.xlu0 %1251, %v1078
        %v1253 = vpop.permute.xlu0 %1252
        %1256 = vset.pattern.permute.xlu0 0
        %1257 = vperm.xlu0 %1256, %v1079
        %v1258 = vpop.permute.xlu0 %1257
        %1261 = vset.pattern.permute.xlu0 0
        %1262 = vperm.xlu0 %1261, %v1080
        %v1263 = vpop.permute.xlu0 %1262
        %1266 = vset.pattern.permute.xlu0 0
        %1267 = vperm.xlu0 %1266, %v1081
        %v1268 = vpop.permute.xlu0 %1267
        %1271 = vset.pattern.permute.xlu0 0
        %1272 = vperm.xlu0 %1271, %v1082
        %v1273 = vpop.permute.xlu0 %1272
        %1276 = vset.pattern.permute.xlu0 0
        %1277 = vperm.xlu0 %1276, %v1083
        %v1278 = vpop.permute.xlu0 %1277
        %1281 = vset.pattern.permute.xlu0 0
        %1282 = vperm.xlu0 %1281, %v1084
        %v1283 = vpop.permute.xlu0 %1282
        %1286 = vset.pattern.permute.xlu0 0
        %1287 = vperm.xlu0 %1286, %v1085
        %v1288 = vpop.permute.xlu0 %1287
        %1291 = vset.pattern.permute.xlu0 0
        %1292 = vperm.xlu0 %1291, %v1086
        %v1293 = vpop.permute.xlu0 %1292
        %1296 = vset.pattern.permute.xlu0 0
        %1297 = vperm.xlu0 %1296, %v1087
        %v1298 = vpop.permute.xlu0 %1297
        %1301 = vset.pattern.permute.xlu0 0
        %1302 = vperm.xlu0 %1301, %v1088
        %v1303 = vpop.permute.xlu0 %1302
        %1306 = vset.pattern.permute.xlu0 0
        %1307 = vperm.xlu0 %1306, %v1089
        %v1308 = vpop.permute.xlu0 %1307
        %1311 = vset.pattern.permute.xlu0 0
        %1312 = vperm.xlu0 %1311, %v1090
        %v1313 = vpop.permute.xlu0 %1312
        %1316 = vset.pattern.permute.xlu0 0
        %1317 = vperm.xlu0 %1316, %v1091
        %v1318 = vpop.permute.xlu0 %1317
        %1321 = vset.pattern.permute.xlu0 0
        %1322 = vperm.xlu0 %1321, %v1092
        %v1323 = vpop.permute.xlu0 %1322
        %1326 = vset.pattern.permute.xlu0 0
        %1327 = vperm.xlu0 %1326, %v1093
        %v1328 = vpop.permute.xlu0 %1327
        %1331 = vset.pattern.permute.xlu0 0
        %1332 = vperm.xlu0 %1331, %v1094
        %v1333 = vpop.permute.xlu0 %1332
        %1336 = vset.pattern.permute.xlu0 0
        %1337 = vperm.xlu0 %1336, %v1095
        %v1338 = vpop.permute.xlu0 %1337
        %1341 = vset.pattern.permute.xlu0 0
        %1342 = vperm.xlu0 %1341, %v1096
        %v1343 = vpop.permute.xlu0 %1342
        %1346 = vset.pattern.permute.xlu0 0
        %1347 = vperm.xlu0 %1346, %v1097
        %v1348 = vpop.permute.xlu0 %1347
        %1351 = vset.pattern.permute.xlu0 0
        %1352 = vperm.xlu0 %1351, %v1098
        %v1353 = vpop.permute.xlu0 %1352
        %v1355 = vsub.f32 %v781, %v1198
        %v1356 = vsub.f32 %v783, %v1198
        %v1357 = vsub.f32 %v785, %v1203
        %v1358 = vsub.f32 %v787, %v1203
        %v1359 = vsub.f32 %v791, %v1208
        %v1360 = vsub.f32 %v793, %v1208
        %v1361 = vsub.f32 %v795, %v1213
        %v1362 = vsub.f32 %v797, %v1213
        %v1363 = vsub.f32 %v801, %v1218
        %v1364 = vsub.f32 %v803, %v1218
        %v1365 = vsub.f32 %v805, %v1223
        %v1366 = vsub.f32 %v807, %v1223
        %v1367 = vsub.f32 %v811, %v1228
        %v1368 = vsub.f32 %v813, %v1228
        %v1369 = vsub.f32 %v815, %v1233
        %v1370 = vsub.f32 %v817, %v1233
        %v1371 = vsub.f32 %v821, %v1238
        %v1372 = vsub.f32 %v823, %v1238
        %v1373 = vsub.f32 %v825, %v1243
        %v1374 = vsub.f32 %v827, %v1243
        %v1375 = vsub.f32 %v831, %v1248
        %v1376 = vsub.f32 %v833, %v1248
        %v1377 = vsub.f32 %v835, %v1253
        %v1378 = vsub.f32 %v837, %v1253
        %v1379 = vsub.f32 %v841, %v1258
        %v1380 = vsub.f32 %v843, %v1258
        %v1381 = vsub.f32 %v845, %v1263
        %v1382 = vsub.f32 %v847, %v1263
        %v1383 = vsub.f32 %v851, %v1268
        %v1384 = vsub.f32 %v853, %v1268
        %v1385 = vsub.f32 %v855, %v1273
        %v1386 = vsub.f32 %v857, %v1273
        %v1387 = vsub.f32 %v861, %v1278
        %v1388 = vsub.f32 %v863, %v1278
        %v1389 = vsub.f32 %v865, %v1283
        %v1390 = vsub.f32 %v867, %v1283
        %v1391 = vsub.f32 %v871, %v1288
        %v1392 = vsub.f32 %v873, %v1288
        %v1393 = vsub.f32 %v875, %v1293
        %v1394 = vsub.f32 %v877, %v1293
        %v1395 = vsub.f32 %v881, %v1298
        %v1396 = vsub.f32 %v883, %v1298
        %v1397 = vsub.f32 %v885, %v1303
        %v1398 = vsub.f32 %v887, %v1303
        %v1399 = vsub.f32 %v891, %v1308
        %v1400 = vsub.f32 %v893, %v1308
        %v1401 = vsub.f32 %v895, %v1313
        %v1402 = vsub.f32 %v897, %v1313
        %v1403 = vsub.f32 %v901, %v1318
        %v1404 = vsub.f32 %v903, %v1318
        %v1405 = vsub.f32 %v905, %v1323
        %v1406 = vsub.f32 %v907, %v1323
        %v1407 = vsub.f32 %v911, %v1328
        %v1408 = vsub.f32 %v913, %v1328
        %v1409 = vsub.f32 %v915, %v1333
        %v1410 = vsub.f32 %v917, %v1333
        %v1411 = vsub.f32 %v921, %v1338
        %v1412 = vsub.f32 %v923, %v1338
        %v1413 = vsub.f32 %v925, %v1343
        %v1414 = vsub.f32 %v927, %v1343
        %v1415 = vsub.f32 %v931, %v1348
        %v1416 = vsub.f32 %v933, %v1348
        %v1417 = vsub.f32 %v935, %v1353
        %v1418 = vsub.f32 %v937, %v1353
        %v1419 = vmul.f32 %v1355, 1.442695
        %v1420 = vpow.pop %v1419
        %v1421 = vmul.f32 %v1356, 1.442695
        %v1422 = vpow.pop %v1421
        %v1423 = vmul.f32 %v1357, 1.442695
        %v1424 = vpow.pop %v1423
        %v1425 = vmul.f32 %v1358, 1.442695
        %v1426 = vpow.pop %v1425
        %v1427 = vmul.f32 %v1359, 1.442695
        %v1428 = vpow.pop %v1427
        %v1429 = vmul.f32 %v1360, 1.442695
        %v1430 = vpow.pop %v1429
        %v1431 = vmul.f32 %v1361, 1.442695
        %v1432 = vpow.pop %v1431
        %v1433 = vmul.f32 %v1362, 1.442695
        %v1434 = vpow.pop %v1433
        %v1435 = vmul.f32 %v1363, 1.442695
        %v1436 = vpow.pop %v1435
        %v1437 = vmul.f32 %v1364, 1.442695
        %v1438 = vpow.pop %v1437
        %v1439 = vmul.f32 %v1365, 1.442695
        %v1440 = vpow.pop %v1439
        %v1441 = vmul.f32 %v1366, 1.442695
        %v1442 = vpow.pop %v1441
        %v1443 = vmul.f32 %v1367, 1.442695
        %v1444 = vpow.pop %v1443
        %v1445 = vmul.f32 %v1368, 1.442695
        %v1446 = vpow.pop %v1445
        %v1447 = vmul.f32 %v1369, 1.442695
        %v1448 = vpow.pop %v1447
        %v1449 = vmul.f32 %v1370, 1.442695
        %v1450 = vpow.pop %v1449
        %v1451 = vmul.f32 %v1371, 1.442695
        %v1452 = vpow.pop %v1451
        %v1453 = vmul.f32 %v1372, 1.442695
        %v1454 = vpow.pop %v1453
        %v1455 = vmul.f32 %v1373, 1.442695
        %v1456 = vpow.pop %v1455
        %v1457 = vmul.f32 %v1374, 1.442695
        %v1458 = vpow.pop %v1457
        %v1459 = vmul.f32 %v1375, 1.442695
        %v1460 = vpow.pop %v1459
        %v1461 = vmul.f32 %v1376, 1.442695
        %v1462 = vpow.pop %v1461
        %v1463 = vmul.f32 %v1377, 1.442695
        %v1464 = vpow.pop %v1463
        %v1465 = vmul.f32 %v1378, 1.442695
        %v1466 = vpow.pop %v1465
        %v1467 = vmul.f32 %v1379, 1.442695
        %v1468 = vpow.pop %v1467
        %v1469 = vmul.f32 %v1380, 1.442695
        %v1470 = vpow.pop %v1469
        %v1471 = vmul.f32 %v1381, 1.442695
        %v1472 = vpow.pop %v1471
        %v1473 = vmul.f32 %v1382, 1.442695
        %v1474 = vpow.pop %v1473
        %v1475 = vmul.f32 %v1383, 1.442695
        %v1476 = vpow.pop %v1475
        %v1477 = vmul.f32 %v1384, 1.442695
        %v1478 = vpow.pop %v1477
        %v1479 = vmul.f32 %v1385, 1.442695
        %v1480 = vpow.pop %v1479
        %v1481 = vmul.f32 %v1386, 1.442695
        %v1482 = vpow.pop %v1481
        %v1483 = vmul.f32 %v1387, 1.442695
        %v1484 = vpow.pop %v1483
        %v1485 = vmul.f32 %v1388, 1.442695
        %v1486 = vpow.pop %v1485
        %v1487 = vmul.f32 %v1389, 1.442695
        %v1488 = vpow.pop %v1487
        %v1489 = vmul.f32 %v1390, 1.442695
        %v1490 = vpow.pop %v1489
        %v1491 = vmul.f32 %v1391, 1.442695
        %v1492 = vpow.pop %v1491
        %v1493 = vmul.f32 %v1392, 1.442695
        %v1494 = vpow.pop %v1493
        %v1495 = vmul.f32 %v1393, 1.442695
        %v1496 = vpow.pop %v1495
        %v1497 = vmul.f32 %v1394, 1.442695
        %v1498 = vpow.pop %v1497
        %v1499 = vmul.f32 %v1395, 1.442695
        %v1500 = vpow.pop %v1499
        %v1501 = vmul.f32 %v1396, 1.442695
        %v1502 = vpow.pop %v1501
        %v1503 = vmul.f32 %v1397, 1.442695
        %v1504 = vpow.pop %v1503
        %v1505 = vmul.f32 %v1398, 1.442695
        %v1506 = vpow.pop %v1505
        %v1507 = vmul.f32 %v1399, 1.442695
        %v1508 = vpow.pop %v1507
        %v1509 = vmul.f32 %v1400, 1.442695
        %v1510 = vpow.pop %v1509
        %v1511 = vmul.f32 %v1401, 1.442695
        %v1512 = vpow.pop %v1511
        %v1513 = vmul.f32 %v1402, 1.442695
        %v1514 = vpow.pop %v1513
        %v1515 = vmul.f32 %v1403, 1.442695
        %v1516 = vpow.pop %v1515
        %v1517 = vmul.f32 %v1404, 1.442695
        %v1518 = vpow.pop %v1517
        %v1519 = vmul.f32 %v1405, 1.442695
        %v1520 = vpow.pop %v1519
        %v1521 = vmul.f32 %v1406, 1.442695
        %v1522 = vpow.pop %v1521
        %v1523 = vmul.f32 %v1407, 1.442695
        %v1524 = vpow.pop %v1523
        %v1525 = vmul.f32 %v1408, 1.442695
        %v1526 = vpow.pop %v1525
        %v1527 = vmul.f32 %v1409, 1.442695
        %v1528 = vpow.pop %v1527
        %v1529 = vmul.f32 %v1410, 1.442695
        %v1530 = vpow.pop %v1529
        %v1531 = vmul.f32 %v1411, 1.442695
        %v1532 = vpow.pop %v1531
        %v1533 = vmul.f32 %v1412, 1.442695
        %v1534 = vpow.pop %v1533
        %v1535 = vmul.f32 %v1413, 1.442695
        %v1536 = vpow.pop %v1535
        %v1537 = vmul.f32 %v1414, 1.442695
        %v1538 = vpow.pop %v1537
        %v1539 = vmul.f32 %v1415, 1.442695
        %v1540 = vpow.pop %v1539
        %v1541 = vmul.f32 %v1416, 1.442695
        %v1542 = vpow.pop %v1541
        %v1543 = vmul.f32 %v1417, 1.442695
        %v1544 = vpow.pop %v1543
        %v1545 = vmul.f32 %v1418, 1.442695
        %v1546 = vpow.pop %v1545
        %v1547 = vld [vmem:[#allocation3] sm:$0xff]
        %v1548 = vld [vmem:[#allocation3 + $0x8] sm:$0xff]
        %v1549 = vld [vmem:[#allocation3 + $0x10] sm:$0xff]
        %v1550 = vld [vmem:[#allocation3 + $0x18] sm:$0xff]
        %v1551 = vld [vmem:[#allocation3 + $0x20] sm:$0xff]
        %v1552 = vld [vmem:[#allocation3 + $0x28] sm:$0xff]
        %v1553 = vld [vmem:[#allocation3 + $0x30] sm:$0xff]
        %v1554 = vld [vmem:[#allocation3 + $0x38] sm:$0xff]
        %v1555 = vld [vmem:[#allocation3 + $0x40] sm:$0xff]
        %v1556 = vld [vmem:[#allocation3 + $0x48] sm:$0xff]
        %v1557 = vld [vmem:[#allocation3 + $0x50] sm:$0xff]
        %v1558 = vld [vmem:[#allocation3 + $0x58] sm:$0xff]
        %v1559 = vld [vmem:[#allocation3 + $0x60] sm:$0xff]
        %v1560 = vld [vmem:[#allocation3 + $0x68] sm:$0xff]
        %v1561 = vld [vmem:[#allocation3 + $0x70] sm:$0xff]
        %v1562 = vld [vmem:[#allocation3 + $0x78] sm:$0xff]
        %v1563 = vld [vmem:[#allocation3 + $0x80] sm:$0xff]
        %v1564 = vld [vmem:[#allocation3 + $0x88] sm:$0xff]
        %v1565 = vld [vmem:[#allocation3 + $0x90] sm:$0xff]
        %v1566 = vld [vmem:[#allocation3 + $0x98] sm:$0xff]
        %v1567 = vld [vmem:[#allocation3 + $0xa0] sm:$0xff]
        %v1568 = vld [vmem:[#allocation3 + $0xa8] sm:$0xff]
        %v1569 = vld [vmem:[#allocation3 + $0xb0] sm:$0xff]
        %v1570 = vld [vmem:[#allocation3 + $0xb8] sm:$0xff]
        %v1571 = vld [vmem:[#allocation3 + $0xc0] sm:$0xff]
        %v1572 = vld [vmem:[#allocation3 + $0xc8] sm:$0xff]
        %v1573 = vld [vmem:[#allocation3 + $0xd0] sm:$0xff]
        %v1574 = vld [vmem:[#allocation3 + $0xd8] sm:$0xff]
        %v1575 = vld [vmem:[#allocation3 + $0xe0] sm:$0xff]
        %v1576 = vld [vmem:[#allocation3 + $0xe8] sm:$0xff]
        %v1577 = vld [vmem:[#allocation3 + $0xf0] sm:$0xff]
        %v1578 = vld [vmem:[#allocation3 + $0xf8] sm:$0xff]
        %v1579 = vmul.f32 %v1132, %v1547
        %v1580 = vmul.f32 %v1134, %v1548
        %v1581 = vmul.f32 %v1136, %v1549
        %v1582 = vmul.f32 %v1138, %v1550
        %v1583 = vmul.f32 %v1140, %v1551
        %v1584 = vmul.f32 %v1142, %v1552
        %v1585 = vmul.f32 %v1144, %v1553
        %v1586 = vmul.f32 %v1146, %v1554
        %v1587 = vmul.f32 %v1148, %v1555
        %v1588 = vmul.f32 %v1150, %v1556
        %v1589 = vmul.f32 %v1152, %v1557
        %v1590 = vmul.f32 %v1154, %v1558
        %v1591 = vmul.f32 %v1156, %v1559
        %v1592 = vmul.f32 %v1158, %v1560
        %v1593 = vmul.f32 %v1160, %v1561
        %v1594 = vmul.f32 %v1162, %v1562
        %v1595 = vmul.f32 %v1164, %v1563
        %v1596 = vmul.f32 %v1166, %v1564
        %v1597 = vmul.f32 %v1168, %v1565
        %v1598 = vmul.f32 %v1170, %v1566
        %v1599 = vmul.f32 %v1172, %v1567
        %v1600 = vmul.f32 %v1174, %v1568
        %v1601 = vmul.f32 %v1176, %v1569
        %v1602 = vmul.f32 %v1178, %v1570
        %v1603 = vmul.f32 %v1180, %v1571
        %v1604 = vmul.f32 %v1182, %v1572
        %v1605 = vmul.f32 %v1184, %v1573
        %v1606 = vmul.f32 %v1186, %v1574
        %v1607 = vmul.f32 %v1188, %v1575
        %v1608 = vmul.f32 %v1190, %v1576
        %v1609 = vmul.f32 %v1192, %v1577
        %v1610 = vmul.f32 %v1194, %v1578
        %v1611 = vadd.f32 %v1420, %v1422
        %1612 = vadd.xlane.f32.xlu0 %v1611
        %v1613 = vpop.xlane.xlu0 %1612
        %v1614 = vadd.f32 %v1424, %v1426
        %1615 = vadd.xlane.f32.xlu0 %v1614
        %v1616 = vpop.xlane.xlu0 %1615
        %v1617 = vadd.f32 %v1428, %v1430
        %1618 = vadd.xlane.f32.xlu0 %v1617
        %v1619 = vpop.xlane.xlu0 %1618
        %v1620 = vadd.f32 %v1432, %v1434
        %1621 = vadd.xlane.f32.xlu0 %v1620
        %v1622 = vpop.xlane.xlu0 %1621
        %v1623 = vadd.f32 %v1436, %v1438
        %1624 = vadd.xlane.f32.xlu0 %v1623
        %v1625 = vpop.xlane.xlu0 %1624
        %v1626 = vadd.f32 %v1440, %v1442
        %1627 = vadd.xlane.f32.xlu0 %v1626
        %v1628 = vpop.xlane.xlu0 %1627
        %v1629 = vadd.f32 %v1444, %v1446
        %1630 = vadd.xlane.f32.xlu0 %v1629
        %v1631 = vpop.xlane.xlu0 %1630
        %v1632 = vadd.f32 %v1448, %v1450
        %1633 = vadd.xlane.f32.xlu0 %v1632
        %v1634 = vpop.xlane.xlu0 %1633
        %v1635 = vadd.f32 %v1452, %v1454
        %1636 = vadd.xlane.f32.xlu0 %v1635
        %v1637 = vpop.xlane.xlu0 %1636
        %v1638 = vadd.f32 %v1456, %v1458
        %1639 = vadd.xlane.f32.xlu0 %v1638
        %v1640 = vpop.xlane.xlu0 %1639
        %v1641 = vadd.f32 %v1460, %v1462
        %1642 = vadd.xlane.f32.xlu0 %v1641
        %v1643 = vpop.xlane.xlu0 %1642
        %v1644 = vadd.f32 %v1464, %v1466
        %1645 = vadd.xlane.f32.xlu0 %v1644
        %v1646 = vpop.xlane.xlu0 %1645
        %v1647 = vadd.f32 %v1468, %v1470
        %1648 = vadd.xlane.f32.xlu0 %v1647
        %v1649 = vpop.xlane.xlu0 %1648
        %v1650 = vadd.f32 %v1472, %v1474
        %1651 = vadd.xlane.f32.xlu0 %v1650
        %v1652 = vpop.xlane.xlu0 %1651
        %v1653 = vadd.f32 %v1476, %v1478
        %1654 = vadd.xlane.f32.xlu0 %v1653
        %v1655 = vpop.xlane.xlu0 %1654
        %v1656 = vadd.f32 %v1480, %v1482
        %1657 = vadd.xlane.f32.xlu0 %v1656
        %v1658 = vpop.xlane.xlu0 %1657
        %v1659 = vadd.f32 %v1484, %v1486
        %1660 = vadd.xlane.f32.xlu0 %v1659
        %v1661 = vpop.xlane.xlu0 %1660
        %v1662 = vadd.f32 %v1488, %v1490
        %1663 = vadd.xlane.f32.xlu0 %v1662
        %v1664 = vpop.xlane.xlu0 %1663
        %v1665 = vadd.f32 %v1492, %v1494
        %1666 = vadd.xlane.f32.xlu0 %v1665
        %v1667 = vpop.xlane.xlu0 %1666
        %v1668 = vadd.f32 %v1496, %v1498
        %1669 = vadd.xlane.f32.xlu0 %v1668
        %v1670 = vpop.xlane.xlu0 %1669
        %v1671 = vadd.f32 %v1500, %v1502
        %1672 = vadd.xlane.f32.xlu0 %v1671
        %v1673 = vpop.xlane.xlu0 %1672
        %v1674 = vadd.f32 %v1504, %v1506
        %1675 = vadd.xlane.f32.xlu0 %v1674
        %v1676 = vpop.xlane.xlu0 %1675
        %v1677 = vadd.f32 %v1508, %v1510
        %1678 = vadd.xlane.f32.xlu0 %v1677
        %v1679 = vpop.xlane.xlu0 %1678
        %v1680 = vadd.f32 %v1512, %v1514
        %1681 = vadd.xlane.f32.xlu0 %v1680
        %v1682 = vpop.xlane.xlu0 %1681
        %v1683 = vadd.f32 %v1516, %v1518
        %1684 = vadd.xlane.f32.xlu0 %v1683
        %v1685 = vpop.xlane.xlu0 %1684
        %v1686 = vadd.f32 %v1520, %v1522
        %1687 = vadd.xlane.f32.xlu0 %v1686
        %v1688 = vpop.xlane.xlu0 %1687
        %v1689 = vadd.f32 %v1524, %v1526
        %1690 = vadd.xlane.f32.xlu0 %v1689
        %v1691 = vpop.xlane.xlu0 %1690
        %v1692 = vadd.f32 %v1528, %v1530
        %1693 = vadd.xlane.f32.xlu0 %v1692
        %v1694 = vpop.xlane.xlu0 %1693
        %v1695 = vadd.f32 %v1532, %v1534
        %1696 = vadd.xlane.f32.xlu0 %v1695
        %v1697 = vpop.xlane.xlu0 %1696
        %v1698 = vadd.f32 %v1536, %v1538
        %1699 = vadd.xlane.f32.xlu0 %v1698
        %v1700 = vpop.xlane.xlu0 %1699
        %v1701 = vadd.f32 %v1540, %v1542
        %1702 = vadd.xlane.f32.xlu0 %v1701
        %v1703 = vpop.xlane.xlu0 %1702
        %v1704 = vadd.f32 %v1544, %v1546
        %1705 = vadd.xlane.f32.xlu0 %v1704
        %v1706 = vpop.xlane.xlu0 %1705
        %v1707 = vadd.f32 %v1579, %v1613
        %v1708 = vadd.f32 %v1580, %v1616
        %v1709 = vadd.f32 %v1581, %v1619
        %v1710 = vadd.f32 %v1582, %v1622
        %v1711 = vadd.f32 %v1583, %v1625
        %v1712 = vadd.f32 %v1584, %v1628
        %v1713 = vadd.f32 %v1585, %v1631
        %v1714 = vadd.f32 %v1586, %v1634
        %v1715 = vadd.f32 %v1587, %v1637
        %v1716 = vadd.f32 %v1588, %v1640
        %v1717 = vadd.f32 %v1589, %v1643
        %v1718 = vadd.f32 %v1590, %v1646
        %v1719 = vadd.f32 %v1591, %v1649
        %v1720 = vadd.f32 %v1592, %v1652
        %v1721 = vadd.f32 %v1593, %v1655
        %v1722 = vadd.f32 %v1594, %v1658
        %v1723 = vadd.f32 %v1595, %v1661
        %v1724 = vadd.f32 %v1596, %v1664
        %v1725 = vadd.f32 %v1597, %v1667
        %v1726 = vadd.f32 %v1598, %v1670
        %v1727 = vadd.f32 %v1599, %v1673
        %v1728 = vadd.f32 %v1600, %v1676
        %v1729 = vadd.f32 %v1601, %v1679
        %v1730 = vadd.f32 %v1602, %v1682
        %v1731 = vadd.f32 %v1603, %v1685
        %v1732 = vadd.f32 %v1604, %v1688
        %v1733 = vadd.f32 %v1605, %v1691
        %v1734 = vadd.f32 %v1606, %v1694
        %v1735 = vadd.f32 %v1607, %v1697
        %v1736 = vadd.f32 %v1608, %v1700
        %v1737 = vadd.f32 %v1609, %v1703
        %v1738 = vadd.f32 %v1610, %v1706
        %vm1739 = vcmask 7168
        %1740 = vst.msk [vmem:[#allocation3] sm:$0xff] %vm1739, %v1707
        %1741 = vst.msk [vmem:[#allocation3 + $0x8] sm:$0xff] %vm1739, %v1708
        %1742 = vst.msk [vmem:[#allocation3 + $0x10] sm:$0xff] %vm1739, %v1709
        %1743 = vst.msk [vmem:[#allocation3 + $0x18] sm:$0xff] %vm1739, %v1710
        %1744 = vst.msk [vmem:[#allocation3 + $0x20] sm:$0xff] %vm1739, %v1711
        %1745 = vst.msk [vmem:[#allocation3 + $0x28] sm:$0xff] %vm1739, %v1712
        %1746 = vst.msk [vmem:[#allocation3 + $0x30] sm:$0xff] %vm1739, %v1713
        %1747 = vst.msk [vmem:[#allocation3 + $0x38] sm:$0xff] %vm1739, %v1714
        %1748 = vst.msk [vmem:[#allocation3 + $0x40] sm:$0xff] %vm1739, %v1715
        %1749 = vst.msk [vmem:[#allocation3 + $0x48] sm:$0xff] %vm1739, %v1716
        %1750 = vst.msk [vmem:[#allocation3 + $0x50] sm:$0xff] %vm1739, %v1717
        %1751 = vst.msk [vmem:[#allocation3 + $0x58] sm:$0xff] %vm1739, %v1718
        %1752 = vst.msk [vmem:[#allocation3 + $0x60] sm:$0xff] %vm1739, %v1719
        %1753 = vst.msk [vmem:[#allocation3 + $0x68] sm:$0xff] %vm1739, %v1720
        %1754 = vst.msk [vmem:[#allocation3 + $0x70] sm:$0xff] %vm1739, %v1721
        %1755 = vst.msk [vmem:[#allocation3 + $0x78] sm:$0xff] %vm1739, %v1722
        %1756 = vst.msk [vmem:[#allocation3 + $0x80] sm:$0xff] %vm1739, %v1723
        %1757 = vst.msk [vmem:[#allocation3 + $0x88] sm:$0xff] %vm1739, %v1724
        %1758 = vst.msk [vmem:[#allocation3 + $0x90] sm:$0xff] %vm1739, %v1725
        %1759 = vst.msk [vmem:[#allocation3 + $0x98] sm:$0xff] %vm1739, %v1726
        %1760 = vst.msk [vmem:[#allocation3 + $0xa0] sm:$0xff] %vm1739, %v1727
        %1761 = vst.msk [vmem:[#allocation3 + $0xa8] sm:$0xff] %vm1739, %v1728
        %1762 = vst.msk [vmem:[#allocation3 + $0xb0] sm:$0xff] %vm1739, %v1729
        %1763 = vst.msk [vmem:[#allocation3 + $0xb8] sm:$0xff] %vm1739, %v1730
        %1764 = vst.msk [vmem:[#allocation3 + $0xc0] sm:$0xff] %vm1739, %v1731
        %1765 = vst.msk [vmem:[#allocation3 + $0xc8] sm:$0xff] %vm1739, %v1732
        %1766 = vst.msk [vmem:[#allocation3 + $0xd0] sm:$0xff] %vm1739, %v1733
        %1767 = vst.msk [vmem:[#allocation3 + $0xd8] sm:$0xff] %vm1739, %v1734
        %1768 = vst.msk [vmem:[#allocation3 + $0xe0] sm:$0xff] %vm1739, %v1735
        %1769 = vst.msk [vmem:[#allocation3 + $0xe8] sm:$0xff] %vm1739, %v1736
        %1770 = vst.msk [vmem:[#allocation3 + $0xf0] sm:$0xff] %vm1739, %v1737
        %1771 = vst.msk [vmem:[#allocation3 + $0xf8] sm:$0xff] %vm1739, %v1738
        %v1772 = vld [vmem:[#allocation4] sm:$0xff]
        %v1773 = vld [vmem:[#allocation4 + $0x8] sm:$0xff]
        %v1774 = vld [vmem:[#allocation4 + $0x10] sm:$0xff]
        %v1775 = vld [vmem:[#allocation4 + $0x18] sm:$0xff]
        %v1776 = vld [vmem:[#allocation4 + $0x20] sm:$0xff]
        %v1777 = vld [vmem:[#allocation4 + $0x28] sm:$0xff]
        %v1778 = vld [vmem:[#allocation4 + $0x30] sm:$0xff]
        %v1779 = vld [vmem:[#allocation4 + $0x38] sm:$0xff]
        %v1780 = vld [vmem:[#allocation4 + $0x40] sm:$0xff]
        %v1781 = vld [vmem:[#allocation4 + $0x48] sm:$0xff]
        %v1782 = vld [vmem:[#allocation4 + $0x50] sm:$0xff]
        %v1783 = vld [vmem:[#allocation4 + $0x58] sm:$0xff]
        %v1784 = vld [vmem:[#allocation4 + $0x60] sm:$0xff]
        %v1785 = vld [vmem:[#allocation4 + $0x68] sm:$0xff]
        %v1786 = vld [vmem:[#allocation4 + $0x70] sm:$0xff]
        %v1787 = vld [vmem:[#allocation4 + $0x78] sm:$0xff]
        %v1788 = vld [vmem:[#allocation4 + $0x80] sm:$0xff]
        %v1789 = vld [vmem:[#allocation4 + $0x88] sm:$0xff]
        %v1790 = vld [vmem:[#allocation4 + $0x90] sm:$0xff]
        %v1791 = vld [vmem:[#allocation4 + $0x98] sm:$0xff]
        %v1792 = vld [vmem:[#allocation4 + $0xa0] sm:$0xff]
        %v1793 = vld [vmem:[#allocation4 + $0xa8] sm:$0xff]
        %v1794 = vld [vmem:[#allocation4 + $0xb0] sm:$0xff]
        %v1795 = vld [vmem:[#allocation4 + $0xb8] sm:$0xff]
        %v1796 = vld [vmem:[#allocation4 + $0xc0] sm:$0xff]
        %v1797 = vld [vmem:[#allocation4 + $0xc8] sm:$0xff]
        %v1798 = vld [vmem:[#allocation4 + $0xd0] sm:$0xff]
        %v1799 = vld [vmem:[#allocation4 + $0xd8] sm:$0xff]
        %v1800 = vld [vmem:[#allocation4 + $0xe0] sm:$0xff]
        %v1801 = vld [vmem:[#allocation4 + $0xe8] sm:$0xff]
        %v1802 = vld [vmem:[#allocation4 + $0xf0] sm:$0xff]
        %v1803 = vld [vmem:[#allocation4 + $0xf8] sm:$0xff]
        %1805 = vset.pattern.permute.xlu0 0
        %1806 = vperm.xlu0 %1805, %v1132
        %v1807 = vpop.permute.xlu0 %1806
        %1810 = vset.pattern.permute.xlu0 0
        %1811 = vperm.xlu0 %1810, %v1134
        %v1812 = vpop.permute.xlu0 %1811
        %1815 = vset.pattern.permute.xlu0 0
        %1816 = vperm.xlu0 %1815, %v1136
        %v1817 = vpop.permute.xlu0 %1816
        %1820 = vset.pattern.permute.xlu0 0
        %1821 = vperm.xlu0 %1820, %v1138
        %v1822 = vpop.permute.xlu0 %1821
        %1825 = vset.pattern.permute.xlu0 0
        %1826 = vperm.xlu0 %1825, %v1140
        %v1827 = vpop.permute.xlu0 %1826
        %1830 = vset.pattern.permute.xlu0 0
        %1831 = vperm.xlu0 %1830, %v1142
        %v1832 = vpop.permute.xlu0 %1831
        %1835 = vset.pattern.permute.xlu0 0
        %1836 = vperm.xlu0 %1835, %v1144
        %v1837 = vpop.permute.xlu0 %1836
        %1840 = vset.pattern.permute.xlu0 0
        %1841 = vperm.xlu0 %1840, %v1146
        %v1842 = vpop.permute.xlu0 %1841
        %1845 = vset.pattern.permute.xlu0 0
        %1846 = vperm.xlu0 %1845, %v1148
        %v1847 = vpop.permute.xlu0 %1846
        %1850 = vset.pattern.permute.xlu0 0
        %1851 = vperm.xlu0 %1850, %v1150
        %v1852 = vpop.permute.xlu0 %1851
        %1855 = vset.pattern.permute.xlu0 0
        %1856 = vperm.xlu0 %1855, %v1152
        %v1857 = vpop.permute.xlu0 %1856
        %1860 = vset.pattern.permute.xlu0 0
        %1861 = vperm.xlu0 %1860, %v1154
        %v1862 = vpop.permute.xlu0 %1861
        %1865 = vset.pattern.permute.xlu0 0
        %1866 = vperm.xlu0 %1865, %v1156
        %v1867 = vpop.permute.xlu0 %1866
        %1870 = vset.pattern.permute.xlu0 0
        %1871 = vperm.xlu0 %1870, %v1158
        %v1872 = vpop.permute.xlu0 %1871
        %1875 = vset.pattern.permute.xlu0 0
        %1876 = vperm.xlu0 %1875, %v1160
        %v1877 = vpop.permute.xlu0 %1876
        %1880 = vset.pattern.permute.xlu0 0
        %1881 = vperm.xlu0 %1880, %v1162
        %v1882 = vpop.permute.xlu0 %1881
        %1885 = vset.pattern.permute.xlu0 0
        %1886 = vperm.xlu0 %1885, %v1164
        %v1887 = vpop.permute.xlu0 %1886
        %1890 = vset.pattern.permute.xlu0 0
        %1891 = vperm.xlu0 %1890, %v1166
        %v1892 = vpop.permute.xlu0 %1891
        %1895 = vset.pattern.permute.xlu0 0
        %1896 = vperm.xlu0 %1895, %v1168
        %v1897 = vpop.permute.xlu0 %1896
        %1900 = vset.pattern.permute.xlu0 0
        %1901 = vperm.xlu0 %1900, %v1170
        %v1902 = vpop.permute.xlu0 %1901
        %1905 = vset.pattern.permute.xlu0 0
        %1906 = vperm.xlu0 %1905, %v1172
        %v1907 = vpop.permute.xlu0 %1906
        %1910 = vset.pattern.permute.xlu0 0
        %1911 = vperm.xlu0 %1910, %v1174
        %v1912 = vpop.permute.xlu0 %1911
        %1915 = vset.pattern.permute.xlu0 0
        %1916 = vperm.xlu0 %1915, %v1176
        %v1917 = vpop.permute.xlu0 %1916
        %1920 = vset.pattern.permute.xlu0 0
        %1921 = vperm.xlu0 %1920, %v1178
        %v1922 = vpop.permute.xlu0 %1921
        %1925 = vset.pattern.permute.xlu0 0
        %1926 = vperm.xlu0 %1925, %v1180
        %v1927 = vpop.permute.xlu0 %1926
        %1930 = vset.pattern.permute.xlu0 0
        %1931 = vperm.xlu0 %1930, %v1182
        %v1932 = vpop.permute.xlu0 %1931
        %1935 = vset.pattern.permute.xlu0 0
        %1936 = vperm.xlu0 %1935, %v1184
        %v1937 = vpop.permute.xlu0 %1936
        %1940 = vset.pattern.permute.xlu0 0
        %1941 = vperm.xlu0 %1940, %v1186
        %v1942 = vpop.permute.xlu0 %1941
        %1945 = vset.pattern.permute.xlu0 0
        %1946 = vperm.xlu0 %1945, %v1188
        %v1947 = vpop.permute.xlu0 %1946
        %1950 = vset.pattern.permute.xlu0 0
        %1951 = vperm.xlu0 %1950, %v1190
        %v1952 = vpop.permute.xlu0 %1951
        %1955 = vset.pattern.permute.xlu0 0
        %1956 = vperm.xlu0 %1955, %v1192
        %v1957 = vpop.permute.xlu0 %1956
        %1960 = vset.pattern.permute.xlu0 0
        %1961 = vperm.xlu0 %1960, %v1194
        %v1962 = vpop.permute.xlu0 %1961
        %v1964 = vmul.f32 %v1807, %v1772
        %v1965 = vmul.f32 %v1812, %v1773
        %v1966 = vmul.f32 %v1817, %v1774
        %v1967 = vmul.f32 %v1822, %v1775
        %v1968 = vmul.f32 %v1827, %v1776
        %v1969 = vmul.f32 %v1832, %v1777
        %v1970 = vmul.f32 %v1837, %v1778
        %v1971 = vmul.f32 %v1842, %v1779
        %v1972 = vmul.f32 %v1847, %v1780
        %v1973 = vmul.f32 %v1852, %v1781
        %v1974 = vmul.f32 %v1857, %v1782
        %v1975 = vmul.f32 %v1862, %v1783
        %v1976 = vmul.f32 %v1867, %v1784
        %v1977 = vmul.f32 %v1872, %v1785
        %v1978 = vmul.f32 %v1877, %v1786
        %v1979 = vmul.f32 %v1882, %v1787
        %v1980 = vmul.f32 %v1887, %v1788
        %v1981 = vmul.f32 %v1892, %v1789
        %v1982 = vmul.f32 %v1897, %v1790
        %v1983 = vmul.f32 %v1902, %v1791
        %v1984 = vmul.f32 %v1907, %v1792
        %v1985 = vmul.f32 %v1912, %v1793
        %v1986 = vmul.f32 %v1917, %v1794
        %v1987 = vmul.f32 %v1922, %v1795
        %v1988 = vmul.f32 %v1927, %v1796
        %v1989 = vmul.f32 %v1932, %v1797
        %v1990 = vmul.f32 %v1937, %v1798
        %v1991 = vmul.f32 %v1942, %v1799
        %v1992 = vmul.f32 %v1947, %v1800
        %v1993 = vmul.f32 %v1952, %v1801
        %v1994 = vmul.f32 %v1957, %v1802
        %v1995 = vmul.f32 %v1962, %v1803
        %v1996 = vpack.c.bf16 %v1424, %v1420
        %v1997 = vpack.c.bf16 %v1426, %v1422
        %v1998 = vpack.c.bf16 %v1432, %v1428
        %v1999 = vpack.c.bf16 %v1434, %v1430
        %v2000 = vpack.c.bf16 %v1440, %v1436
        %v2001 = vpack.c.bf16 %v1442, %v1438
        %v2002 = vpack.c.bf16 %v1448, %v1444
        %v2003 = vpack.c.bf16 %v1450, %v1446
        %v2004 = vpack.c.bf16 %v1456, %v1452
        %v2005 = vpack.c.bf16 %v1458, %v1454
        %v2006 = vpack.c.bf16 %v1464, %v1460
        %v2007 = vpack.c.bf16 %v1466, %v1462
        %v2008 = vpack.c.bf16 %v1472, %v1468
        %v2009 = vpack.c.bf16 %v1474, %v1470
        %v2010 = vpack.c.bf16 %v1480, %v1476
        %v2011 = vpack.c.bf16 %v1482, %v1478
        %v2012 = vpack.c.bf16 %v1488, %v1484
        %v2013 = vpack.c.bf16 %v1490, %v1486
        %v2014 = vpack.c.bf16 %v1496, %v1492
        %v2015 = vpack.c.bf16 %v1498, %v1494
        %v2016 = vpack.c.bf16 %v1504, %v1500
        %v2017 = vpack.c.bf16 %v1506, %v1502
        %v2018 = vpack.c.bf16 %v1512, %v1508
        %v2019 = vpack.c.bf16 %v1514, %v1510
        %v2020 = vpack.c.bf16 %v1520, %v1516
        %v2021 = vpack.c.bf16 %v1522, %v1518
        %v2022 = vpack.c.bf16 %v1528, %v1524
        %v2023 = vpack.c.bf16 %v1530, %v1526
        %v2024 = vpack.c.bf16 %v1536, %v1532
        %v2025 = vpack.c.bf16 %v1538, %v1534
        %v2026 = vpack.c.bf16 %v1544, %v1540
        %v2027 = vpack.c.bf16 %v1546, %v1542
        %v2060 = vunpack.c.l.b16 %v565
        %v2061 = vunpack.c.l.b16 %v566
        %v2062 = vunpack.c.l.b16 %v567
        %v2063 = vunpack.c.l.b16 %v568
        %v2064 = vunpack.c.l.b16 %v569
        %v2065 = vunpack.c.l.b16 %v570
        %v2066 = vunpack.c.l.b16 %v571
        %v2067 = vunpack.c.l.b16 %v572
        %v2068 = vunpack.c.l.b16 %v573
        %v2069 = vunpack.c.l.b16 %v574
        %v2070 = vunpack.c.l.b16 %v575
        %v2071 = vunpack.c.l.b16 %v576
        %v2072 = vunpack.c.l.b16 %v577
        %v2073 = vunpack.c.l.b16 %v578
        %v2074 = vunpack.c.l.b16 %v579
        %v2075 = vunpack.c.l.b16 %v580
        %v2076 = vunpack.c.l.b16 %v581
        %v2077 = vunpack.c.l.b16 %v582
        %v2078 = vunpack.c.l.b16 %v583
        %v2079 = vunpack.c.l.b16 %v584
        %v2080 = vunpack.c.l.b16 %v585
        %v2081 = vunpack.c.l.b16 %v586
        %v2082 = vunpack.c.l.b16 %v587
        %v2083 = vunpack.c.l.b16 %v588
        %v2084 = vunpack.c.l.b16 %v589
        %v2085 = vunpack.c.l.b16 %v590
        %v2086 = vunpack.c.l.b16 %v591
        %v2087 = vunpack.c.l.b16 %v592
        %v2088 = vunpack.c.l.b16 %v593
        %v2089 = vunpack.c.l.b16 %v594
        %v2090 = vunpack.c.l.b16 %v595
        %v2091 = vunpack.c.l.b16 %v596
        %v2092 = vpack.c.b16 %v2061, %v2060
        %v2093 = vpack.c.b16 %v2063, %v2062
        %v2094 = vpack.c.b16 %v2065, %v2064
        %v2095 = vpack.c.b16 %v2067, %v2066
        %v2096 = vpack.c.b16 %v2069, %v2068
        %v2097 = vpack.c.b16 %v2071, %v2070
        %v2098 = vpack.c.b16 %v2073, %v2072
        %v2099 = vpack.c.b16 %v2075, %v2074
        %v2100 = vpack.c.b16 %v2077, %v2076
        %v2101 = vpack.c.b16 %v2079, %v2078
        %v2102 = vpack.c.b16 %v2081, %v2080
        %v2103 = vpack.c.b16 %v2083, %v2082
        %v2104 = vpack.c.b16 %v2085, %v2084
        %v2105 = vpack.c.b16 %v2087, %v2086
        %v2106 = vpack.c.b16 %v2089, %v2088
        %v2107 = vpack.c.b16 %v2091, %v2090
        %2124 = vmatprep.subr.bf16.mxu0 0
        %2125 = vmatpush1.bf16.msra.mxu0 %v2092
        %2126 = vmatprep.subr.bf16.mxu0 0
        %2127 = vmatpush1.bf16.msra.mxu0 %v2093
        %2128 = vmatprep.subr.bf16.mxu0 0
        %2129 = vmatpush1.bf16.msra.mxu0 %v2094
        %2130 = vmatprep.subr.bf16.mxu0 0
        %2131 = vmatpush1.bf16.msra.mxu0 %v2095
        %2132 = vmatprep.subr.bf16.mxu0 0
        %2133 = vmatpush1.bf16.msra.mxu0 %v2096
        %2134 = vmatprep.subr.bf16.mxu0 0
        %2135 = vmatpush1.bf16.msra.mxu0 %v2097
        %2136 = vmatprep.subr.bf16.mxu0 0
        %2137 = vmatpush1.bf16.msra.mxu0 %v2098
        %2138 = vmatprep.subr.bf16.mxu0 0
        %2139 = vmatpush1.bf16.msra.mxu0 %v2099
        %2140 = vmatprep.subr.bf16.mxu0 0
        %2141 = vmatpush1.bf16.msra.mxu0 %v2100
        %2142 = vmatprep.subr.bf16.mxu0 0
        %2143 = vmatpush1.bf16.msra.mxu0 %v2101
        %2144 = vmatprep.subr.bf16.mxu0 0
        %2145 = vmatpush1.bf16.msra.mxu0 %v2102
        %2146 = vmatprep.subr.bf16.mxu0 0
        %2147 = vmatpush1.bf16.msra.mxu0 %v2103
        %2148 = vmatprep.subr.bf16.mxu0 0
        %2149 = vmatpush1.bf16.msra.mxu0 %v2104
        %2150 = vmatprep.subr.bf16.mxu0 0
        %2151 = vmatpush1.bf16.msra.mxu0 %v2105
        %2152 = vmatprep.subr.bf16.mxu0 0
        %2153 = vmatpush1.bf16.msra.mxu0 %v2106
        %2154 = vmatprep.subr.bf16.mxu0 0
        %2155 = vmatpush1.bf16.msra.mxu0 %v2107
        %2156 = vmatprep.mubr.bf16.mxu0 %v1997
        %2157 = vmatmul.mubr.bf16.gmra.mrb[0].mxu0 %v1996
        %v2158 = vpop.f32.mrb[0].mxu0
        %v2159 = vadd.f32 0.0, %v2158
        %v2160 = vpop.f32.mrb[0].mxu0
        %v2161 = vpop.f32.mrb[0].mxu0
        %v2162 = vadd.f32 0.0, %v2161
        %v2163 = vpop.f32.mrb[0].mxu0
        %2164 = vmatprep.mubr.bf16.mxu0 %v1999
        %2165 = vmatmul.mubr.bf16.gmra.mrb[0].mxu0 %v1998
        %v2166 = vpop.f32.mrb[0].mxu0
        %v2167 = vadd.f32 0.0, %v2166
        %v2168 = vpop.f32.mrb[0].mxu0
        %v2169 = vpop.f32.mrb[0].mxu0
        %v2170 = vadd.f32 0.0, %v2169
        %v2171 = vpop.f32.mrb[0].mxu0
        %2172 = vmatprep.mubr.bf16.mxu0 %v2001
        %2173 = vmatmul.mubr.bf16.gmra.mrb[0].mxu0 %v2000
        %v2174 = vpop.f32.mrb[0].mxu0
        %v2175 = vadd.f32 0.0, %v2174
        %v2176 = vpop.f32.mrb[0].mxu0
        %v2177 = vpop.f32.mrb[0].mxu0
        %v2178 = vadd.f32 0.0, %v2177
        %v2179 = vpop.f32.mrb[0].mxu0
        %2180 = vmatprep.mubr.bf16.mxu0 %v2003
        %2181 = vmatmul.mubr.bf16.gmra.mrb[0].mxu0 %v2002
        %v2182 = vpop.f32.mrb[0].mxu0
        %v2183 = vadd.f32 0.0, %v2182
        %v2184 = vpop.f32.mrb[0].mxu0
        %v2185 = vpop.f32.mrb[0].mxu0
        %v2186 = vadd.f32 0.0, %v2185
        %v2187 = vpop.f32.mrb[0].mxu0
        %2188 = vmatprep.mubr.bf16.mxu0 %v2005
        %2189 = vmatmul.mubr.bf16.gmra.mrb[0].mxu0 %v2004
        %v2190 = vpop.f32.mrb[0].mxu0
        %v2191 = vadd.f32 0.0, %v2190
        %v2192 = vpop.f32.mrb[0].mxu0
        %v2193 = vpop.f32.mrb[0].mxu0
        %v2194 = vadd.f32 0.0, %v2193
        %v2195 = vpop.f32.mrb[0].mxu0
        %2196 = vmatprep.mubr.bf16.mxu0 %v2007
        %2197 = vmatmul.mubr.bf16.gmra.mrb[0].mxu0 %v2006
        %v2198 = vpop.f32.mrb[0].mxu0
        %v2199 = vadd.f32 0.0, %v2198
        %v2200 = vpop.f32.mrb[0].mxu0
        %v2201 = vpop.f32.mrb[0].mxu0
        %v2202 = vadd.f32 0.0, %v2201
        %v2203 = vpop.f32.mrb[0].mxu0
        %2204 = vmatprep.mubr.bf16.mxu0 %v2009
        %2205 = vmatmul.mubr.bf16.gmra.mrb[0].mxu0 %v2008
        %v2206 = vpop.f32.mrb[0].mxu0
        %v2207 = vadd.f32 0.0, %v2206
        %v2208 = vpop.f32.mrb[0].mxu0
        %v2209 = vpop.f32.mrb[0].mxu0
        %v2210 = vadd.f32 0.0, %v2209
        %v2211 = vpop.f32.mrb[0].mxu0
        %2212 = vmatprep.mubr.bf16.mxu0 %v2011
        %2213 = vmatmul.mubr.bf16.gmra.mrb[0].mxu0 %v2010
        %v2214 = vpop.f32.mrb[0].mxu0
        %v2215 = vadd.f32 0.0, %v2214
        %v2216 = vpop.f32.mrb[0].mxu0
        %v2217 = vpop.f32.mrb[0].mxu0
        %v2218 = vadd.f32 0.0, %v2217
        %v2219 = vpop.f32.mrb[0].mxu0
        %2220 = vmatprep.mubr.bf16.mxu0 %v2013
        %2221 = vmatmul.mubr.bf16.gmra.mrb[0].mxu0 %v2012
        %v2222 = vpop.f32.mrb[0].mxu0
        %v2223 = vadd.f32 0.0, %v2222
        %v2224 = vpop.f32.mrb[0].mxu0
        %v2225 = vpop.f32.mrb[0].mxu0
        %v2226 = vadd.f32 0.0, %v2225
        %v2227 = vpop.f32.mrb[0].mxu0
        %2228 = vmatprep.mubr.bf16.mxu0 %v2015
        %2229 = vmatmul.mubr.bf16.gmra.mrb[0].mxu0 %v2014
        %v2230 = vpop.f32.mrb[0].mxu0
        %v2231 = vadd.f32 0.0, %v2230
        %v2232 = vpop.f32.mrb[0].mxu0
        %v2233 = vpop.f32.mrb[0].mxu0
        %v2234 = vadd.f32 0.0, %v2233
        %v2235 = vpop.f32.mrb[0].mxu0
        %2236 = vmatprep.mubr.bf16.mxu0 %v2017
        %2237 = vmatmul.mubr.bf16.gmra.mrb[0].mxu0 %v2016
        %v2238 = vpop.f32.mrb[0].mxu0
        %v2239 = vadd.f32 0.0, %v2238
        %v2240 = vpop.f32.mrb[0].mxu0
        %v2241 = vpop.f32.mrb[0].mxu0
        %v2242 = vadd.f32 0.0, %v2241
        %v2243 = vpop.f32.mrb[0].mxu0
        %2244 = vmatprep.mubr.bf16.mxu0 %v2019
        %2245 = vmatmul.mubr.bf16.gmra.mrb[0].mxu0 %v2018
        %v2246 = vpop.f32.mrb[0].mxu0
        %v2247 = vadd.f32 0.0, %v2246
        %v2248 = vpop.f32.mrb[0].mxu0
        %v2249 = vpop.f32.mrb[0].mxu0
        %v2250 = vadd.f32 0.0, %v2249
        %v2251 = vpop.f32.mrb[0].mxu0
        %2252 = vmatprep.mubr.bf16.mxu0 %v2021
        %2253 = vmatmul.mubr.bf16.gmra.mrb[0].mxu0 %v2020
        %v2254 = vpop.f32.mrb[0].mxu0
        %v2255 = vadd.f32 0.0, %v2254
        %v2256 = vpop.f32.mrb[0].mxu0
        %v2257 = vpop.f32.mrb[0].mxu0
        %v2258 = vadd.f32 0.0, %v2257
        %v2259 = vpop.f32.mrb[0].mxu0
        %2260 = vmatprep.mubr.bf16.mxu0 %v2023
        %2261 = vmatmul.mubr.bf16.gmra.mrb[0].mxu0 %v2022
        %v2262 = vpop.f32.mrb[0].mxu0
        %v2263 = vadd.f32 0.0, %v2262
        %v2264 = vpop.f32.mrb[0].mxu0
        %v2265 = vpop.f32.mrb[0].mxu0
        %v2266 = vadd.f32 0.0, %v2265
        %v2267 = vpop.f32.mrb[0].mxu0
        %2268 = vmatprep.mubr.bf16.mxu0 %v2025
        %2269 = vmatmul.mubr.bf16.gmra.mrb[0].mxu0 %v2024
        %v2270 = vpop.f32.mrb[0].mxu0
        %v2271 = vadd.f32 0.0, %v2270
        %v2272 = vpop.f32.mrb[0].mxu0
        %v2273 = vpop.f32.mrb[0].mxu0
        %v2274 = vadd.f32 0.0, %v2273
        %v2275 = vpop.f32.mrb[0].mxu0
        %2276 = vmatprep.mubr.bf16.mxu0 %v2027
        %2277 = vmatmul.mubr.bf16.gmra.mrb[0].mxu0 %v2026
        %v2278 = vpop.f32.mrb[0].mxu0
        %v2279 = vadd.f32 0.0, %v2278
        %v2280 = vpop.f32.mrb[0].mxu0
        %v2281 = vpop.f32.mrb[0].mxu0
        %v2282 = vadd.f32 0.0, %v2281
        %v2283 = vpop.f32.mrb[0].mxu0
        %2284 = vdwg.mxu0
        %v2285 = vadd.f32 %v1964, %v2159
        %v2286 = vadd.f32 %v1965, %v2162
        %v2287 = vadd.f32 %v1966, %v2167
        %v2288 = vadd.f32 %v1967, %v2170
        %v2289 = vadd.f32 %v1968, %v2175
        %v2290 = vadd.f32 %v1969, %v2178
        %v2291 = vadd.f32 %v1970, %v2183
        %v2292 = vadd.f32 %v1971, %v2186
        %v2293 = vadd.f32 %v1972, %v2191
        %v2294 = vadd.f32 %v1973, %v2194
        %v2295 = vadd.f32 %v1974, %v2199
        %v2296 = vadd.f32 %v1975, %v2202
        %v2297 = vadd.f32 %v1976, %v2207
        %v2298 = vadd.f32 %v1977, %v2210
        %v2299 = vadd.f32 %v1978, %v2215
        %v2300 = vadd.f32 %v1979, %v2218
        %v2301 = vadd.f32 %v1980, %v2223
        %v2302 = vadd.f32 %v1981, %v2226
        %v2303 = vadd.f32 %v1982, %v2231
        %v2304 = vadd.f32 %v1983, %v2234
        %v2305 = vadd.f32 %v1984, %v2239
        %v2306 = vadd.f32 %v1985, %v2242
        %v2307 = vadd.f32 %v1986, %v2247
        %v2308 = vadd.f32 %v1987, %v2250
        %v2309 = vadd.f32 %v1988, %v2255
        %v2310 = vadd.f32 %v1989, %v2258
        %v2311 = vadd.f32 %v1990, %v2263
        %v2312 = vadd.f32 %v1991, %v2266
        %v2313 = vadd.f32 %v1992, %v2271
        %v2314 = vadd.f32 %v1993, %v2274
        %v2315 = vadd.f32 %v1994, %v2279
        %v2316 = vadd.f32 %v1995, %v2282
        %2317 = vst.msk [vmem:[#allocation4] sm:$0xff] %vm697, %v2285
        %2318 = vst.msk [vmem:[#allocation4 + $0x8] sm:$0xff] %vm697, %v2286
        %2319 = vst.msk [vmem:[#allocation4 + $0x10] sm:$0xff] %vm697, %v2287
        %2320 = vst.msk [vmem:[#allocation4 + $0x18] sm:$0xff] %vm697, %v2288
        %2321 = vst.msk [vmem:[#allocation4 + $0x20] sm:$0xff] %vm697, %v2289
        %2322 = vst.msk [vmem:[#allocation4 + $0x28] sm:$0xff] %vm697, %v2290
        %2323 = vst.msk [vmem:[#allocation4 + $0x30] sm:$0xff] %vm697, %v2291
        %2324 = vst.msk [vmem:[#allocation4 + $0x38] sm:$0xff] %vm697, %v2292
        %2325 = vst.msk [vmem:[#allocation4 + $0x40] sm:$0xff] %vm697, %v2293
        %2326 = vst.msk [vmem:[#allocation4 + $0x48] sm:$0xff] %vm697, %v2294
        %2327 = vst.msk [vmem:[#allocation4 + $0x50] sm:$0xff] %vm697, %v2295
        %2328 = vst.msk [vmem:[#allocation4 + $0x58] sm:$0xff] %vm697, %v2296
        %2329 = vst.msk [vmem:[#allocation4 + $0x60] sm:$0xff] %vm697, %v2297
        %2330 = vst.msk [vmem:[#allocation4 + $0x68] sm:$0xff] %vm697, %v2298
        %2331 = vst.msk [vmem:[#allocation4 + $0x70] sm:$0xff] %vm697, %v2299
        %2332 = vst.msk [vmem:[#allocation4 + $0x78] sm:$0xff] %vm697, %v2300
        %2333 = vst.msk [vmem:[#allocation4 + $0x80] sm:$0xff] %vm697, %v2301
        %2334 = vst.msk [vmem:[#allocation4 + $0x88] sm:$0xff] %vm697, %v2302
        %2335 = vst.msk [vmem:[#allocation4 + $0x90] sm:$0xff] %vm697, %v2303
        %2336 = vst.msk [vmem:[#allocation4 + $0x98] sm:$0xff] %vm697, %v2304
        %2337 = vst.msk [vmem:[#allocation4 + $0xa0] sm:$0xff] %vm697, %v2305
        %2338 = vst.msk [vmem:[#allocation4 + $0xa8] sm:$0xff] %vm697, %v2306
        %2339 = vst.msk [vmem:[#allocation4 + $0xb0] sm:$0xff] %vm697, %v2307
        %2340 = vst.msk [vmem:[#allocation4 + $0xb8] sm:$0xff] %vm697, %v2308
        %2341 = vst.msk [vmem:[#allocation4 + $0xc0] sm:$0xff] %vm697, %v2309
        %2342 = vst.msk [vmem:[#allocation4 + $0xc8] sm:$0xff] %vm697, %v2310
        %2343 = vst.msk [vmem:[#allocation4 + $0xd0] sm:$0xff] %vm697, %v2311
        %2344 = vst.msk [vmem:[#allocation4 + $0xd8] sm:$0xff] %vm697, %v2312
        %2345 = vst.msk [vmem:[#allocation4 + $0xe0] sm:$0xff] %vm697, %v2313
        %2346 = vst.msk [vmem:[#allocation4 + $0xe8] sm:$0xff] %vm697, %v2314
        %2347 = vst.msk [vmem:[#allocation4 + $0xf0] sm:$0xff] %vm697, %v2315
        %2348 = vst.msk [vmem:[#allocation4 + $0xf8] sm:$0xff] %vm697, %v2316
        %2349 = vst.msk [vmem:[#allocation2] sm:$0xff] %vm1739, %v1067
        %2350 = vst.msk [vmem:[#allocation2 + $0x8] sm:$0xff] %vm1739, %v1068
        %2351 = vst.msk [vmem:[#allocation2 + $0x10] sm:$0xff] %vm1739, %v1069
        %2352 = vst.msk [vmem:[#allocation2 + $0x18] sm:$0xff] %vm1739, %v1070
        %2353 = vst.msk [vmem:[#allocation2 + $0x20] sm:$0xff] %vm1739, %v1071
        %2354 = vst.msk [vmem:[#allocation2 + $0x28] sm:$0xff] %vm1739, %v1072
        %2355 = vst.msk [vmem:[#allocation2 + $0x30] sm:$0xff] %vm1739, %v1073
        %2356 = vst.msk [vmem:[#allocation2 + $0x38] sm:$0xff] %vm1739, %v1074
        %2357 = vst.msk [vmem:[#allocation2 + $0x40] sm:$0xff] %vm1739, %v1075
        %2358 = vst.msk [vmem:[#allocation2 + $0x48] sm:$0xff] %vm1739, %v1076
        %2359 = vst.msk [vmem:[#allocation2 + $0x50] sm:$0xff] %vm1739, %v1077
        %2360 = vst.msk [vmem:[#allocation2 + $0x58] sm:$0xff] %vm1739, %v1078
        %2361 = vst.msk [vmem:[#allocation2 + $0x60] sm:$0xff] %vm1739, %v1079
        %2362 = vst.msk [vmem:[#allocation2 + $0x68] sm:$0xff] %vm1739, %v1080
        %2363 = vst.msk [vmem:[#allocation2 + $0x70] sm:$0xff] %vm1739, %v1081
        %2364 = vst.msk [vmem:[#allocation2 + $0x78] sm:$0xff] %vm1739, %v1082
        %2365 = vst.msk [vmem:[#allocation2 + $0x80] sm:$0xff] %vm1739, %v1083
        %2366 = vst.msk [vmem:[#allocation2 + $0x88] sm:$0xff] %vm1739, %v1084
        %2367 = vst.msk [vmem:[#allocation2 + $0x90] sm:$0xff] %vm1739, %v1085
        %2368 = vst.msk [vmem:[#allocation2 + $0x98] sm:$0xff] %vm1739, %v1086
        %2369 = vst.msk [vmem:[#allocation2 + $0xa0] sm:$0xff] %vm1739, %v1087
        %2370 = vst.msk [vmem:[#allocation2 + $0xa8] sm:$0xff] %vm1739, %v1088
        %2371 = vst.msk [vmem:[#allocation2 + $0xb0] sm:$0xff] %vm1739, %v1089
        %2372 = vst.msk [vmem:[#allocation2 + $0xb8] sm:$0xff] %vm1739, %v1090
        %2373 = vst.msk [vmem:[#allocation2 + $0xc0] sm:$0xff] %vm1739, %v1091
        %2374 = vst.msk [vmem:[#allocation2 + $0xc8] sm:$0xff] %vm1739, %v1092
        %2375 = vst.msk [vmem:[#allocation2 + $0xd0] sm:$0xff] %vm1739, %v1093
        %2376 = vst.msk [vmem:[#allocation2 + $0xd8] sm:$0xff] %vm1739, %v1094
        %2377 = vst.msk [vmem:[#allocation2 + $0xe0] sm:$0xff] %vm1739, %v1095
        %2378 = vst.msk [vmem:[#allocation2 + $0xe8] sm:$0xff] %vm1739, %v1096
        %2379 = vst.msk [vmem:[#allocation2 + $0xf0] sm:$0xff] %vm1739, %v1097
        %2380 = vst.msk [vmem:[#allocation2 + $0xf8] sm:$0xff] %vm1739, %v1098
        // Predicated region
        $region49: #{tpu_custom_call.1} parent=39 // pred_check
          %p2381 = pneg %p384
        $region50: #{tpu_custom_call.1} parent=39 // pred_check_branch
          %2383 = sbr.rel (%p2381) target = $region52
        $region51: #{tpu_custom_call.1} parent=39 // pred_region
          %v2384 = vld [vmem:[#allocation4] sm:$0xff]
          %v2385 = vld [vmem:[#allocation4 + $0x8] sm:$0xff]
          %v2386 = vld [vmem:[#allocation4 + $0x10] sm:$0xff]
          %v2387 = vld [vmem:[#allocation4 + $0x18] sm:$0xff]
          %v2388 = vld [vmem:[#allocation4 + $0x20] sm:$0xff]
          %v2389 = vld [vmem:[#allocation4 + $0x28] sm:$0xff]
          %v2390 = vld [vmem:[#allocation4 + $0x30] sm:$0xff]
          %v2391 = vld [vmem:[#allocation4 + $0x38] sm:$0xff]
          %v2392 = vld [vmem:[#allocation4 + $0x40] sm:$0xff]
          %v2393 = vld [vmem:[#allocation4 + $0x48] sm:$0xff]
          %v2394 = vld [vmem:[#allocation4 + $0x50] sm:$0xff]
          %v2395 = vld [vmem:[#allocation4 + $0x58] sm:$0xff]
          %v2396 = vld [vmem:[#allocation4 + $0x60] sm:$0xff]
          %v2397 = vld [vmem:[#allocation4 + $0x68] sm:$0xff]
          %v2398 = vld [vmem:[#allocation4 + $0x70] sm:$0xff]
          %v2399 = vld [vmem:[#allocation4 + $0x78] sm:$0xff]
          %v2400 = vld [vmem:[#allocation4 + $0x80] sm:$0xff]
          %v2401 = vld [vmem:[#allocation4 + $0x88] sm:$0xff]
          %v2402 = vld [vmem:[#allocation4 + $0x90] sm:$0xff]
          %v2403 = vld [vmem:[#allocation4 + $0x98] sm:$0xff]
          %v2404 = vld [vmem:[#allocation4 + $0xa0] sm:$0xff]
          %v2405 = vld [vmem:[#allocation4 + $0xa8] sm:$0xff]
          %v2406 = vld [vmem:[#allocation4 + $0xb0] sm:$0xff]
          %v2407 = vld [vmem:[#allocation4 + $0xb8] sm:$0xff]
          %v2408 = vld [vmem:[#allocation4 + $0xc0] sm:$0xff]
          %v2409 = vld [vmem:[#allocation4 + $0xc8] sm:$0xff]
          %v2410 = vld [vmem:[#allocation4 + $0xd0] sm:$0xff]
          %v2411 = vld [vmem:[#allocation4 + $0xd8] sm:$0xff]
          %v2412 = vld [vmem:[#allocation4 + $0xe0] sm:$0xff]
          %v2413 = vld [vmem:[#allocation4 + $0xe8] sm:$0xff]
          %v2414 = vld [vmem:[#allocation4 + $0xf0] sm:$0xff]
          %v2415 = vld [vmem:[#allocation4 + $0xf8] sm:$0xff]
          %v2416 = vld [vmem:[#allocation3] sm:$0xff]
          %v2417 = vld [vmem:[#allocation3 + $0x8] sm:$0xff]
          %v2418 = vld [vmem:[#allocation3 + $0x10] sm:$0xff]
          %v2419 = vld [vmem:[#allocation3 + $0x18] sm:$0xff]
          %v2420 = vld [vmem:[#allocation3 + $0x20] sm:$0xff]
          %v2421 = vld [vmem:[#allocation3 + $0x28] sm:$0xff]
          %v2422 = vld [vmem:[#allocation3 + $0x30] sm:$0xff]
          %v2423 = vld [vmem:[#allocation3 + $0x38] sm:$0xff]
          %v2424 = vld [vmem:[#allocation3 + $0x40] sm:$0xff]
          %v2425 = vld [vmem:[#allocation3 + $0x48] sm:$0xff]
          %v2426 = vld [vmem:[#allocation3 + $0x50] sm:$0xff]
          %v2427 = vld [vmem:[#allocation3 + $0x58] sm:$0xff]
          %v2428 = vld [vmem:[#allocation3 + $0x60] sm:$0xff]
          %v2429 = vld [vmem:[#allocation3 + $0x68] sm:$0xff]
          %v2430 = vld [vmem:[#allocation3 + $0x70] sm:$0xff]
          %v2431 = vld [vmem:[#allocation3 + $0x78] sm:$0xff]
          %v2432 = vld [vmem:[#allocation3 + $0x80] sm:$0xff]
          %v2433 = vld [vmem:[#allocation3 + $0x88] sm:$0xff]
          %v2434 = vld [vmem:[#allocation3 + $0x90] sm:$0xff]
          %v2435 = vld [vmem:[#allocation3 + $0x98] sm:$0xff]
          %v2436 = vld [vmem:[#allocation3 + $0xa0] sm:$0xff]
          %v2437 = vld [vmem:[#allocation3 + $0xa8] sm:$0xff]
          %v2438 = vld [vmem:[#allocation3 + $0xb0] sm:$0xff]
          %v2439 = vld [vmem:[#allocation3 + $0xb8] sm:$0xff]
          %v2440 = vld [vmem:[#allocation3 + $0xc0] sm:$0xff]
          %v2441 = vld [vmem:[#allocation3 + $0xc8] sm:$0xff]
          %v2442 = vld [vmem:[#allocation3 + $0xd0] sm:$0xff]
          %v2443 = vld [vmem:[#allocation3 + $0xd8] sm:$0xff]
          %v2444 = vld [vmem:[#allocation3 + $0xe0] sm:$0xff]
          %v2445 = vld [vmem:[#allocation3 + $0xe8] sm:$0xff]
          %v2446 = vld [vmem:[#allocation3 + $0xf0] sm:$0xff]
          %v2447 = vld [vmem:[#allocation3 + $0xf8] sm:$0xff]
          %v2448 = vrcp.pop %v2416
          %v2449 = vrcp.pop %v2417
          %v2450 = vrcp.pop %v2418
          %v2451 = vrcp.pop %v2419
          %v2452 = vrcp.pop %v2420
          %v2453 = vrcp.pop %v2421
          %v2454 = vrcp.pop %v2422
          %v2455 = vrcp.pop %v2423
          %v2456 = vrcp.pop %v2424
          %v2457 = vrcp.pop %v2425
          %v2458 = vrcp.pop %v2426
          %v2459 = vrcp.pop %v2427
          %v2460 = vrcp.pop %v2428
          %v2461 = vrcp.pop %v2429
          %v2462 = vrcp.pop %v2430
          %v2463 = vrcp.pop %v2431
          %v2464 = vrcp.pop %v2432
          %v2465 = vrcp.pop %v2433
          %v2466 = vrcp.pop %v2434
          %v2467 = vrcp.pop %v2435
          %v2468 = vrcp.pop %v2436
          %v2469 = vrcp.pop %v2437
          %v2470 = vrcp.pop %v2438
          %v2471 = vrcp.pop %v2439
          %v2472 = vrcp.pop %v2440
          %v2473 = vrcp.pop %v2441
          %v2474 = vrcp.pop %v2442
          %v2475 = vrcp.pop %v2443
          %v2476 = vrcp.pop %v2444
          %v2477 = vrcp.pop %v2445
          %v2478 = vrcp.pop %v2446
          %v2479 = vrcp.pop %v2447
          %2481 = vset.pattern.permute.xlu0 0
          %2482 = vperm.xlu0 %2481, %v2448
          %v2483 = vpop.permute.xlu0 %2482
          %2486 = vset.pattern.permute.xlu0 0
          %2487 = vperm.xlu0 %2486, %v2449
          %v2488 = vpop.permute.xlu0 %2487
          %2491 = vset.pattern.permute.xlu0 0
          %2492 = vperm.xlu0 %2491, %v2450
          %v2493 = vpop.permute.xlu0 %2492
          %2496 = vset.pattern.permute.xlu0 0
          %2497 = vperm.xlu0 %2496, %v2451
          %v2498 = vpop.permute.xlu0 %2497
          %2501 = vset.pattern.permute.xlu0 0
          %2502 = vperm.xlu0 %2501, %v2452
          %v2503 = vpop.permute.xlu0 %2502
          %2506 = vset.pattern.permute.xlu0 0
          %2507 = vperm.xlu0 %2506, %v2453
          %v2508 = vpop.permute.xlu0 %2507
          %2511 = vset.pattern.permute.xlu0 0
          %2512 = vperm.xlu0 %2511, %v2454
          %v2513 = vpop.permute.xlu0 %2512
          %2516 = vset.pattern.permute.xlu0 0
          %2517 = vperm.xlu0 %2516, %v2455
          %v2518 = vpop.permute.xlu0 %2517
          %2521 = vset.pattern.permute.xlu0 0
          %2522 = vperm.xlu0 %2521, %v2456
          %v2523 = vpop.permute.xlu0 %2522
          %2526 = vset.pattern.permute.xlu0 0
          %2527 = vperm.xlu0 %2526, %v2457
          %v2528 = vpop.permute.xlu0 %2527
          %2531 = vset.pattern.permute.xlu0 0
          %2532 = vperm.xlu0 %2531, %v2458
          %v2533 = vpop.permute.xlu0 %2532
          %2536 = vset.pattern.permute.xlu0 0
          %2537 = vperm.xlu0 %2536, %v2459
          %v2538 = vpop.permute.xlu0 %2537
          %2541 = vset.pattern.permute.xlu0 0
          %2542 = vperm.xlu0 %2541, %v2460
          %v2543 = vpop.permute.xlu0 %2542
          %2546 = vset.pattern.permute.xlu0 0
          %2547 = vperm.xlu0 %2546, %v2461
          %v2548 = vpop.permute.xlu0 %2547
          %2551 = vset.pattern.permute.xlu0 0
          %2552 = vperm.xlu0 %2551, %v2462
          %v2553 = vpop.permute.xlu0 %2552
          %2556 = vset.pattern.permute.xlu0 0
          %2557 = vperm.xlu0 %2556, %v2463
          %v2558 = vpop.permute.xlu0 %2557
          %2561 = vset.pattern.permute.xlu0 0
          %2562 = vperm.xlu0 %2561, %v2464
          %v2563 = vpop.permute.xlu0 %2562
          %2566 = vset.pattern.permute.xlu0 0
          %2567 = vperm.xlu0 %2566, %v2465
          %v2568 = vpop.permute.xlu0 %2567
          %2571 = vset.pattern.permute.xlu0 0
          %2572 = vperm.xlu0 %2571, %v2466
          %v2573 = vpop.permute.xlu0 %2572
          %2576 = vset.pattern.permute.xlu0 0
          %2577 = vperm.xlu0 %2576, %v2467
          %v2578 = vpop.permute.xlu0 %2577
          %2581 = vset.pattern.permute.xlu0 0
          %2582 = vperm.xlu0 %2581, %v2468
          %v2583 = vpop.permute.xlu0 %2582
          %2586 = vset.pattern.permute.xlu0 0
          %2587 = vperm.xlu0 %2586, %v2469
          %v2588 = vpop.permute.xlu0 %2587
          %2591 = vset.pattern.permute.xlu0 0
          %2592 = vperm.xlu0 %2591, %v2470
          %v2593 = vpop.permute.xlu0 %2592
          %2596 = vset.pattern.permute.xlu0 0
          %2597 = vperm.xlu0 %2596, %v2471
          %v2598 = vpop.permute.xlu0 %2597
          %2601 = vset.pattern.permute.xlu0 0
          %2602 = vperm.xlu0 %2601, %v2472
          %v2603 = vpop.permute.xlu0 %2602
          %2606 = vset.pattern.permute.xlu0 0
          %2607 = vperm.xlu0 %2606, %v2473
          %v2608 = vpop.permute.xlu0 %2607
          %2611 = vset.pattern.permute.xlu0 0
          %2612 = vperm.xlu0 %2611, %v2474
          %v2613 = vpop.permute.xlu0 %2612
          %2616 = vset.pattern.permute.xlu0 0
          %2617 = vperm.xlu0 %2616, %v2475
          %v2618 = vpop.permute.xlu0 %2617
          %2621 = vset.pattern.permute.xlu0 0
          %2622 = vperm.xlu0 %2621, %v2476
          %v2623 = vpop.permute.xlu0 %2622
          %2626 = vset.pattern.permute.xlu0 0
          %2627 = vperm.xlu0 %2626, %v2477
          %v2628 = vpop.permute.xlu0 %2627
          %2631 = vset.pattern.permute.xlu0 0
          %2632 = vperm.xlu0 %2631, %v2478
          %v2633 = vpop.permute.xlu0 %2632
          %2636 = vset.pattern.permute.xlu0 0
          %2637 = vperm.xlu0 %2636, %v2479
          %v2638 = vpop.permute.xlu0 %2637
          %v2640 = vmul.f32 %v2384, %v2483
          %v2641 = vmul.f32 %v2385, %v2488
          %v2642 = vmul.f32 %v2386, %v2493
          %v2643 = vmul.f32 %v2387, %v2498
          %v2644 = vmul.f32 %v2388, %v2503
          %v2645 = vmul.f32 %v2389, %v2508
          %v2646 = vmul.f32 %v2390, %v2513
          %v2647 = vmul.f32 %v2391, %v2518
          %v2648 = vmul.f32 %v2392, %v2523
          %v2649 = vmul.f32 %v2393, %v2528
          %v2650 = vmul.f32 %v2394, %v2533
          %v2651 = vmul.f32 %v2395, %v2538
          %v2652 = vmul.f32 %v2396, %v2543
          %v2653 = vmul.f32 %v2397, %v2548
          %v2654 = vmul.f32 %v2398, %v2553
          %v2655 = vmul.f32 %v2399, %v2558
          %v2656 = vmul.f32 %v2400, %v2563
          %v2657 = vmul.f32 %v2401, %v2568
          %v2658 = vmul.f32 %v2402, %v2573
          %v2659 = vmul.f32 %v2403, %v2578
          %v2660 = vmul.f32 %v2404, %v2583
          %v2661 = vmul.f32 %v2405, %v2588
          %v2662 = vmul.f32 %v2406, %v2593
          %v2663 = vmul.f32 %v2407, %v2598
          %v2664 = vmul.f32 %v2408, %v2603
          %v2665 = vmul.f32 %v2409, %v2608
          %v2666 = vmul.f32 %v2410, %v2613
          %v2667 = vmul.f32 %v2411, %v2618
          %v2668 = vmul.f32 %v2412, %v2623
          %v2669 = vmul.f32 %v2413, %v2628
          %v2670 = vmul.f32 %v2414, %v2633
          %v2671 = vmul.f32 %v2415, %v2638
          %v2672 = vld [vmem:[#allocation5] sm:$0xff]
          %v2673 = vld [vmem:[#allocation5 + $0x8] sm:$0xff]
          %v2674 = vld [vmem:[#allocation5 + $0x10] sm:$0xff]
          %v2675 = vld [vmem:[#allocation5 + $0x18] sm:$0xff]
          %v2676 = vld [vmem:[#allocation5 + $0x20] sm:$0xff]
          %v2677 = vld [vmem:[#allocation5 + $0x28] sm:$0xff]
          %v2678 = vld [vmem:[#allocation5 + $0x30] sm:$0xff]
          %v2679 = vld [vmem:[#allocation5 + $0x38] sm:$0xff]
          %v2680 = vld [vmem:[#allocation5 + $0x40] sm:$0xff]
          %v2681 = vld [vmem:[#allocation5 + $0x48] sm:$0xff]
          %v2682 = vld [vmem:[#allocation5 + $0x50] sm:$0xff]
          %v2683 = vld [vmem:[#allocation5 + $0x58] sm:$0xff]
          %v2684 = vld [vmem:[#allocation5 + $0x60] sm:$0xff]
          %v2685 = vld [vmem:[#allocation5 + $0x68] sm:$0xff]
          %v2686 = vld [vmem:[#allocation5 + $0x70] sm:$0xff]
          %v2687 = vld [vmem:[#allocation5 + $0x78] sm:$0xff]
          %v2688 = vld [vmem:[#allocation5 + $0x80] sm:$0xff]
          %v2689 = vld [vmem:[#allocation5 + $0x88] sm:$0xff]
          %v2690 = vld [vmem:[#allocation5 + $0x90] sm:$0xff]
          %v2691 = vld [vmem:[#allocation5 + $0x98] sm:$0xff]
          %v2692 = vld [vmem:[#allocation5 + $0xa0] sm:$0xff]
          %v2693 = vld [vmem:[#allocation5 + $0xa8] sm:$0xff]
          %v2694 = vld [vmem:[#allocation5 + $0xb0] sm:$0xff]
          %v2695 = vld [vmem:[#allocation5 + $0xb8] sm:$0xff]
          %v2696 = vld [vmem:[#allocation5 + $0xc0] sm:$0xff]
          %v2697 = vld [vmem:[#allocation5 + $0xc8] sm:$0xff]
          %v2698 = vld [vmem:[#allocation5 + $0xd0] sm:$0xff]
          %v2699 = vld [vmem:[#allocation5 + $0xd8] sm:$0xff]
          %v2700 = vld [vmem:[#allocation5 + $0xe0] sm:$0xff]
          %v2701 = vld [vmem:[#allocation5 + $0xe8] sm:$0xff]
          %v2702 = vld [vmem:[#allocation5 + $0xf0] sm:$0xff]
          %v2703 = vld [vmem:[#allocation5 + $0xf8] sm:$0xff]
          %v2704 = vpack.c.bf16 %v2641, %v2640
          %v2705 = vpack.c.bf16 %v2643, %v2642
          %v2706 = vpack.c.bf16 %v2645, %v2644
          %v2707 = vpack.c.bf16 %v2647, %v2646
          %v2708 = vpack.c.bf16 %v2649, %v2648
          %v2709 = vpack.c.bf16 %v2651, %v2650
          %v2710 = vpack.c.bf16 %v2653, %v2652
          %v2711 = vpack.c.bf16 %v2655, %v2654
          %v2712 = vpack.c.bf16 %v2657, %v2656
          %v2713 = vpack.c.bf16 %v2659, %v2658
          %v2714 = vpack.c.bf16 %v2661, %v2660
          %v2715 = vpack.c.bf16 %v2663, %v2662
          %v2716 = vpack.c.bf16 %v2665, %v2664
          %v2717 = vpack.c.bf16 %v2667, %v2666
          %v2718 = vpack.c.bf16 %v2669, %v2668
          %v2719 = vpack.c.bf16 %v2671, %v2670
          %s2720 = smul.u32 %s27, 4
          %s2721 = smul.addr %s2720, 4
          %s2722 = scalar_lea.vmem %s3, %s2721
          %v2723 = vld [vmem:[%s2722] sm:$0xf]
          %v2724 = vld [vmem:[%s2722 + $0x4] sm:$0xf]
          %v2725 = vld [vmem:[%s2722 + $0x8] sm:$0xf]
          %v2726 = vld [vmem:[%s2722 + $0xc] sm:$0xf]
          %v2731 = vunpack.c.l.b16 %v2723
          %v2732 = vunpack.c.l.b16 %v2724
          %v2733 = vunpack.c.l.b16 %v2725
          %v2734 = vunpack.c.l.b16 %v2726
          %v2735 = vpack.c.b16 %v2732, %v2731
          %v2736 = vpack.c.b16 %v2734, %v2733
          %v2740 = vsel %vm697, %v2704, 0
          %v2743 = vsel %vm697, %v2705, 0
          %v2746 = vsel %vm697, %v2706, 0
          %v2749 = vsel %vm697, %v2707, 0
          %v2752 = vsel %vm697, %v2708, 0
          %v2755 = vsel %vm697, %v2709, 0
          %v2758 = vsel %vm697, %v2710, 0
          %v2761 = vsel %vm697, %v2711, 0
          %v2764 = vsel %vm697, %v2712, 0
          %v2767 = vsel %vm697, %v2713, 0
          %v2770 = vsel %vm697, %v2714, 0
          %v2773 = vsel %vm697, %v2715, 0
          %v2776 = vsel %vm697, %v2716, 0
          %v2779 = vsel %vm697, %v2717, 0
          %v2782 = vsel %vm697, %v2718, 0
          %v2785 = vsel %vm697, %v2719, 0
          %2787 = vmatprep.subr.bf16.mxu0 0
          %2788 = vmatpush1.bf16.msra.mxu0 %v2735
          %2789 = vmatprep.subr.bf16.mxu0 0
          %2790 = vmatpush1.bf16.msra.mxu0 %v2736
          %2791 = vmatprep.subr.bf16.mxu0 0
          %2792 = vmatpush1.bf16.msra.mxu0 0
          %2793 = vmatprep.subr.bf16.mxu0 0
          %2794 = vmatpush1.bf16.msra.mxu0 0
          %2795 = vmatprep.subr.bf16.mxu0 0
          %2796 = vmatpush1.bf16.msra.mxu0 0
          %2797 = vmatprep.subr.bf16.mxu0 0
          %2798 = vmatpush1.bf16.msra.mxu0 0
          %2799 = vmatprep.subr.bf16.mxu0 0
          %2800 = vmatpush1.bf16.msra.mxu0 0
          %2801 = vmatprep.subr.bf16.mxu0 0
          %2802 = vmatpush1.bf16.msra.mxu0 0
          %2803 = vmatprep.subr.bf16.mxu0 0
          %2804 = vmatpush1.bf16.msra.mxu0 0
          %2805 = vmatprep.subr.bf16.mxu0 0
          %2806 = vmatpush1.bf16.msra.mxu0 0
          %2807 = vmatprep.subr.bf16.mxu0 0
          %2808 = vmatpush1.bf16.msra.mxu0 0
          %2809 = vmatprep.subr.bf16.mxu0 0
          %2810 = vmatpush1.bf16.msra.mxu0 0
          %2811 = vmatprep.subr.bf16.mxu0 0
          %2812 = vmatpush1.bf16.msra.mxu0 0
          %2813 = vmatprep.subr.bf16.mxu0 0
          %2814 = vmatpush1.bf16.msra.mxu0 0
          %2815 = vmatprep.subr.bf16.mxu0 0
          %2816 = vmatpush1.bf16.msra.mxu0 0
          %2817 = vmatprep.subr.bf16.mxu0 0
          %2818 = vmatpush1.bf16.msra.mxu0 0
          %2819 = vmatprep.mubr.bf16.mxu0 0
          %2820 = vmatmul.mubr.bf16.gmra.mrb[0].mxu0 %v2740
          %v2821 = vpop.f32.mrb[0].mxu0
          %v2822 = vadd.f32 0.0, %v2821
          %v2823 = vpop.f32.mrb[0].mxu0
          %v2824 = vpop.f32.mrb[0].mxu0
          %v2825 = vadd.f32 0.0, %v2824
          %v2826 = vpop.f32.mrb[0].mxu0
          %2827 = vmatprep.mubr.bf16.mxu0 0
          %2828 = vmatmul.mubr.bf16.gmra.mrb[0].mxu0 %v2743
          %v2829 = vpop.f32.mrb[0].mxu0
          %v2830 = vadd.f32 0.0, %v2829
          %v2831 = vpop.f32.mrb[0].mxu0
          %v2832 = vpop.f32.mrb[0].mxu0
          %v2833 = vadd.f32 0.0, %v2832
          %v2834 = vpop.f32.mrb[0].mxu0
          %2835 = vmatprep.mubr.bf16.mxu0 0
          %2836 = vmatmul.mubr.bf16.gmra.mrb[0].mxu0 %v2746
          %v2837 = vpop.f32.mrb[0].mxu0
          %v2838 = vadd.f32 0.0, %v2837
          %v2839 = vpop.f32.mrb[0].mxu0
          %v2840 = vpop.f32.mrb[0].mxu0
          %v2841 = vadd.f32 0.0, %v2840
          %v2842 = vpop.f32.mrb[0].mxu0
          %2843 = vmatprep.mubr.bf16.mxu0 0
          %2844 = vmatmul.mubr.bf16.gmra.mrb[0].mxu0 %v2749
          %v2845 = vpop.f32.mrb[0].mxu0
          %v2846 = vadd.f32 0.0, %v2845
          %v2847 = vpop.f32.mrb[0].mxu0
          %v2848 = vpop.f32.mrb[0].mxu0
          %v2849 = vadd.f32 0.0, %v2848
          %v2850 = vpop.f32.mrb[0].mxu0
          %2851 = vmatprep.mubr.bf16.mxu0 0
          %2852 = vmatmul.mubr.bf16.gmra.mrb[0].mxu0 %v2752
          %v2853 = vpop.f32.mrb[0].mxu0
          %v2854 = vadd.f32 0.0, %v2853
          %v2855 = vpop.f32.mrb[0].mxu0
          %v2856 = vpop.f32.mrb[0].mxu0
          %v2857 = vadd.f32 0.0, %v2856
          %v2858 = vpop.f32.mrb[0].mxu0
          %2859 = vmatprep.mubr.bf16.mxu0 0
          %2860 = vmatmul.mubr.bf16.gmra.mrb[0].mxu0 %v2755
          %v2861 = vpop.f32.mrb[0].mxu0
          %v2862 = vadd.f32 0.0, %v2861
          %v2863 = vpop.f32.mrb[0].mxu0
          %v2864 = vpop.f32.mrb[0].mxu0
          %v2865 = vadd.f32 0.0, %v2864
          %v2866 = vpop.f32.mrb[0].mxu0
          %2867 = vmatprep.mubr.bf16.mxu0 0
          %2868 = vmatmul.mubr.bf16.gmra.mrb[0].mxu0 %v2758
          %v2869 = vpop.f32.mrb[0].mxu0
          %v2870 = vadd.f32 0.0, %v2869
          %v2871 = vpop.f32.mrb[0].mxu0
          %v2872 = vpop.f32.mrb[0].mxu0
          %v2873 = vadd.f32 0.0, %v2872
          %v2874 = vpop.f32.mrb[0].mxu0
          %2875 = vmatprep.mubr.bf16.mxu0 0
          %2876 = vmatmul.mubr.bf16.gmra.mrb[0].mxu0 %v2761
          %v2877 = vpop.f32.mrb[0].mxu0
          %v2878 = vadd.f32 0.0, %v2877
          %v2879 = vpop.f32.mrb[0].mxu0
          %v2880 = vpop.f32.mrb[0].mxu0
          %v2881 = vadd.f32 0.0, %v2880
          %v2882 = vpop.f32.mrb[0].mxu0
          %2883 = vmatprep.mubr.bf16.mxu0 0
          %2884 = vmatmul.mubr.bf16.gmra.mrb[0].mxu0 %v2764
          %v2885 = vpop.f32.mrb[0].mxu0
          %v2886 = vadd.f32 0.0, %v2885
          %v2887 = vpop.f32.mrb[0].mxu0
          %v2888 = vpop.f32.mrb[0].mxu0
          %v2889 = vadd.f32 0.0, %v2888
          %v2890 = vpop.f32.mrb[0].mxu0
          %2891 = vmatprep.mubr.bf16.mxu0 0
          %2892 = vmatmul.mubr.bf16.gmra.mrb[0].mxu0 %v2767
          %v2893 = vpop.f32.mrb[0].mxu0
          %v2894 = vadd.f32 0.0, %v2893
          %v2895 = vpop.f32.mrb[0].mxu0
          %v2896 = vpop.f32.mrb[0].mxu0
          %v2897 = vadd.f32 0.0, %v2896
          %v2898 = vpop.f32.mrb[0].mxu0
          %2899 = vmatprep.mubr.bf16.mxu0 0
          %2900 = vmatmul.mubr.bf16.gmra.mrb[0].mxu0 %v2770
          %v2901 = vpop.f32.mrb[0].mxu0
          %v2902 = vadd.f32 0.0, %v2901
          %v2903 = vpop.f32.mrb[0].mxu0
          %v2904 = vpop.f32.mrb[0].mxu0
          %v2905 = vadd.f32 0.0, %v2904
          %v2906 = vpop.f32.mrb[0].mxu0
          %2907 = vmatprep.mubr.bf16.mxu0 0
          %2908 = vmatmul.mubr.bf16.gmra.mrb[0].mxu0 %v2773
          %v2909 = vpop.f32.mrb[0].mxu0
          %v2910 = vadd.f32 0.0, %v2909
          %v2911 = vpop.f32.mrb[0].mxu0
          %v2912 = vpop.f32.mrb[0].mxu0
          %v2913 = vadd.f32 0.0, %v2912
          %v2914 = vpop.f32.mrb[0].mxu0
          %2915 = vmatprep.mubr.bf16.mxu0 0
          %2916 = vmatmul.mubr.bf16.gmra.mrb[0].mxu0 %v2776
          %v2917 = vpop.f32.mrb[0].mxu0
          %v2918 = vadd.f32 0.0, %v2917
          %v2919 = vpop.f32.mrb[0].mxu0
          %v2920 = vpop.f32.mrb[0].mxu0
          %v2921 = vadd.f32 0.0, %v2920
          %v2922 = vpop.f32.mrb[0].mxu0
          %2923 = vmatprep.mubr.bf16.mxu0 0
          %2924 = vmatmul.mubr.bf16.gmra.mrb[0].mxu0 %v2779
          %v2925 = vpop.f32.mrb[0].mxu0
          %v2926 = vadd.f32 0.0, %v2925
          %v2927 = vpop.f32.mrb[0].mxu0
          %v2928 = vpop.f32.mrb[0].mxu0
          %v2929 = vadd.f32 0.0, %v2928
          %v2930 = vpop.f32.mrb[0].mxu0
          %2931 = vmatprep.mubr.bf16.mxu0 0
          %2932 = vmatmul.mubr.bf16.gmra.mrb[0].mxu0 %v2782
          %v2933 = vpop.f32.mrb[0].mxu0
          %v2934 = vadd.f32 0.0, %v2933
          %v2935 = vpop.f32.mrb[0].mxu0
          %v2936 = vpop.f32.mrb[0].mxu0
          %v2937 = vadd.f32 0.0, %v2936
          %v2938 = vpop.f32.mrb[0].mxu0
          %2939 = vmatprep.mubr.bf16.mxu0 0
          %2940 = vmatmul.mubr.bf16.gmra.mrb[0].mxu0 %v2785
          %v2941 = vpop.f32.mrb[0].mxu0
          %v2942 = vadd.f32 0.0, %v2941
          %v2943 = vpop.f32.mrb[0].mxu0
          %v2944 = vpop.f32.mrb[0].mxu0
          %v2945 = vadd.f32 0.0, %v2944
          %v2946 = vpop.f32.mrb[0].mxu0
          %2947 = vdwg.mxu0
          %v2948 = vadd.f32 %v2672, %v2822
          %v2949 = vadd.f32 %v2673, %v2825
          %v2950 = vadd.f32 %v2674, %v2830
          %v2951 = vadd.f32 %v2675, %v2833
          %v2952 = vadd.f32 %v2676, %v2838
          %v2953 = vadd.f32 %v2677, %v2841
          %v2954 = vadd.f32 %v2678, %v2846
          %v2955 = vadd.f32 %v2679, %v2849
          %v2956 = vadd.f32 %v2680, %v2854
          %v2957 = vadd.f32 %v2681, %v2857
          %v2958 = vadd.f32 %v2682, %v2862
          %v2959 = vadd.f32 %v2683, %v2865
          %v2960 = vadd.f32 %v2684, %v2870
          %v2961 = vadd.f32 %v2685, %v2873
          %v2962 = vadd.f32 %v2686, %v2878
          %v2963 = vadd.f32 %v2687, %v2881
          %v2964 = vadd.f32 %v2688, %v2886
          %v2965 = vadd.f32 %v2689, %v2889
          %v2966 = vadd.f32 %v2690, %v2894
          %v2967 = vadd.f32 %v2691, %v2897
          %v2968 = vadd.f32 %v2692, %v2902
          %v2969 = vadd.f32 %v2693, %v2905
          %v2970 = vadd.f32 %v2694, %v2910
          %v2971 = vadd.f32 %v2695, %v2913
          %v2972 = vadd.f32 %v2696, %v2918
          %v2973 = vadd.f32 %v2697, %v2921
          %v2974 = vadd.f32 %v2698, %v2926
          %v2975 = vadd.f32 %v2699, %v2929
          %v2976 = vadd.f32 %v2700, %v2934
          %v2977 = vadd.f32 %v2701, %v2937
          %v2978 = vadd.f32 %v2702, %v2942
          %v2979 = vadd.f32 %v2703, %v2945
          %2980 = vst [vmem:[#allocation5] sm:$0xff] %v2948
          %2981 = vst [vmem:[#allocation5 + $0x8] sm:$0xff] %v2949
          %2982 = vst [vmem:[#allocation5 + $0x10] sm:$0xff] %v2950
          %2983 = vst [vmem:[#allocation5 + $0x18] sm:$0xff] %v2951
          %2984 = vst [vmem:[#allocation5 + $0x20] sm:$0xff] %v2952
          %2985 = vst [vmem:[#allocation5 + $0x28] sm:$0xff] %v2953
          %2986 = vst [vmem:[#allocation5 + $0x30] sm:$0xff] %v2954
          %2987 = vst [vmem:[#allocation5 + $0x38] sm:$0xff] %v2955
          %2988 = vst [vmem:[#allocation5 + $0x40] sm:$0xff] %v2956
          %2989 = vst [vmem:[#allocation5 + $0x48] sm:$0xff] %v2957
          %2990 = vst [vmem:[#allocation5 + $0x50] sm:$0xff] %v2958
          %2991 = vst [vmem:[#allocation5 + $0x58] sm:$0xff] %v2959
          %2992 = vst [vmem:[#allocation5 + $0x60] sm:$0xff] %v2960
          %2993 = vst [vmem:[#allocation5 + $0x68] sm:$0xff] %v2961
          %2994 = vst [vmem:[#allocation5 + $0x70] sm:$0xff] %v2962
          %2995 = vst [vmem:[#allocation5 + $0x78] sm:$0xff] %v2963
          %2996 = vst [vmem:[#allocation5 + $0x80] sm:$0xff] %v2964
          %2997 = vst [vmem:[#allocation5 + $0x88] sm:$0xff] %v2965
          %2998 = vst [vmem:[#allocation5 + $0x90] sm:$0xff] %v2966
          %2999 = vst [vmem:[#allocation5 + $0x98] sm:$0xff] %v2967
          %3000 = vst [vmem:[#allocation5 + $0xa0] sm:$0xff] %v2968
          %3001 = vst [vmem:[#allocation5 + $0xa8] sm:$0xff] %v2969
          %3002 = vst [vmem:[#allocation5 + $0xb0] sm:$0xff] %v2970
          %3003 = vst [vmem:[#allocation5 + $0xb8] sm:$0xff] %v2971
          %3004 = vst [vmem:[#allocation5 + $0xc0] sm:$0xff] %v2972
          %3005 = vst [vmem:[#allocation5 + $0xc8] sm:$0xff] %v2973
          %3006 = vst [vmem:[#allocation5 + $0xd0] sm:$0xff] %v2974
          %3007 = vst [vmem:[#allocation5 + $0xd8] sm:$0xff] %v2975
          %3008 = vst [vmem:[#allocation5 + $0xe0] sm:$0xff] %v2976
          %3009 = vst [vmem:[#allocation5 + $0xe8] sm:$0xff] %v2977
          %3010 = vst [vmem:[#allocation5 + $0xf0] sm:$0xff] %v2978
          %3011 = vst [vmem:[#allocation5 + $0xf8] sm:$0xff] %v2979
        $region52: #{tpu_custom_call.1} parent=39 // pred_fallthru
          _
        %p3012 = scmp.eq.s32.totalorder %s27, 3
        %p3013 = pnand %p3012, %p384
        %p3014 = pneg %p3013
        // Predicated region
        $region53: #{tpu_custom_call.1} parent=39 // pred_check
          _
        $region54: #{tpu_custom_call.1} parent=39 // pred_check_branch
          %3016 = sbr.rel (%p3013) target = $region56
        $region55: #{tpu_custom_call.1} parent=39 // pred_region
          %v3017 = vld [vmem:[#allocation5] sm:$0xff]
          %v3018 = vld [vmem:[#allocation5 + $0x8] sm:$0xff]
          %v3019 = vld [vmem:[#allocation5 + $0x10] sm:$0xff]
          %v3020 = vld [vmem:[#allocation5 + $0x18] sm:$0xff]
          %v3021 = vld [vmem:[#allocation5 + $0x20] sm:$0xff]
          %v3022 = vld [vmem:[#allocation5 + $0x28] sm:$0xff]
          %v3023 = vld [vmem:[#allocation5 + $0x30] sm:$0xff]
          %v3024 = vld [vmem:[#allocation5 + $0x38] sm:$0xff]
          %v3025 = vld [vmem:[#allocation5 + $0x40] sm:$0xff]
          %v3026 = vld [vmem:[#allocation5 + $0x48] sm:$0xff]
          %v3027 = vld [vmem:[#allocation5 + $0x50] sm:$0xff]
          %v3028 = vld [vmem:[#allocation5 + $0x58] sm:$0xff]
          %v3029 = vld [vmem:[#allocation5 + $0x60] sm:$0xff]
          %v3030 = vld [vmem:[#allocation5 + $0x68] sm:$0xff]
          %v3031 = vld [vmem:[#allocation5 + $0x70] sm:$0xff]
          %v3032 = vld [vmem:[#allocation5 + $0x78] sm:$0xff]
          %v3033 = vld [vmem:[#allocation5 + $0x80] sm:$0xff]
          %v3034 = vld [vmem:[#allocation5 + $0x88] sm:$0xff]
          %v3035 = vld [vmem:[#allocation5 + $0x90] sm:$0xff]
          %v3036 = vld [vmem:[#allocation5 + $0x98] sm:$0xff]
          %v3037 = vld [vmem:[#allocation5 + $0xa0] sm:$0xff]
          %v3038 = vld [vmem:[#allocation5 + $0xa8] sm:$0xff]
          %v3039 = vld [vmem:[#allocation5 + $0xb0] sm:$0xff]
          %v3040 = vld [vmem:[#allocation5 + $0xb8] sm:$0xff]
          %v3041 = vld [vmem:[#allocation5 + $0xc0] sm:$0xff]
          %v3042 = vld [vmem:[#allocation5 + $0xc8] sm:$0xff]
          %v3043 = vld [vmem:[#allocation5 + $0xd0] sm:$0xff]
          %v3044 = vld [vmem:[#allocation5 + $0xd8] sm:$0xff]
          %v3045 = vld [vmem:[#allocation5 + $0xe0] sm:$0xff]
          %v3046 = vld [vmem:[#allocation5 + $0xe8] sm:$0xff]
          %v3047 = vld [vmem:[#allocation5 + $0xf0] sm:$0xff]
          %v3048 = vld [vmem:[#allocation5 + $0xf8] sm:$0xff]
          %3049 = vst [vmem:[%s338] sm:$0xff] %v3017
          %3050 = vst [vmem:[%s338 + $0x8] sm:$0xff] %v3018
          %3051 = vst [vmem:[%s338 + $0x10] sm:$0xff] %v3019
          %3052 = vst [vmem:[%s338 + $0x18] sm:$0xff] %v3020
          %3053 = vst [vmem:[%s338 + $0x20] sm:$0xff] %v3021
          %3054 = vst [vmem:[%s338 + $0x28] sm:$0xff] %v3022
          %3055 = vst [vmem:[%s338 + $0x30] sm:$0xff] %v3023
          %3056 = vst [vmem:[%s338 + $0x38] sm:$0xff] %v3024
          %3057 = vst [vmem:[%s338 + $0x40] sm:$0xff] %v3025
          %3058 = vst [vmem:[%s338 + $0x48] sm:$0xff] %v3026
          %3059 = vst [vmem:[%s338 + $0x50] sm:$0xff] %v3027
          %3060 = vst [vmem:[%s338 + $0x58] sm:$0xff] %v3028
          %3061 = vst [vmem:[%s338 + $0x60] sm:$0xff] %v3029
          %3062 = vst [vmem:[%s338 + $0x68] sm:$0xff] %v3030
          %3063 = vst [vmem:[%s338 + $0x70] sm:$0xff] %v3031
          %3064 = vst [vmem:[%s338 + $0x78] sm:$0xff] %v3032
          %3065 = vst [vmem:[%s338 + $0x80] sm:$0xff] %v3033
          %3066 = vst [vmem:[%s338 + $0x88] sm:$0xff] %v3034
          %3067 = vst [vmem:[%s338 + $0x90] sm:$0xff] %v3035
          %3068 = vst [vmem:[%s338 + $0x98] sm:$0xff] %v3036
          %3069 = vst [vmem:[%s338 + $0xa0] sm:$0xff] %v3037
          %3070 = vst [vmem:[%s338 + $0xa8] sm:$0xff] %v3038
          %3071 = vst [vmem:[%s338 + $0xb0] sm:$0xff] %v3039
          %3072 = vst [vmem:[%s338 + $0xb8] sm:$0xff] %v3040
          %3073 = vst [vmem:[%s338 + $0xc0] sm:$0xff] %v3041
          %3074 = vst [vmem:[%s338 + $0xc8] sm:$0xff] %v3042
          %3075 = vst [vmem:[%s338 + $0xd0] sm:$0xff] %v3043
          %3076 = vst [vmem:[%s338 + $0xd8] sm:$0xff] %v3044
          %3077 = vst [vmem:[%s338 + $0xe0] sm:$0xff] %v3045
          %3078 = vst [vmem:[%s338 + $0xe8] sm:$0xff] %v3046
          %3079 = vst [vmem:[%s338 + $0xf0] sm:$0xff] %v3047
          %3080 = vst [vmem:[%s338 + $0xf8] sm:$0xff] %v3048
        $region56: #{tpu_custom_call.1} parent=39 // pred_fallthru
          _
        %s3081 = sand.u32 %s187, 1
        %s3082 = scalar_lea.sflag [#allocation7], %s3081
        %s3083 = sand.u32 %s187, 1
        %s3084 = smul.addr %s3083, 256
        %s3085 = scalar_lea.vmem [#allocation6], %s3084
        // Predicated region
        $region57: #{tpu_custom_call.1} parent=39 // pred_check
          %p3086 = pneg %p197
        $region58: #{tpu_custom_call.1} parent=39 // pred_check_branch
          %3088 = sbr.rel (%p3086) target = $region60
        $region59: #{tpu_custom_call.1} parent=39 // pred_region
          %s3089 = smul.u32 32, %s26
          %s3091 = ssub.s32 4096, 4096
          %3092 = vsyncadd %s3082, %s3091
          %s3093 = smul.addr %s25, 32
          %s3094 = sadd.s32 %s3089, %s3093
          %s3095 = smul.addr %s3094, 128
          %s3096 = scalar_lea.hbm %s5, %s3095
          %s3097 = sshll.u32 %s3085, 4
          %s3098 = int_to_ptr.vmem [resolvable:$true] %s3097
          %3103 = dma.vmem_to_hbm [thread:$0]  %s3098, 4096, %s3096, %s3082, 128, 128, 8
        $region60: #{tpu_custom_call.1} parent=39 // pred_fallthru
          _
      $region40: #{tpu_custom_call.1} parent=5 // pred_fallthru
        _
      %p3104 = scmp.le.s32.totalorder 2, %s14
      // Predicated region
      $region61: #{tpu_custom_call.1} parent=5 // pred_check
        %p3105 = pneg %p3104
      $region62: #{tpu_custom_call.1} parent=5 // pred_check_branch
        %3107 = sbr.rel (%p3105) target = $region64
      $region63: #{tpu_custom_call.1} parent=5 // pred_region
        %s3108 = ssub.s32 %s14, 2
        // Predicated region
        $region65: #{tpu_custom_call.1} parent=63 // pred_check
          %p3109 = pneg %p203
        $region66: #{tpu_custom_call.1} parent=63 // pred_check_branch
          %3111 = sbr.rel (%p3109) target = $region68
        $region67: #{tpu_custom_call.1} parent=63 // pred_region
          %s3112 = sand.u32 %s188, 1
          %s3113 = scalar_lea.sflag [#allocation7], %s3112
          %s3114 = sand.u32 %s188, 1
          %s3115 = smul.addr %s3114, 256
          %s3116 = scalar_lea.vmem [#allocation6], %s3115
          %3117 = dma.done %s3113, 4096
        $region68: #{tpu_custom_call.1} parent=63 // pred_fallthru
          _
      $region64: #{tpu_custom_call.1} parent=5 // pred_fallthru
        _
    $region6: #{tpu_custom_call.1} parent=1 // loop_footer
      %s18 = sadd.s32 1, %s14
    $region7: #{tpu_custom_call.1} parent=1 // loop_footer_branch
      %13 = sbr.rel target = $region3
    $region8: #{tpu_custom_call.1} parent=1 // loop_exit
      _
    %3118 = vsyncpa [#allocation7], 1
    %s3119 = scalar_lea.sflag [#allocation7], 1
    %3120 = vsyncpa %s3119, 1

</llo_original>
